<compile_context>
chip_gen: v7x
topology: tpu7x:2x2x1
jax: 0.10.0
libtpu: 0.0.40
codegen_flags: <defaults>
</compile_context>

<pallas_src>
import math

import jax
import jax.numpy as jnp
from jax.experimental import pallas as pl
from jax.experimental.pallas import tpu as pltpu

N_CLASSES = 2
HIDDEN = 1000
H_PAD = 1024  # HIDDEN rounded up to a multiple of 128 (lane width)


def _mlp_kernel(z_ref, w1_ref, b1_ref, w2_ref, b2_ref, w3_ref, b3_ref, out_ref):
    # ---- Layer 1: (TB, 2) x (2, H) as a VPU outer product (K=2 wastes the MXU) ----
    z = z_ref[...]                       # (TB, 2)  f32
    w1 = w1_ref[...]                     # (2, H)   f32
    h1 = z[:, 0:1] * w1[0:1, :] + z[:, 1:2] * w1[1:2, :] + b1_ref[...]
    h1 = jnp.maximum(h1, 0.0)            # (TB, H)  f32

    # ---- Layer 2: bf16 MXU matmul with f32 accumulation ----
    h2 = jnp.dot(h1.astype(jnp.bfloat16), w2_ref[...],
                 preferred_element_type=jnp.float32)
    h2 = jnp.maximum(h2 + b2_ref[...], 0.0)   # (TB, H) f32

    # ---- Layer 3: N=1 -> elementwise multiply + lane reduction (no MXU, no masked
    #      partial-store matmul epilogue), scalar bias from SMEM, sigmoid on EUP ----
    logits = jnp.sum(h2 * w3_ref[...], axis=-1, keepdims=True) + b3_ref[0, 0]
    out_ref[...] = jax.nn.sigmoid(logits)


def _round_up(x, m):
    return ((x + m - 1) // m) * m


def discriminator_category_forward(z, prepared_params, tb=256):
    """z: (B, N_CLASSES) float32 -> (B, 1) float32.

    prepared_params = (w1p, b1p, w2p_bf16, b2p, w3p_row, b3) from prepare_params().
    """
    w1p, b1p, w2p, b2p, w3p, b3p = prepared_params
    B = z.shape[0]

    # Pad batch so the (8, 128) sublane rule holds and B is a multiple of the tile.
    b_pad = _round_up(B, 8)
    tb_eff = min(tb, b_pad)
    b_pad = _round_up(b_pad, tb_eff)
    if b_pad != B:
        z = jnp.pad(z, ((0, b_pad - B), (0, 0)))

    grid = (b_pad // tb_eff,)

    # Advisory cost hint for XLA scheduling around the custom call.
    weight_bytes = (w1p.size * 4 + b1p.size * 4 + w2p.size * 2 + b2p.size * 4
                    + w3p.size * 4 + 4)
    cost = pl.CostEstimate(
        flops=2 * b_pad * H_PAD * H_PAD + 8 * b_pad * H_PAD,
        transcendentals=b_pad,
        bytes_accessed=weight_bytes + b_pad * (N_CLASSES + 1) * 4,
    )

    out = pl.pallas_call(
        _mlp_kernel,
        out_shape=jax.ShapeDtypeStruct((b_pad, 1), jnp.float32),
        grid=grid,
        in_specs=[
            pl.BlockSpec((tb_eff, N_CLASSES), lambda i: (i, 0)),   # z tile
            pl.BlockSpec((N_CLASSES, H_PAD), lambda i: (0, 0)),    # w1 (resident)
            pl.BlockSpec((1, H_PAD), lambda i: (0, 0)),            # b1 (resident)
            pl.BlockSpec((H_PAD, H_PAD), lambda i: (0, 0)),        # w2 bf16 (resident)
            pl.BlockSpec((1, H_PAD), lambda i: (0, 0)),            # b2 (resident)
            pl.BlockSpec((1, H_PAD), lambda i: (0, 0)),            # w3 row (resident)
            pl.BlockSpec(memory_space=pltpu.MemorySpace.SMEM),     # b3 scalar
        ],
        out_specs=pl.BlockSpec((tb_eff, 1), lambda i: (i, 0)),
        compiler_params=pltpu.CompilerParams(
            dimension_semantics=("parallel",),
            vmem_limit_bytes=32 << 20,
        ),
        cost_estimate=cost,
    )(z, w1p, b1p, w2p, b2p, w3p, b3p)

    return out[:B]


def prepare_params(params):
    """Pad HIDDEN -> H_PAD with zeros, cast w2 to bf16, reshape w3/b3 for the kernel."""
    w1, b1, w2, b2, w3, b3 = params
    ph = H_PAD - HIDDEN
    w1p = jnp.pad(w1, ((0, 0), (0, ph)))                               # (2, 1024) f32
    b1p = jnp.pad(b1, ((0, 0), (0, ph)))                               # (1, 1024) f32
    w2p = jnp.pad(w2, ((0, ph), (0, ph))).astype(jnp.bfloat16)         # (1024, 1024) bf16
    b2p = jnp.pad(b2, ((0, 0), (0, ph)))                               # (1, 1024) f32
    w3p = jnp.pad(w3.reshape(1, HIDDEN), ((0, 0), (0, ph)))            # (1, 1024) f32
    b3p = b3.reshape(1, 1)                                             # (1, 1) f32 (SMEM)
    return (w1p, b1p, w2p, b2p, w3p, b3p)


def init_params(key):
    """Deterministic init mimicking PyTorch nn.Linear defaults:
    U(-1/sqrt(fan_in), 1/sqrt(fan_in)) for both weight and bias.
    Weights are stored transposed: (in_features, out_features)."""
    keys = jax.random.split(key, 6)
    dims = [(N_CLASSES, HIDDEN), (HIDDEN, HIDDEN), (HIDDEN, 1)]
    params = []
    for i, (fan_in, fan_out) in enumerate(dims):
        bound = 1.0 / math.sqrt(fan_in)
        w = jax.random.uniform(
            keys[2 * i], (fan_in, fan_out), jnp.float32, -bound, bound
        )
        b = jax.random.uniform(
            keys[2 * i + 1], (1, fan_out), jnp.float32, -bound, bound
        )
        params.extend([w, b])
    return tuple(params)


def _ref_bf16(z, params):
    """Plain-JAX reference mirroring the kernel math (bf16 layer-2 matmul)."""
    w1, b1, w2, b2, w3, b3 = params
    h1 = jnp.maximum(z[:, 0:1] * w1[0:1, :] + z[:, 1:2] * w1[1:2, :] + b1, 0.0)
    h2 = jnp.dot(h1.astype(jnp.bfloat16), w2.astype(jnp.bfloat16),
                 preferred_element_type=jnp.float32)
    h2 = jnp.maximum(h2 + b2, 0.0)
    logits = jnp.sum(h2 * w3.reshape(1, HIDDEN), axis=-1, keepdims=True) + b3
    return jax.nn.sigmoid(logits)


def _ref_f32(z, params):
    """Exact f32 PyTorch-faithful forward."""
    w1, b1, w2, b2, w3, b3 = params
    h1 = jnp.maximum(z @ w1 + b1, 0.0)
    h2 = jnp.maximum(h1 @ w2 + b2, 0.0)
    return jax.nn.sigmoid(h2 @ w3 + b3)


if __name__ == "__main__":
    key = jax.random.PRNGKey(0)
    pkey, zkey1, zkey2 = jax.random.split(key, 3)

    params = init_params(pkey)
    prepared = prepare_params(params)

    # --- Case 1: small batch, single tile (tb_eff = 8) ---
    batch = 8
    z = jax.random.normal(zkey1, (batch, N_CLASSES), dtype=jnp.float32)
    out = jax.block_until_ready(discriminator_category_forward(z, prepared))

    ref = _ref_bf16(z, params)
    ref_f32 = _ref_f32(z, params)
    assert out.shape == (batch, 1), out.shape
    assert jnp.allclose(out, ref, atol=1e-3, rtol=1e-3), (out, ref)
    assert jnp.allclose(out, ref_f32, atol=3e-2, rtol=3e-2), (out, ref_f32)

    # --- Case 2: ragged batch exercising padding + multi-tile grid (grid=(2,)) ---
    batch2 = 13
    z2 = jax.random.normal(zkey2, (batch2, N_CLASSES), dtype=jnp.float32)
    out2 = jax.block_until_ready(discriminator_category_forward(z2, prepared, tb=8))

    ref2 = _ref_bf16(z2, params)
    assert out2.shape == (batch2, 1), out2.shape
    assert jnp.allclose(out2, ref2, atol=1e-3, rtol=1e-3), (out2, ref2)
    assert bool(jnp.all(jnp.isfinite(out2)))

    print("KERNEL_OK")
</pallas_src>

<mosaic_0001>
module attributes {stable_mosaic.version = 11 : i64} {
  func.func @_mlp_kernel(%arg0: i32, %arg1: memref<8x2xf32, #tpu.memory_space<vmem>>, %arg2: memref<2x1024xf32, #tpu.memory_space<vmem>>, %arg3: memref<1x1024xf32, #tpu.memory_space<vmem>>, %arg4: memref<1024x1024xbf16, #tpu.memory_space<vmem>>, %arg5: memref<1x1024xf32, #tpu.memory_space<vmem>>, %arg6: memref<1x1024xf32, #tpu.memory_space<vmem>>, %arg7: memref<1x1xf32, #tpu.memory_space<smem>>, %arg8: memref<8x1xf32, #tpu.memory_space<vmem>>) attributes {dimension_semantics = [#tpu.dimension_semantics<parallel>], iteration_bounds = array<i64: 1>, scalar_prefetch = 0 : i64, scratch_operands = 0 : i64, tpu.core_type = #tpu.core_type<tc>, window_params = [{transform_indices = @transform_0, window_bounds = array<i64: 8, 2>}, {pipeline_mode = #tpu.pipeline_mode<synchronous>, transform_indices = @transform_1, window_bounds = array<i64: 2, 1024>}, {pipeline_mode = #tpu.pipeline_mode<synchronous>, transform_indices = @transform_2, window_bounds = array<i64: 1, 1024>}, {pipeline_mode = #tpu.pipeline_mode<synchronous>, transform_indices = @transform_3, window_bounds = array<i64: 1024, 1024>}, {pipeline_mode = #tpu.pipeline_mode<synchronous>, transform_indices = @transform_4, window_bounds = array<i64: 1, 1024>}, {pipeline_mode = #tpu.pipeline_mode<synchronous>, transform_indices = @transform_5, window_bounds = array<i64: 1, 1024>}, {transform_indices = @transform_6, window_bounds = array<i64: 1, 1>}, {transform_indices = @transform_7, window_bounds = array<i64: 8, 1>}]} {
    %c0 = arith.constant 0 : index
    %c0_0 = arith.constant 0 : index
    %0 = vector.load %arg1[%c0, %c0_0] : memref<8x2xf32, #tpu.memory_space<vmem>>, vector<8x2xf32>
    %c0_1 = arith.constant 0 : index
    %c0_2 = arith.constant 0 : index
    %1 = vector.load %arg2[%c0_1, %c0_2] : memref<2x1024xf32, #tpu.memory_space<vmem>>, vector<2x1024xf32>
    %2 = vector.extract_strided_slice %0 {offsets = [0, 0], sizes = [8, 1], strides = [1, 1]} : vector<8x2xf32> to vector<8x1xf32>
    %3 = vector.extract_strided_slice %1 {offsets = [0, 0], sizes = [1, 1024], strides = [1, 1]} : vector<2x1024xf32> to vector<1x1024xf32>
    %4 = vector.broadcast %2 : vector<8x1xf32> to vector<8x1024xf32>
    %5 = vector.broadcast %3 : vector<1x1024xf32> to vector<8x1024xf32>
    %6 = arith.mulf %4, %5 : vector<8x1024xf32>
    %7 = vector.extract_strided_slice %0 {offsets = [0, 1], sizes = [8, 1], strides = [1, 1]} : vector<8x2xf32> to vector<8x1xf32>
    %8 = vector.extract_strided_slice %1 {offsets = [1, 0], sizes = [1, 1024], strides = [1, 1]} : vector<2x1024xf32> to vector<1x1024xf32>
    %9 = vector.broadcast %7 : vector<8x1xf32> to vector<8x1024xf32>
    %10 = vector.broadcast %8 : vector<1x1024xf32> to vector<8x1024xf32>
    %11 = arith.mulf %9, %10 : vector<8x1024xf32>
    %12 = arith.addf %6, %11 : vector<8x1024xf32>
    %c0_3 = arith.constant 0 : index
    %c0_4 = arith.constant 0 : index
    %13 = vector.load %arg3[%c0_3, %c0_4] : memref<1x1024xf32, #tpu.memory_space<vmem>>, vector<1x1024xf32>
    %14 = vector.broadcast %13 : vector<1x1024xf32> to vector<8x1024xf32>
    %15 = arith.addf %12, %14 : vector<8x1024xf32>
    %cst = arith.constant 0.000000e+00 : f32
    %16 = vector.broadcast %cst : f32 to vector<8x1024xf32>
    %17 = arith.maximumf %15, %16 : vector<8x1024xf32>
    %18 = arith.truncf %17 : vector<8x1024xf32> to vector<8x1024xbf16>
    %c0_5 = arith.constant 0 : index
    %c0_6 = arith.constant 0 : index
    %19 = vector.load %arg4[%c0_5, %c0_6] : memref<1024x1024xbf16, #tpu.memory_space<vmem>>, vector<1024x1024xbf16>
    %cst_7 = arith.constant dense<0.000000e+00> : vector<8x1024xf32>
    %20 = tpu.matmul %18, %19, %cst_7 {dimension_numbers = #tpu.dot_dimension_numbers<[1], [0], [0], [1], [0, 0, 1, 1], [], []>} : vector<8x1024xbf16>, vector<1024x1024xbf16>, vector<8x1024xf32> -> vector<8x1024xf32>
    %c0_8 = arith.constant 0 : index
    %c0_9 = arith.constant 0 : index
    %21 = vector.load %arg5[%c0_8, %c0_9] : memref<1x1024xf32, #tpu.memory_space<vmem>>, vector<1x1024xf32>
    %22 = vector.broadcast %21 : vector<1x1024xf32> to vector<8x1024xf32>
    %23 = arith.addf %20, %22 : vector<8x1024xf32>
    %cst_10 = arith.constant 0.000000e+00 : f32
    %24 = vector.broadcast %cst_10 : f32 to vector<8x1024xf32>
    %25 = arith.maximumf %23, %24 : vector<8x1024xf32>
    %c0_11 = arith.constant 0 : index
    %c0_12 = arith.constant 0 : index
    %26 = vector.load %arg6[%c0_11, %c0_12] : memref<1x1024xf32, #tpu.memory_space<vmem>>, vector<1x1024xf32>
    %27 = vector.broadcast %26 : vector<1x1024xf32> to vector<8x1024xf32>
    %28 = arith.mulf %25, %27 : vector<8x1024xf32>
    %cst_13 = arith.constant dense<0.000000e+00> : vector<8xf32>
    %29 = vector.multi_reduction <add>, %28, %cst_13 [1] : vector<8x1024xf32> to vector<8xf32>
    %30 = vector.shape_cast %29 : vector<8xf32> to vector<8x1xf32>
    %c0_14 = arith.constant 0 : index
    %c0_15 = arith.constant 0 : index
    %31 = memref.load %arg7[%c0_14, %c0_15] : memref<1x1xf32, #tpu.memory_space<smem>>
    %32 = vector.broadcast %31 : f32 to vector<8x1xf32>
    %33 = arith.addf %30, %32 : vector<8x1xf32>
    %34 = arith.negf %33 : vector<8x1xf32>
    %35 = math.exp %34 : vector<8x1xf32>
    %cst_16 = arith.constant 1.000000e+00 : f32
    %36 = vector.broadcast %cst_16 : f32 to vector<8x1xf32>
    %37 = arith.addf %36, %35 : vector<8x1xf32>
    %38 = arith.divf %36, %37 : vector<8x1xf32>
    %c0_17 = arith.constant 0 : index
    %c0_18 = arith.constant 0 : index
    %39 = vector.load %arg8[%c0_17, %c0_18] : memref<8x1xf32, #tpu.memory_space<vmem>>, vector<8x1xf32>
    tpu.vector_store %arg8[%c0_17, %c0_18], %38 {strides = array<i32>} : memref<8x1xf32, #tpu.memory_space<vmem>>, vector<8x1xf32>,
    return
  }
  func.func @transform_0(%arg0: i32) -> (i32, i32) {
    %c0_i32 = arith.constant 0 : i32
    %c0_i32_0 = arith.constant 0 : i32
    return %arg0, %c0_i32 : i32, i32
  }
  func.func @transform_1(%arg0: i32) -> (i32, i32) {
    %c0_i32 = arith.constant 0 : i32
    %c0_i32_0 = arith.constant 0 : i32
    %c0_i32_1 = arith.constant 0 : i32
    return %c0_i32, %c0_i32_0 : i32, i32
  }
  func.func @transform_2(%arg0: i32) -> (i32, i32) {
    %c0_i32 = arith.constant 0 : i32
    %c0_i32_0 = arith.constant 0 : i32
    %c0_i32_1 = arith.constant 0 : i32
    return %c0_i32, %c0_i32_0 : i32, i32
  }
  func.func @transform_3(%arg0: i32) -> (i32, i32) {
    %c0_i32 = arith.constant 0 : i32
    %c0_i32_0 = arith.constant 0 : i32
    %c0_i32_1 = arith.constant 0 : i32
    return %c0_i32, %c0_i32_0 : i32, i32
  }
  func.func @transform_4(%arg0: i32) -> (i32, i32) {
    %c0_i32 = arith.constant 0 : i32
    %c0_i32_0 = arith.constant 0 : i32
    %c0_i32_1 = arith.constant 0 : i32
    return %c0_i32, %c0_i32_0 : i32, i32
  }
  func.func @transform_5(%arg0: i32) -> (i32, i32) {
    %c0_i32 = arith.constant 0 : i32
    %c0_i32_0 = arith.constant 0 : i32
    %c0_i32_1 = arith.constant 0 : i32
    return %c0_i32, %c0_i32_0 : i32, i32
  }
  func.func @transform_6(%arg0: i32) -> (i32, i32) {
    %c0_i32 = arith.constant 0 : i32
    %c0_i32_0 = arith.constant 0 : i32
    %c0_i32_1 = arith.constant 0 : i32
    return %c0_i32, %c0_i32_0 : i32, i32
  }
  func.func @transform_7(%arg0: i32) -> (i32, i32) {
    %c0_i32 = arith.constant 0 : i32
    %c0_i32_0 = arith.constant 0 : i32
    return %arg0, %c0_i32 : i32, i32
  }
}

</mosaic_0001>

<llo_original>
// kernel: tpu_custom_call.1
$region0: #{tpu_custom_call.1}
  #allocation0 [shape = 'u32[]', space=smem, size = 0x4, offset = 0x4, fixed_abs, tag = 'smem constant byte address 0x4 - core index']
  #allocation1 [shape = 'u32[144,128]{1,0:T(1,128)}', space=vmem, size = 0x12000, scoped, tag = 'internal scratch']
  #allocation2 [shape = 'f32[1,1]{1,0:T(1,128)S(6)}', space=smem, size = 0x200, scoped, tag = 'scoped memory for tpu_custom_call.1']
  %s0 = inlined_call_operand.vmem [shape: f32[8,2], index: 0, kind: input, shape index: {}]
  %s1 = inlined_call_operand.hbm [shape: f32[2,1024], index: 1, kind: input, shape index: {}]
  %s2 = inlined_call_operand.hbm [shape: f32[1,1024], index: 2, kind: input, shape index: {}]
  %s3 = inlined_call_operand.hbm [shape: bf16[1024,1024], index: 3, kind: input, shape index: {}]
  %s4 = inlined_call_operand.hbm [shape: f32[1,1024], index: 4, kind: input, shape index: {}]
  %s5 = inlined_call_operand.hbm [shape: f32[1,1024], index: 5, kind: input, shape index: {}]
  %s6 = inlined_call_operand.<no memory space> [shape: f32[1,1], index: 6, kind: input, shape index: {}]
  %s7 = inlined_call_operand.vmem [shape: f32[8,1], index: 7, kind: output, shape index: {}]
  %s8 = sld [smem:[#allocation0]]
  $region58: #{tpu_custom_call.1} parent=0
    _
  %s10 = ssub.s32 1, %s8
  %s11 = scalar_select 0, %s10, %s8
  %12 = sst [smem:[#allocation2]] %s6
  $region1: #{tpu_custom_call.1} parent=0
    #allocation3 [shape = 'u8[8192]{0}', space=vmem, size = 0x2000, scoped, tag = 'input window, operand 1, single buffered']
    #allocation4 [shape = 's32[1]{0}', space=sflag, size = 0x4, scoped, tag = 'scoped memory for tpu_custom_call.1']
    #allocation5 [shape = 'u8[4096]{0}', space=vmem, size = 0x1000, scoped, tag = 'input window, operand 2, single buffered']
    #allocation6 [shape = 's32[1]{0}', space=sflag, size = 0x4, scoped, tag = 'scoped memory for tpu_custom_call.1']
    #allocation7 [shape = 'u8[2097152]{0}', space=vmem, size = 0x200000, scoped, tag = 'input window, operand 3, single buffered']
    #allocation8 [shape = 'u8[4096]{0}', space=vmem, size = 0x1000, scoped, tag = 'input window, operand 4, single buffered']
    #allocation9 [shape = 's32[1]{0}', space=sflag, size = 0x4, scoped, tag = 'scoped memory for tpu_custom_call.1']
    #allocation10 [shape = 'u8[4096]{0}', space=vmem, size = 0x1000, scoped, tag = 'input window, operand 5, single buffered']
    %13 = vsyncpa [#allocation4], 0
    %14 = vsyncpa [#allocation6], 0
    %15 = vsyncpa [#allocation9], 0
    // Predicated region
    $region2: #{tpu_custom_call.1} parent=1 // pred_check
      _
    $region3: #{tpu_custom_call.1} parent=1 // pred_check_branch
      %17 = sbr.rel (0) target = $region5
    $region4: #{tpu_custom_call.1} parent=1 // pred_region
      _
    $region5: #{tpu_custom_call.1} parent=1 // pred_fallthru
      _
    // Predicated region
    $region6: #{tpu_custom_call.1} parent=1 // pred_check
      _
    $region7: #{tpu_custom_call.1} parent=1 // pred_check_branch
      %19 = sbr.rel (0) target = $region9
    $region8: #{tpu_custom_call.1} parent=1 // pred_region
      %s21 = ssub.s32 256, 256
      %22 = vsyncadd [#allocation4], %s21
      %s24 = sshll.u32 [#allocation3], 4
      %s25 = int_to_ptr.vmem [resolvable:$true] %s24
      %27 = dma.hbm_to_vmem [thread:$0]  %s1, 256, %s25, [#allocation4]
    $region9: #{tpu_custom_call.1} parent=1 // pred_fallthru
      _
    // Predicated region
    $region10: #{tpu_custom_call.1} parent=1 // pred_check
      _
    $region11: #{tpu_custom_call.1} parent=1 // pred_check_branch
      %29 = sbr.rel (0) target = $region13
    $region12: #{tpu_custom_call.1} parent=1 // pred_region
      %s31 = ssub.s32 128, 128
      %32 = vsyncadd [#allocation6], %s31
      %s34 = sshll.u32 [#allocation5], 4
      %s35 = int_to_ptr.vmem [resolvable:$true] %s34
      %37 = dma.hbm_to_vmem [thread:$0]  %s2, 128, %s35, [#allocation6]
    $region13: #{tpu_custom_call.1} parent=1 // pred_fallthru
      _
    // Predicated region
    $region14: #{tpu_custom_call.1} parent=1 // pred_check
      _
    $region15: #{tpu_custom_call.1} parent=1 // pred_check_branch
      %39 = sbr.rel (0) target = $region17
    $region16: #{tpu_custom_call.1} parent=1 // pred_region
      %s41 = ssub.s32 65536, 65536
      %42 = vsyncadd [#allocation6], %s41
      %s43 = sshll.u32 [#allocation7], 4
      %s44 = int_to_ptr.vmem [resolvable:$true] %s43
      %49 = dma.hbm_to_vmem [thread:$0]  %s3, 65536, %s44, [#allocation6], 512, 512, 32
    $region17: #{tpu_custom_call.1} parent=1 // pred_fallthru
      _
    // Predicated region
    $region18: #{tpu_custom_call.1} parent=1 // pred_check
      _
    $region19: #{tpu_custom_call.1} parent=1 // pred_check_branch
      %51 = sbr.rel (0) target = $region21
    $region20: #{tpu_custom_call.1} parent=1 // pred_region
      %s53 = ssub.s32 128, 128
      %54 = vsyncadd [#allocation9], %s53
      %s56 = sshll.u32 [#allocation8], 4
      %s57 = int_to_ptr.vmem [resolvable:$true] %s56
      %59 = dma.hbm_to_vmem [thread:$0]  %s4, 128, %s57, [#allocation9]
    $region21: #{tpu_custom_call.1} parent=1 // pred_fallthru
      _
    // Predicated region
    $region22: #{tpu_custom_call.1} parent=1 // pred_check
      _
    $region23: #{tpu_custom_call.1} parent=1 // pred_check_branch
      %61 = sbr.rel (0) target = $region25
    $region24: #{tpu_custom_call.1} parent=1 // pred_region
      %s63 = ssub.s32 128, 128
      %64 = vsyncadd [#allocation9], %s63
      %s66 = sshll.u32 [#allocation10], 4
      %s67 = int_to_ptr.vmem [resolvable:$true] %s66
      %69 = dma.hbm_to_vmem [thread:$0]  %s5, 128, %s67, [#allocation9]
    $region25: #{tpu_custom_call.1} parent=1 // pred_fallthru
      _
    // Predicated region
    $region26: #{tpu_custom_call.1} parent=1 // pred_check
      _
    $region27: #{tpu_custom_call.1} parent=1 // pred_check_branch
      %71 = sbr.rel (0) target = $region29
    $region28: #{tpu_custom_call.1} parent=1 // pred_region
      _
    $region29: #{tpu_custom_call.1} parent=1 // pred_fallthru
      _
    // Predicated region
    $region30: #{tpu_custom_call.1} parent=1 // pred_check
      _
    $region31: #{tpu_custom_call.1} parent=1 // pred_check_branch
      %73 = sbr.rel (0) target = $region33
    $region32: #{tpu_custom_call.1} parent=1 // pred_region
      %74 = dma.done [#allocation4], 256
    $region33: #{tpu_custom_call.1} parent=1 // pred_fallthru
      _
    // Predicated region
    $region34: #{tpu_custom_call.1} parent=1 // pred_check
      _
    $region35: #{tpu_custom_call.1} parent=1 // pred_check_branch
      %76 = sbr.rel (0) target = $region37
    $region36: #{tpu_custom_call.1} parent=1 // pred_region
      %77 = dma.done [#allocation6], 128
    $region37: #{tpu_custom_call.1} parent=1 // pred_fallthru
      _
    // Predicated region
    $region38: #{tpu_custom_call.1} parent=1 // pred_check
      _
    $region39: #{tpu_custom_call.1} parent=1 // pred_check_branch
      %79 = sbr.rel (0) target = $region41
    $region40: #{tpu_custom_call.1} parent=1 // pred_region
      %80 = dma.done [#allocation6], 65536
    $region41: #{tpu_custom_call.1} parent=1 // pred_fallthru
      _
    // Predicated region
    $region42: #{tpu_custom_call.1} parent=1 // pred_check
      _
    $region43: #{tpu_custom_call.1} parent=1 // pred_check_branch
      %82 = sbr.rel (0) target = $region45
    $region44: #{tpu_custom_call.1} parent=1 // pred_region
      %83 = dma.done [#allocation9], 128
    $region45: #{tpu_custom_call.1} parent=1 // pred_fallthru
      _
    // Predicated region
    $region46: #{tpu_custom_call.1} parent=1 // pred_check
      _
    $region47: #{tpu_custom_call.1} parent=1 // pred_check_branch
      %85 = sbr.rel (0) target = $region49
    $region48: #{tpu_custom_call.1} parent=1 // pred_region
      %86 = dma.done [#allocation9], 128
    $region49: #{tpu_custom_call.1} parent=1 // pred_fallthru
      _
    %v87 = vld [vmem:[%s0] sm:$0xff]
    %v88 = vld [vmem:[#allocation3] sm:$0xff]
    %v89 = vld [vmem:[#allocation3 + $0x8] sm:$0xff]
    %91 = vset.pattern.permute.xlu0 0
    %92 = vperm.xlu0 %91, %v87
    %v93 = vpop.permute.xlu0 %92
    %v97 = vlaneseq
    %v98 = vshrl.u32 %v97, 7
    %v99 = vsub.s32 0, %v98
    %v100 = vrot.slane %v88, %v99
    %v101 = vlaneseq
    %v102 = vshrl.u32 %v101, 7
    %v103 = vsub.s32 2, %v102
    %v104 = vrot.slane %v88, %v103
    %v105 = vlaneseq
    %v106 = vshrl.u32 %v105, 7
    %v107 = vsub.s32 4, %v106
    %v108 = vrot.slane %v88, %v107
    %v109 = vlaneseq
    %v110 = vshrl.u32 %v109, 7
    %v111 = vsub.s32 6, %v110
    %v112 = vrot.slane %v88, %v111
    %v113 = vlaneseq
    %v114 = vshrl.u32 %v113, 7
    %v115 = vsub.s32 0, %v114
    %v116 = vrot.slane %v89, %v115
    %v117 = vlaneseq
    %v118 = vshrl.u32 %v117, 7
    %v119 = vsub.s32 2, %v118
    %v120 = vrot.slane %v89, %v119
    %v121 = vlaneseq
    %v122 = vshrl.u32 %v121, 7
    %v123 = vsub.s32 4, %v122
    %v124 = vrot.slane %v89, %v123
    %v125 = vlaneseq
    %v126 = vshrl.u32 %v125, 7
    %v127 = vsub.s32 6, %v126
    %v128 = vrot.slane %v89, %v127
    %v137 = vlaneseq
    %v138 = vshrl.u32 %v137, 7
    %v139 = vsub.s32 0, %v138
    %v140 = vrot.slane %v100, %v139
    %v141 = vlaneseq
    %v142 = vshrl.u32 %v141, 7
    %v143 = vsub.s32 0, %v142
    %v144 = vrot.slane %v104, %v143
    %v145 = vlaneseq
    %v146 = vshrl.u32 %v145, 7
    %v147 = vsub.s32 0, %v146
    %v148 = vrot.slane %v108, %v147
    %v149 = vlaneseq
    %v150 = vshrl.u32 %v149, 7
    %v151 = vsub.s32 0, %v150
    %v152 = vrot.slane %v112, %v151
    %v153 = vlaneseq
    %v154 = vshrl.u32 %v153, 7
    %v155 = vsub.s32 0, %v154
    %v156 = vrot.slane %v116, %v155
    %v157 = vlaneseq
    %v158 = vshrl.u32 %v157, 7
    %v159 = vsub.s32 0, %v158
    %v160 = vrot.slane %v120, %v159
    %v161 = vlaneseq
    %v162 = vshrl.u32 %v161, 7
    %v163 = vsub.s32 0, %v162
    %v164 = vrot.slane %v124, %v163
    %v165 = vlaneseq
    %v166 = vshrl.u32 %v165, 7
    %v167 = vsub.s32 0, %v166
    %v168 = vrot.slane %v128, %v167
    %v169 = vmul.f32 %v93, %v140
    %v170 = vmul.f32 %v93, %v144
    %v171 = vmul.f32 %v93, %v148
    %v172 = vmul.f32 %v93, %v152
    %v173 = vmul.f32 %v93, %v156
    %v174 = vmul.f32 %v93, %v160
    %v175 = vmul.f32 %v93, %v164
    %v176 = vmul.f32 %v93, %v168
    %177 = vset.pattern.permute.xlu0 1
    %178 = vperm.xlu0 %177, %v87
    %v179 = vpop.permute.xlu0 %178
    %v181 = vlaneseq
    %v182 = vshrl.u32 %v181, 7
    %v183 = vsub.s32 1, %v182
    %v184 = vrot.slane %v88, %v183
    %v185 = vlaneseq
    %v186 = vshrl.u32 %v185, 7
    %v187 = vsub.s32 3, %v186
    %v188 = vrot.slane %v88, %v187
    %v189 = vlaneseq
    %v190 = vshrl.u32 %v189, 7
    %v191 = vsub.s32 5, %v190
    %v192 = vrot.slane %v88, %v191
    %v193 = vlaneseq
    %v194 = vshrl.u32 %v193, 7
    %v195 = vsub.s32 7, %v194
    %v196 = vrot.slane %v88, %v195
    %v197 = vlaneseq
    %v198 = vshrl.u32 %v197, 7
    %v199 = vsub.s32 1, %v198
    %v200 = vrot.slane %v89, %v199
    %v201 = vlaneseq
    %v202 = vshrl.u32 %v201, 7
    %v203 = vsub.s32 3, %v202
    %v204 = vrot.slane %v89, %v203
    %v205 = vlaneseq
    %v206 = vshrl.u32 %v205, 7
    %v207 = vsub.s32 5, %v206
    %v208 = vrot.slane %v89, %v207
    %v209 = vlaneseq
    %v210 = vshrl.u32 %v209, 7
    %v211 = vsub.s32 7, %v210
    %v212 = vrot.slane %v89, %v211
    %v221 = vlaneseq
    %v222 = vshrl.u32 %v221, 7
    %v223 = vsub.s32 1, %v222
    %v224 = vrot.slane %v184, %v223
    %v225 = vlaneseq
    %v226 = vshrl.u32 %v225, 7
    %v227 = vsub.s32 1, %v226
    %v228 = vrot.slane %v188, %v227
    %v229 = vlaneseq
    %v230 = vshrl.u32 %v229, 7
    %v231 = vsub.s32 1, %v230
    %v232 = vrot.slane %v192, %v231
    %v233 = vlaneseq
    %v234 = vshrl.u32 %v233, 7
    %v235 = vsub.s32 1, %v234
    %v236 = vrot.slane %v196, %v235
    %v237 = vlaneseq
    %v238 = vshrl.u32 %v237, 7
    %v239 = vsub.s32 1, %v238
    %v240 = vrot.slane %v200, %v239
    %v241 = vlaneseq
    %v242 = vshrl.u32 %v241, 7
    %v243 = vsub.s32 1, %v242
    %v244 = vrot.slane %v204, %v243
    %v245 = vlaneseq
    %v246 = vshrl.u32 %v245, 7
    %v247 = vsub.s32 1, %v246
    %v248 = vrot.slane %v208, %v247
    %v249 = vlaneseq
    %v250 = vshrl.u32 %v249, 7
    %v251 = vsub.s32 1, %v250
    %v252 = vrot.slane %v212, %v251
    %v253 = vmul.f32 %v179, %v224
    %v254 = vmul.f32 %v179, %v228
    %v255 = vmul.f32 %v179, %v232
    %v256 = vmul.f32 %v179, %v236
    %v257 = vmul.f32 %v179, %v240
    %v258 = vmul.f32 %v179, %v244
    %v259 = vmul.f32 %v179, %v248
    %v260 = vmul.f32 %v179, %v252
    %v261 = vadd.f32 %v169, %v253
    %v262 = vadd.f32 %v170, %v254
    %v263 = vadd.f32 %v171, %v255
    %v264 = vadd.f32 %v172, %v256
    %v265 = vadd.f32 %v173, %v257
    %v266 = vadd.f32 %v174, %v258
    %v267 = vadd.f32 %v175, %v259
    %v268 = vadd.f32 %v176, %v260
    %v269 = vld [vmem:[#allocation5] sm:$0xff]
    %v271 = vlaneseq
    %v272 = vshrl.u32 %v271, 7
    %v273 = vsub.s32 0, %v272
    %v274 = vrot.slane %v269, %v273
    %v275 = vlaneseq
    %v276 = vshrl.u32 %v275, 7
    %v277 = vsub.s32 1, %v276
    %v278 = vrot.slane %v269, %v277
    %v279 = vlaneseq
    %v280 = vshrl.u32 %v279, 7
    %v281 = vsub.s32 2, %v280
    %v282 = vrot.slane %v269, %v281
    %v283 = vlaneseq
    %v284 = vshrl.u32 %v283, 7
    %v285 = vsub.s32 3, %v284
    %v286 = vrot.slane %v269, %v285
    %v287 = vlaneseq
    %v288 = vshrl.u32 %v287, 7
    %v289 = vsub.s32 4, %v288
    %v290 = vrot.slane %v269, %v289
    %v291 = vlaneseq
    %v292 = vshrl.u32 %v291, 7
    %v293 = vsub.s32 5, %v292
    %v294 = vrot.slane %v269, %v293
    %v295 = vlaneseq
    %v296 = vshrl.u32 %v295, 7
    %v297 = vsub.s32 6, %v296
    %v298 = vrot.slane %v269, %v297
    %v299 = vlaneseq
    %v300 = vshrl.u32 %v299, 7
    %v301 = vsub.s32 7, %v300
    %v302 = vrot.slane %v269, %v301
    %v311 = vadd.f32 %v261, %v274
    %v312 = vadd.f32 %v262, %v278
    %v313 = vadd.f32 %v263, %v282
    %v314 = vadd.f32 %v264, %v286
    %v315 = vadd.f32 %v265, %v290
    %v316 = vadd.f32 %v266, %v294
    %v317 = vadd.f32 %v267, %v298
    %v318 = vadd.f32 %v268, %v302
    %v319 = vmax.f32 %v311, 0.0
    %v320 = vmax.f32 %v312, 0.0
    %v321 = vmax.f32 %v313, 0.0
    %v322 = vmax.f32 %v314, 0.0
    %v323 = vmax.f32 %v315, 0.0
    %v324 = vmax.f32 %v316, 0.0
    %v325 = vmax.f32 %v317, 0.0
    %v326 = vmax.f32 %v318, 0.0
    %v327 = vpack.c.bf16 %v319, %v319
    %v328 = vpack.c.bf16 %v320, %v320
    %v329 = vpack.c.bf16 %v321, %v321
    %v330 = vpack.c.bf16 %v322, %v322
    %v331 = vpack.c.bf16 %v323, %v323
    %v332 = vpack.c.bf16 %v324, %v324
    %v333 = vpack.c.bf16 %v325, %v325
    %v334 = vpack.c.bf16 %v326, %v326
    %v335 = vld [vmem:[#allocation7] sm:$0xff]
    %v336 = vld [vmem:[#allocation7 + $0x8] sm:$0xff]
    %v337 = vld [vmem:[#allocation7 + $0x10] sm:$0xff]
    %v338 = vld [vmem:[#allocation7 + $0x18] sm:$0xff]
    %v339 = vld [vmem:[#allocation7 + $0x20] sm:$0xff]
    %v340 = vld [vmem:[#allocation7 + $0x28] sm:$0xff]
    %v341 = vld [vmem:[#allocation7 + $0x30] sm:$0xff]
    %v342 = vld [vmem:[#allocation7 + $0x38] sm:$0xff]
    %v343 = vld [vmem:[#allocation7 + $0x40] sm:$0xff]
    %v344 = vld [vmem:[#allocation7 + $0x48] sm:$0xff]
    %v345 = vld [vmem:[#allocation7 + $0x50] sm:$0xff]
    %v346 = vld [vmem:[#allocation7 + $0x58] sm:$0xff]
    %v347 = vld [vmem:[#allocation7 + $0x60] sm:$0xff]
    %v348 = vld [vmem:[#allocation7 + $0x68] sm:$0xff]
    %v349 = vld [vmem:[#allocation7 + $0x70] sm:$0xff]
    %v350 = vld [vmem:[#allocation7 + $0x78] sm:$0xff]
    %v351 = vld [vmem:[#allocation7 + $0x80] sm:$0xff]
    %v352 = vld [vmem:[#allocation7 + $0x88] sm:$0xff]
    %v353 = vld [vmem:[#allocation7 + $0x90] sm:$0xff]
    %v354 = vld [vmem:[#allocation7 + $0x98] sm:$0xff]
    %v355 = vld [vmem:[#allocation7 + $0xa0] sm:$0xff]
    %v356 = vld [vmem:[#allocation7 + $0xa8] sm:$0xff]
    %v357 = vld [vmem:[#allocation7 + $0xb0] sm:$0xff]
    %v358 = vld [vmem:[#allocation7 + $0xb8] sm:$0xff]
    %v359 = vld [vmem:[#allocation7 + $0xc0] sm:$0xff]
    %v360 = vld [vmem:[#allocation7 + $0xc8] sm:$0xff]
    %v361 = vld [vmem:[#allocation7 + $0xd0] sm:$0xff]
    %v362 = vld [vmem:[#allocation7 + $0xd8] sm:$0xff]
    %v363 = vld [vmem:[#allocation7 + $0xe0] sm:$0xff]
    %v364 = vld [vmem:[#allocation7 + $0xe8] sm:$0xff]
    %v365 = vld [vmem:[#allocation7 + $0xf0] sm:$0xff]
    %v366 = vld [vmem:[#allocation7 + $0xf8] sm:$0xff]
    %v367 = vld [vmem:[#allocation7 + $0x100] sm:$0xff]
    %v368 = vld [vmem:[#allocation7 + $0x108] sm:$0xff]
    %v369 = vld [vmem:[#allocation7 + $0x110] sm:$0xff]
    %v370 = vld [vmem:[#allocation7 + $0x118] sm:$0xff]
    %v371 = vld [vmem:[#allocation7 + $0x120] sm:$0xff]
    %v372 = vld [vmem:[#allocation7 + $0x128] sm:$0xff]
    %v373 = vld [vmem:[#allocation7 + $0x130] sm:$0xff]
    %v374 = vld [vmem:[#allocation7 + $0x138] sm:$0xff]
    %v375 = vld [vmem:[#allocation7 + $0x140] sm:$0xff]
    %v376 = vld [vmem:[#allocation7 + $0x148] sm:$0xff]
    %v377 = vld [vmem:[#allocation7 + $0x150] sm:$0xff]
    %v378 = vld [vmem:[#allocation7 + $0x158] sm:$0xff]
    %v379 = vld [vmem:[#allocation7 + $0x160] sm:$0xff]
    %v380 = vld [vmem:[#allocation7 + $0x168] sm:$0xff]
    %v381 = vld [vmem:[#allocation7 + $0x170] sm:$0xff]
    %v382 = vld [vmem:[#allocation7 + $0x178] sm:$0xff]
    %v383 = vld [vmem:[#allocation7 + $0x180] sm:$0xff]
    %v384 = vld [vmem:[#allocation7 + $0x188] sm:$0xff]
    %v385 = vld [vmem:[#allocation7 + $0x190] sm:$0xff]
    %v386 = vld [vmem:[#allocation7 + $0x198] sm:$0xff]
    %v387 = vld [vmem:[#allocation7 + $0x1a0] sm:$0xff]
    %v388 = vld [vmem:[#allocation7 + $0x1a8] sm:$0xff]
    %v389 = vld [vmem:[#allocation7 + $0x1b0] sm:$0xff]
    %v390 = vld [vmem:[#allocation7 + $0x1b8] sm:$0xff]
    %v391 = vld [vmem:[#allocation7 + $0x1c0] sm:$0xff]
    %v392 = vld [vmem:[#allocation7 + $0x1c8] sm:$0xff]
    %v393 = vld [vmem:[#allocation7 + $0x1d0] sm:$0xff]
    %v394 = vld [vmem:[#allocation7 + $0x1d8] sm:$0xff]
    %v395 = vld [vmem:[#allocation7 + $0x1e0] sm:$0xff]
    %v396 = vld [vmem:[#allocation7 + $0x1e8] sm:$0xff]
    %v397 = vld [vmem:[#allocation7 + $0x1f0] sm:$0xff]
    %v398 = vld [vmem:[#allocation7 + $0x1f8] sm:$0xff]
    %v399 = vld [vmem:[#allocation7 + $0x200] sm:$0xff]
    %v400 = vld [vmem:[#allocation7 + $0x208] sm:$0xff]
    %v401 = vld [vmem:[#allocation7 + $0x210] sm:$0xff]
    %v402 = vld [vmem:[#allocation7 + $0x218] sm:$0xff]
    %v403 = vld [vmem:[#allocation7 + $0x220] sm:$0xff]
    %v404 = vld [vmem:[#allocation7 + $0x228] sm:$0xff]
    %v405 = vld [vmem:[#allocation7 + $0x230] sm:$0xff]
    %v406 = vld [vmem:[#allocation7 + $0x238] sm:$0xff]
    %v407 = vld [vmem:[#allocation7 + $0x240] sm:$0xff]
    %v408 = vld [vmem:[#allocation7 + $0x248] sm:$0xff]
    %v409 = vld [vmem:[#allocation7 + $0x250] sm:$0xff]
    %v410 = vld [vmem:[#allocation7 + $0x258] sm:$0xff]
    %v411 = vld [vmem:[#allocation7 + $0x260] sm:$0xff]
    %v412 = vld [vmem:[#allocation7 + $0x268] sm:$0xff]
    %v413 = vld [vmem:[#allocation7 + $0x270] sm:$0xff]
    %v414 = vld [vmem:[#allocation7 + $0x278] sm:$0xff]
    %v415 = vld [vmem:[#allocation7 + $0x280] sm:$0xff]
    %v416 = vld [vmem:[#allocation7 + $0x288] sm:$0xff]
    %v417 = vld [vmem:[#allocation7 + $0x290] sm:$0xff]
    %v418 = vld [vmem:[#allocation7 + $0x298] sm:$0xff]
    %v419 = vld [vmem:[#allocation7 + $0x2a0] sm:$0xff]
    %v420 = vld [vmem:[#allocation7 + $0x2a8] sm:$0xff]
    %v421 = vld [vmem:[#allocation7 + $0x2b0] sm:$0xff]
    %v422 = vld [vmem:[#allocation7 + $0x2b8] sm:$0xff]
    %v423 = vld [vmem:[#allocation7 + $0x2c0] sm:$0xff]
    %v424 = vld [vmem:[#allocation7 + $0x2c8] sm:$0xff]
    %v425 = vld [vmem:[#allocation7 + $0x2d0] sm:$0xff]
    %v426 = vld [vmem:[#allocation7 + $0x2d8] sm:$0xff]
    %v427 = vld [vmem:[#allocation7 + $0x2e0] sm:$0xff]
    %v428 = vld [vmem:[#allocation7 + $0x2e8] sm:$0xff]
    %v429 = vld [vmem:[#allocation7 + $0x2f0] sm:$0xff]
    %v430 = vld [vmem:[#allocation7 + $0x2f8] sm:$0xff]
    %v431 = vld [vmem:[#allocation7 + $0x300] sm:$0xff]
    %v432 = vld [vmem:[#allocation7 + $0x308] sm:$0xff]
    %v433 = vld [vmem:[#allocation7 + $0x310] sm:$0xff]
    %v434 = vld [vmem:[#allocation7 + $0x318] sm:$0xff]
    %v435 = vld [vmem:[#allocation7 + $0x320] sm:$0xff]
    %v436 = vld [vmem:[#allocation7 + $0x328] sm:$0xff]
    %v437 = vld [vmem:[#allocation7 + $0x330] sm:$0xff]
    %v438 = vld [vmem:[#allocation7 + $0x338] sm:$0xff]
    %v439 = vld [vmem:[#allocation7 + $0x340] sm:$0xff]
    %v440 = vld [vmem:[#allocation7 + $0x348] sm:$0xff]
    %v441 = vld [vmem:[#allocation7 + $0x350] sm:$0xff]
    %v442 = vld [vmem:[#allocation7 + $0x358] sm:$0xff]
    %v443 = vld [vmem:[#allocation7 + $0x360] sm:$0xff]
    %v444 = vld [vmem:[#allocation7 + $0x368] sm:$0xff]
    %v445 = vld [vmem:[#allocation7 + $0x370] sm:$0xff]
    %v446 = vld [vmem:[#allocation7 + $0x378] sm:$0xff]
    %v447 = vld [vmem:[#allocation7 + $0x380] sm:$0xff]
    %v448 = vld [vmem:[#allocation7 + $0x388] sm:$0xff]
    %v449 = vld [vmem:[#allocation7 + $0x390] sm:$0xff]
    %v450 = vld [vmem:[#allocation7 + $0x398] sm:$0xff]
    %v451 = vld [vmem:[#allocation7 + $0x3a0] sm:$0xff]
    %v452 = vld [vmem:[#allocation7 + $0x3a8] sm:$0xff]
    %v453 = vld [vmem:[#allocation7 + $0x3b0] sm:$0xff]
    %v454 = vld [vmem:[#allocation7 + $0x3b8] sm:$0xff]
    %v455 = vld [vmem:[#allocation7 + $0x3c0] sm:$0xff]
    %v456 = vld [vmem:[#allocation7 + $0x3c8] sm:$0xff]
    %v457 = vld [vmem:[#allocation7 + $0x3d0] sm:$0xff]
    %v458 = vld [vmem:[#allocation7 + $0x3d8] sm:$0xff]
    %v459 = vld [vmem:[#allocation7 + $0x3e0] sm:$0xff]
    %v460 = vld [vmem:[#allocation7 + $0x3e8] sm:$0xff]
    %v461 = vld [vmem:[#allocation7 + $0x3f0] sm:$0xff]
    %v462 = vld [vmem:[#allocation7 + $0x3f8] sm:$0xff]
    %v463 = vld [vmem:[#allocation7 + $0x400] sm:$0xff]
    %v464 = vld [vmem:[#allocation7 + $0x408] sm:$0xff]
    %v465 = vld [vmem:[#allocation7 + $0x410] sm:$0xff]
    %v466 = vld [vmem:[#allocation7 + $0x418] sm:$0xff]
    %v467 = vld [vmem:[#allocation7 + $0x420] sm:$0xff]
    %v468 = vld [vmem:[#allocation7 + $0x428] sm:$0xff]
    %v469 = vld [vmem:[#allocation7 + $0x430] sm:$0xff]
    %v470 = vld [vmem:[#allocation7 + $0x438] sm:$0xff]
    %v471 = vld [vmem:[#allocation7 + $0x440] sm:$0xff]
    %v472 = vld [vmem:[#allocation7 + $0x448] sm:$0xff]
    %v473 = vld [vmem:[#allocation7 + $0x450] sm:$0xff]
    %v474 = vld [vmem:[#allocation7 + $0x458] sm:$0xff]
    %v475 = vld [vmem:[#allocation7 + $0x460] sm:$0xff]
    %v476 = vld [vmem:[#allocation7 + $0x468] sm:$0xff]
    %v477 = vld [vmem:[#allocation7 + $0x470] sm:$0xff]
    %v478 = vld [vmem:[#allocation7 + $0x478] sm:$0xff]
    %v479 = vld [vmem:[#allocation7 + $0x480] sm:$0xff]
    %v480 = vld [vmem:[#allocation7 + $0x488] sm:$0xff]
    %v481 = vld [vmem:[#allocation7 + $0x490] sm:$0xff]
    %v482 = vld [vmem:[#allocation7 + $0x498] sm:$0xff]
    %v483 = vld [vmem:[#allocation7 + $0x4a0] sm:$0xff]
    %v484 = vld [vmem:[#allocation7 + $0x4a8] sm:$0xff]
    %v485 = vld [vmem:[#allocation7 + $0x4b0] sm:$0xff]
    %v486 = vld [vmem:[#allocation7 + $0x4b8] sm:$0xff]
    %v487 = vld [vmem:[#allocation7 + $0x4c0] sm:$0xff]
    %v488 = vld [vmem:[#allocation7 + $0x4c8] sm:$0xff]
    %v489 = vld [vmem:[#allocation7 + $0x4d0] sm:$0xff]
    %v490 = vld [vmem:[#allocation7 + $0x4d8] sm:$0xff]
    %v491 = vld [vmem:[#allocation7 + $0x4e0] sm:$0xff]
    %v492 = vld [vmem:[#allocation7 + $0x4e8] sm:$0xff]
    %v493 = vld [vmem:[#allocation7 + $0x4f0] sm:$0xff]
    %v494 = vld [vmem:[#allocation7 + $0x4f8] sm:$0xff]
    %v495 = vld [vmem:[#allocation7 + $0x500] sm:$0xff]
    %v496 = vld [vmem:[#allocation7 + $0x508] sm:$0xff]
    %v497 = vld [vmem:[#allocation7 + $0x510] sm:$0xff]
    %v498 = vld [vmem:[#allocation7 + $0x518] sm:$0xff]
    %v499 = vld [vmem:[#allocation7 + $0x520] sm:$0xff]
    %v500 = vld [vmem:[#allocation7 + $0x528] sm:$0xff]
    %v501 = vld [vmem:[#allocation7 + $0x530] sm:$0xff]
    %v502 = vld [vmem:[#allocation7 + $0x538] sm:$0xff]
    %v503 = vld [vmem:[#allocation7 + $0x540] sm:$0xff]
    %v504 = vld [vmem:[#allocation7 + $0x548] sm:$0xff]
    %v505 = vld [vmem:[#allocation7 + $0x550] sm:$0xff]
    %v506 = vld [vmem:[#allocation7 + $0x558] sm:$0xff]
    %v507 = vld [vmem:[#allocation7 + $0x560] sm:$0xff]
    %v508 = vld [vmem:[#allocation7 + $0x568] sm:$0xff]
    %v509 = vld [vmem:[#allocation7 + $0x570] sm:$0xff]
    %v510 = vld [vmem:[#allocation7 + $0x578] sm:$0xff]
    %v511 = vld [vmem:[#allocation7 + $0x580] sm:$0xff]
    %v512 = vld [vmem:[#allocation7 + $0x588] sm:$0xff]
    %v513 = vld [vmem:[#allocation7 + $0x590] sm:$0xff]
    %v514 = vld [vmem:[#allocation7 + $0x598] sm:$0xff]
    %v515 = vld [vmem:[#allocation7 + $0x5a0] sm:$0xff]
    %v516 = vld [vmem:[#allocation7 + $0x5a8] sm:$0xff]
    %v517 = vld [vmem:[#allocation7 + $0x5b0] sm:$0xff]
    %v518 = vld [vmem:[#allocation7 + $0x5b8] sm:$0xff]
    %v519 = vld [vmem:[#allocation7 + $0x5c0] sm:$0xff]
    %v520 = vld [vmem:[#allocation7 + $0x5c8] sm:$0xff]
    %v521 = vld [vmem:[#allocation7 + $0x5d0] sm:$0xff]
    %v522 = vld [vmem:[#allocation7 + $0x5d8] sm:$0xff]
    %v523 = vld [vmem:[#allocation7 + $0x5e0] sm:$0xff]
    %v524 = vld [vmem:[#allocation7 + $0x5e8] sm:$0xff]
    %v525 = vld [vmem:[#allocation7 + $0x5f0] sm:$0xff]
    %v526 = vld [vmem:[#allocation7 + $0x5f8] sm:$0xff]
    %v527 = vld [vmem:[#allocation7 + $0x600] sm:$0xff]
    %v528 = vld [vmem:[#allocation7 + $0x608] sm:$0xff]
    %v529 = vld [vmem:[#allocation7 + $0x610] sm:$0xff]
    %v530 = vld [vmem:[#allocation7 + $0x618] sm:$0xff]
    %v531 = vld [vmem:[#allocation7 + $0x620] sm:$0xff]
    %v532 = vld [vmem:[#allocation7 + $0x628] sm:$0xff]
    %v533 = vld [vmem:[#allocation7 + $0x630] sm:$0xff]
    %v534 = vld [vmem:[#allocation7 + $0x638] sm:$0xff]
    %v535 = vld [vmem:[#allocation7 + $0x640] sm:$0xff]
    %v536 = vld [vmem:[#allocation7 + $0x648] sm:$0xff]
    %v537 = vld [vmem:[#allocation7 + $0x650] sm:$0xff]
    %v538 = vld [vmem:[#allocation7 + $0x658] sm:$0xff]
    %v539 = vld [vmem:[#allocation7 + $0x660] sm:$0xff]
    %v540 = vld [vmem:[#allocation7 + $0x668] sm:$0xff]
    %v541 = vld [vmem:[#allocation7 + $0x670] sm:$0xff]
    %v542 = vld [vmem:[#allocation7 + $0x678] sm:$0xff]
    %v543 = vld [vmem:[#allocation7 + $0x680] sm:$0xff]
    %v544 = vld [vmem:[#allocation7 + $0x688] sm:$0xff]
    %v545 = vld [vmem:[#allocation7 + $0x690] sm:$0xff]
    %v546 = vld [vmem:[#allocation7 + $0x698] sm:$0xff]
    %v547 = vld [vmem:[#allocation7 + $0x6a0] sm:$0xff]
    %v548 = vld [vmem:[#allocation7 + $0x6a8] sm:$0xff]
    %v549 = vld [vmem:[#allocation7 + $0x6b0] sm:$0xff]
    %v550 = vld [vmem:[#allocation7 + $0x6b8] sm:$0xff]
    %v551 = vld [vmem:[#allocation7 + $0x6c0] sm:$0xff]
    %v552 = vld [vmem:[#allocation7 + $0x6c8] sm:$0xff]
    %v553 = vld [vmem:[#allocation7 + $0x6d0] sm:$0xff]
    %v554 = vld [vmem:[#allocation7 + $0x6d8] sm:$0xff]
    %v555 = vld [vmem:[#allocation7 + $0x6e0] sm:$0xff]
    %v556 = vld [vmem:[#allocation7 + $0x6e8] sm:$0xff]
    %v557 = vld [vmem:[#allocation7 + $0x6f0] sm:$0xff]
    %v558 = vld [vmem:[#allocation7 + $0x6f8] sm:$0xff]
    %v559 = vld [vmem:[#allocation7 + $0x700] sm:$0xff]
    %v560 = vld [vmem:[#allocation7 + $0x708] sm:$0xff]
    %v561 = vld [vmem:[#allocation7 + $0x710] sm:$0xff]
    %v562 = vld [vmem:[#allocation7 + $0x718] sm:$0xff]
    %v563 = vld [vmem:[#allocation7 + $0x720] sm:$0xff]
    %v564 = vld [vmem:[#allocation7 + $0x728] sm:$0xff]
    %v565 = vld [vmem:[#allocation7 + $0x730] sm:$0xff]
    %v566 = vld [vmem:[#allocation7 + $0x738] sm:$0xff]
    %v567 = vld [vmem:[#allocation7 + $0x740] sm:$0xff]
    %v568 = vld [vmem:[#allocation7 + $0x748] sm:$0xff]
    %v569 = vld [vmem:[#allocation7 + $0x750] sm:$0xff]
    %v570 = vld [vmem:[#allocation7 + $0x758] sm:$0xff]
    %v571 = vld [vmem:[#allocation7 + $0x760] sm:$0xff]
    %v572 = vld [vmem:[#allocation7 + $0x768] sm:$0xff]
    %v573 = vld [vmem:[#allocation7 + $0x770] sm:$0xff]
    %v574 = vld [vmem:[#allocation7 + $0x778] sm:$0xff]
    %v575 = vld [vmem:[#allocation7 + $0x780] sm:$0xff]
    %v576 = vld [vmem:[#allocation7 + $0x788] sm:$0xff]
    %v577 = vld [vmem:[#allocation7 + $0x790] sm:$0xff]
    %v578 = vld [vmem:[#allocation7 + $0x798] sm:$0xff]
    %v579 = vld [vmem:[#allocation7 + $0x7a0] sm:$0xff]
    %v580 = vld [vmem:[#allocation7 + $0x7a8] sm:$0xff]
    %v581 = vld [vmem:[#allocation7 + $0x7b0] sm:$0xff]
    %v582 = vld [vmem:[#allocation7 + $0x7b8] sm:$0xff]
    %v583 = vld [vmem:[#allocation7 + $0x7c0] sm:$0xff]
    %v584 = vld [vmem:[#allocation7 + $0x7c8] sm:$0xff]
    %v585 = vld [vmem:[#allocation7 + $0x7d0] sm:$0xff]
    %v586 = vld [vmem:[#allocation7 + $0x7d8] sm:$0xff]
    %v587 = vld [vmem:[#allocation7 + $0x7e0] sm:$0xff]
    %v588 = vld [vmem:[#allocation7 + $0x7e8] sm:$0xff]
    %v589 = vld [vmem:[#allocation7 + $0x7f0] sm:$0xff]
    %v590 = vld [vmem:[#allocation7 + $0x7f8] sm:$0xff]
    %v591 = vld [vmem:[#allocation7 + $0x800] sm:$0xff]
    %v592 = vld [vmem:[#allocation7 + $0x808] sm:$0xff]
    %v593 = vld [vmem:[#allocation7 + $0x810] sm:$0xff]
    %v594 = vld [vmem:[#allocation7 + $0x818] sm:$0xff]
    %v595 = vld [vmem:[#allocation7 + $0x820] sm:$0xff]
    %v596 = vld [vmem:[#allocation7 + $0x828] sm:$0xff]
    %v597 = vld [vmem:[#allocation7 + $0x830] sm:$0xff]
    %v598 = vld [vmem:[#allocation7 + $0x838] sm:$0xff]
    %v599 = vld [vmem:[#allocation7 + $0x840] sm:$0xff]
    %v600 = vld [vmem:[#allocation7 + $0x848] sm:$0xff]
    %v601 = vld [vmem:[#allocation7 + $0x850] sm:$0xff]
    %v602 = vld [vmem:[#allocation7 + $0x858] sm:$0xff]
    %v603 = vld [vmem:[#allocation7 + $0x860] sm:$0xff]
    %v604 = vld [vmem:[#allocation7 + $0x868] sm:$0xff]
    %v605 = vld [vmem:[#allocation7 + $0x870] sm:$0xff]
    %v606 = vld [vmem:[#allocation7 + $0x878] sm:$0xff]
    %v607 = vld [vmem:[#allocation7 + $0x880] sm:$0xff]
    %v608 = vld [vmem:[#allocation7 + $0x888] sm:$0xff]
    %v609 = vld [vmem:[#allocation7 + $0x890] sm:$0xff]
    %v610 = vld [vmem:[#allocation7 + $0x898] sm:$0xff]
    %v611 = vld [vmem:[#allocation7 + $0x8a0] sm:$0xff]
    %v612 = vld [vmem:[#allocation7 + $0x8a8] sm:$0xff]
    %v613 = vld [vmem:[#allocation7 + $0x8b0] sm:$0xff]
    %v614 = vld [vmem:[#allocation7 + $0x8b8] sm:$0xff]
    %v615 = vld [vmem:[#allocation7 + $0x8c0] sm:$0xff]
    %v616 = vld [vmem:[#allocation7 + $0x8c8] sm:$0xff]
    %v617 = vld [vmem:[#allocation7 + $0x8d0] sm:$0xff]
    %v618 = vld [vmem:[#allocation7 + $0x8d8] sm:$0xff]
    %v619 = vld [vmem:[#allocation7 + $0x8e0] sm:$0xff]
    %v620 = vld [vmem:[#allocation7 + $0x8e8] sm:$0xff]
    %v621 = vld [vmem:[#allocation7 + $0x8f0] sm:$0xff]
    %v622 = vld [vmem:[#allocation7 + $0x8f8] sm:$0xff]
    %v623 = vld [vmem:[#allocation7 + $0x900] sm:$0xff]
    %v624 = vld [vmem:[#allocation7 + $0x908] sm:$0xff]
    %v625 = vld [vmem:[#allocation7 + $0x910] sm:$0xff]
    %v626 = vld [vmem:[#allocation7 + $0x918] sm:$0xff]
    %v627 = vld [vmem:[#allocation7 + $0x920] sm:$0xff]
    %v628 = vld [vmem:[#allocation7 + $0x928] sm:$0xff]
    %v629 = vld [vmem:[#allocation7 + $0x930] sm:$0xff]
    %v630 = vld [vmem:[#allocation7 + $0x938] sm:$0xff]
    %v631 = vld [vmem:[#allocation7 + $0x940] sm:$0xff]
    %v632 = vld [vmem:[#allocation7 + $0x948] sm:$0xff]
    %v633 = vld [vmem:[#allocation7 + $0x950] sm:$0xff]
    %v634 = vld [vmem:[#allocation7 + $0x958] sm:$0xff]
    %v635 = vld [vmem:[#allocation7 + $0x960] sm:$0xff]
    %v636 = vld [vmem:[#allocation7 + $0x968] sm:$0xff]
    %v637 = vld [vmem:[#allocation7 + $0x970] sm:$0xff]
    %v638 = vld [vmem:[#allocation7 + $0x978] sm:$0xff]
    %v639 = vld [vmem:[#allocation7 + $0x980] sm:$0xff]
    %v640 = vld [vmem:[#allocation7 + $0x988] sm:$0xff]
    %v641 = vld [vmem:[#allocation7 + $0x990] sm:$0xff]
    %v642 = vld [vmem:[#allocation7 + $0x998] sm:$0xff]
    %v643 = vld [vmem:[#allocation7 + $0x9a0] sm:$0xff]
    %v644 = vld [vmem:[#allocation7 + $0x9a8] sm:$0xff]
    %v645 = vld [vmem:[#allocation7 + $0x9b0] sm:$0xff]
    %v646 = vld [vmem:[#allocation7 + $0x9b8] sm:$0xff]
    %v647 = vld [vmem:[#allocation7 + $0x9c0] sm:$0xff]
    %v648 = vld [vmem:[#allocation7 + $0x9c8] sm:$0xff]
    %v649 = vld [vmem:[#allocation7 + $0x9d0] sm:$0xff]
    %v650 = vld [vmem:[#allocation7 + $0x9d8] sm:$0xff]
    %v651 = vld [vmem:[#allocation7 + $0x9e0] sm:$0xff]
    %v652 = vld [vmem:[#allocation7 + $0x9e8] sm:$0xff]
    %v653 = vld [vmem:[#allocation7 + $0x9f0] sm:$0xff]
    %v654 = vld [vmem:[#allocation7 + $0x9f8] sm:$0xff]
    %v655 = vld [vmem:[#allocation7 + $0xa00] sm:$0xff]
    %v656 = vld [vmem:[#allocation7 + $0xa08] sm:$0xff]
    %v657 = vld [vmem:[#allocation7 + $0xa10] sm:$0xff]
    %v658 = vld [vmem:[#allocation7 + $0xa18] sm:$0xff]
    %v659 = vld [vmem:[#allocation7 + $0xa20] sm:$0xff]
    %v660 = vld [vmem:[#allocation7 + $0xa28] sm:$0xff]
    %v661 = vld [vmem:[#allocation7 + $0xa30] sm:$0xff]
    %v662 = vld [vmem:[#allocation7 + $0xa38] sm:$0xff]
    %v663 = vld [vmem:[#allocation7 + $0xa40] sm:$0xff]
    %v664 = vld [vmem:[#allocation7 + $0xa48] sm:$0xff]
    %v665 = vld [vmem:[#allocation7 + $0xa50] sm:$0xff]
    %v666 = vld [vmem:[#allocation7 + $0xa58] sm:$0xff]
    %v667 = vld [vmem:[#allocation7 + $0xa60] sm:$0xff]
    %v668 = vld [vmem:[#allocation7 + $0xa68] sm:$0xff]
    %v669 = vld [vmem:[#allocation7 + $0xa70] sm:$0xff]
    %v670 = vld [vmem:[#allocation7 + $0xa78] sm:$0xff]
    %v671 = vld [vmem:[#allocation7 + $0xa80] sm:$0xff]
    %v672 = vld [vmem:[#allocation7 + $0xa88] sm:$0xff]
    %v673 = vld [vmem:[#allocation7 + $0xa90] sm:$0xff]
    %v674 = vld [vmem:[#allocation7 + $0xa98] sm:$0xff]
    %v675 = vld [vmem:[#allocation7 + $0xaa0] sm:$0xff]
    %v676 = vld [vmem:[#allocation7 + $0xaa8] sm:$0xff]
    %v677 = vld [vmem:[#allocation7 + $0xab0] sm:$0xff]
    %v678 = vld [vmem:[#allocation7 + $0xab8] sm:$0xff]
    %v679 = vld [vmem:[#allocation7 + $0xac0] sm:$0xff]
    %v680 = vld [vmem:[#allocation7 + $0xac8] sm:$0xff]
    %v681 = vld [vmem:[#allocation7 + $0xad0] sm:$0xff]
    %v682 = vld [vmem:[#allocation7 + $0xad8] sm:$0xff]
    %v683 = vld [vmem:[#allocation7 + $0xae0] sm:$0xff]
    %v684 = vld [vmem:[#allocation7 + $0xae8] sm:$0xff]
    %v685 = vld [vmem:[#allocation7 + $0xaf0] sm:$0xff]
    %v686 = vld [vmem:[#allocation7 + $0xaf8] sm:$0xff]
    %v687 = vld [vmem:[#allocation7 + $0xb00] sm:$0xff]
    %v688 = vld [vmem:[#allocation7 + $0xb08] sm:$0xff]
    %v689 = vld [vmem:[#allocation7 + $0xb10] sm:$0xff]
    %v690 = vld [vmem:[#allocation7 + $0xb18] sm:$0xff]
    %v691 = vld [vmem:[#allocation7 + $0xb20] sm:$0xff]
    %v692 = vld [vmem:[#allocation7 + $0xb28] sm:$0xff]
    %v693 = vld [vmem:[#allocation7 + $0xb30] sm:$0xff]
    %v694 = vld [vmem:[#allocation7 + $0xb38] sm:$0xff]
    %v695 = vld [vmem:[#allocation7 + $0xb40] sm:$0xff]
    %v696 = vld [vmem:[#allocation7 + $0xb48] sm:$0xff]
    %v697 = vld [vmem:[#allocation7 + $0xb50] sm:$0xff]
    %v698 = vld [vmem:[#allocation7 + $0xb58] sm:$0xff]
    %v699 = vld [vmem:[#allocation7 + $0xb60] sm:$0xff]
    %v700 = vld [vmem:[#allocation7 + $0xb68] sm:$0xff]
    %v701 = vld [vmem:[#allocation7 + $0xb70] sm:$0xff]
    %v702 = vld [vmem:[#allocation7 + $0xb78] sm:$0xff]
    %v703 = vld [vmem:[#allocation7 + $0xb80] sm:$0xff]
    %v704 = vld [vmem:[#allocation7 + $0xb88] sm:$0xff]
    %v705 = vld [vmem:[#allocation7 + $0xb90] sm:$0xff]
    %v706 = vld [vmem:[#allocation7 + $0xb98] sm:$0xff]
    %v707 = vld [vmem:[#allocation7 + $0xba0] sm:$0xff]
    %v708 = vld [vmem:[#allocation7 + $0xba8] sm:$0xff]
    %v709 = vld [vmem:[#allocation7 + $0xbb0] sm:$0xff]
    %v710 = vld [vmem:[#allocation7 + $0xbb8] sm:$0xff]
    %v711 = vld [vmem:[#allocation7 + $0xbc0] sm:$0xff]
    %v712 = vld [vmem:[#allocation7 + $0xbc8] sm:$0xff]
    %v713 = vld [vmem:[#allocation7 + $0xbd0] sm:$0xff]
    %v714 = vld [vmem:[#allocation7 + $0xbd8] sm:$0xff]
    %v715 = vld [vmem:[#allocation7 + $0xbe0] sm:$0xff]
    %v716 = vld [vmem:[#allocation7 + $0xbe8] sm:$0xff]
    %v717 = vld [vmem:[#allocation7 + $0xbf0] sm:$0xff]
    %v718 = vld [vmem:[#allocation7 + $0xbf8] sm:$0xff]
    %v719 = vld [vmem:[#allocation7 + $0xc00] sm:$0xff]
    %v720 = vld [vmem:[#allocation7 + $0xc08] sm:$0xff]
    %v721 = vld [vmem:[#allocation7 + $0xc10] sm:$0xff]
    %v722 = vld [vmem:[#allocation7 + $0xc18] sm:$0xff]
    %v723 = vld [vmem:[#allocation7 + $0xc20] sm:$0xff]
    %v724 = vld [vmem:[#allocation7 + $0xc28] sm:$0xff]
    %v725 = vld [vmem:[#allocation7 + $0xc30] sm:$0xff]
    %v726 = vld [vmem:[#allocation7 + $0xc38] sm:$0xff]
    %v727 = vld [vmem:[#allocation7 + $0xc40] sm:$0xff]
    %v728 = vld [vmem:[#allocation7 + $0xc48] sm:$0xff]
    %v729 = vld [vmem:[#allocation7 + $0xc50] sm:$0xff]
    %v730 = vld [vmem:[#allocation7 + $0xc58] sm:$0xff]
    %v731 = vld [vmem:[#allocation7 + $0xc60] sm:$0xff]
    %v732 = vld [vmem:[#allocation7 + $0xc68] sm:$0xff]
    %v733 = vld [vmem:[#allocation7 + $0xc70] sm:$0xff]
    %v734 = vld [vmem:[#allocation7 + $0xc78] sm:$0xff]
    %v735 = vld [vmem:[#allocation7 + $0xc80] sm:$0xff]
    %v736 = vld [vmem:[#allocation7 + $0xc88] sm:$0xff]
    %v737 = vld [vmem:[#allocation7 + $0xc90] sm:$0xff]
    %v738 = vld [vmem:[#allocation7 + $0xc98] sm:$0xff]
    %v739 = vld [vmem:[#allocation7 + $0xca0] sm:$0xff]
    %v740 = vld [vmem:[#allocation7 + $0xca8] sm:$0xff]
    %v741 = vld [vmem:[#allocation7 + $0xcb0] sm:$0xff]
    %v742 = vld [vmem:[#allocation7 + $0xcb8] sm:$0xff]
    %v743 = vld [vmem:[#allocation7 + $0xcc0] sm:$0xff]
    %v744 = vld [vmem:[#allocation7 + $0xcc8] sm:$0xff]
    %v745 = vld [vmem:[#allocation7 + $0xcd0] sm:$0xff]
    %v746 = vld [vmem:[#allocation7 + $0xcd8] sm:$0xff]
    %v747 = vld [vmem:[#allocation7 + $0xce0] sm:$0xff]
    %v748 = vld [vmem:[#allocation7 + $0xce8] sm:$0xff]
    %v749 = vld [vmem:[#allocation7 + $0xcf0] sm:$0xff]
    %v750 = vld [vmem:[#allocation7 + $0xcf8] sm:$0xff]
    %v751 = vld [vmem:[#allocation7 + $0xd00] sm:$0xff]
    %v752 = vld [vmem:[#allocation7 + $0xd08] sm:$0xff]
    %v753 = vld [vmem:[#allocation7 + $0xd10] sm:$0xff]
    %v754 = vld [vmem:[#allocation7 + $0xd18] sm:$0xff]
    %v755 = vld [vmem:[#allocation7 + $0xd20] sm:$0xff]
    %v756 = vld [vmem:[#allocation7 + $0xd28] sm:$0xff]
    %v757 = vld [vmem:[#allocation7 + $0xd30] sm:$0xff]
    %v758 = vld [vmem:[#allocation7 + $0xd38] sm:$0xff]
    %v759 = vld [vmem:[#allocation7 + $0xd40] sm:$0xff]
    %v760 = vld [vmem:[#allocation7 + $0xd48] sm:$0xff]
    %v761 = vld [vmem:[#allocation7 + $0xd50] sm:$0xff]
    %v762 = vld [vmem:[#allocation7 + $0xd58] sm:$0xff]
    %v763 = vld [vmem:[#allocation7 + $0xd60] sm:$0xff]
    %v764 = vld [vmem:[#allocation7 + $0xd68] sm:$0xff]
    %v765 = vld [vmem:[#allocation7 + $0xd70] sm:$0xff]
    %v766 = vld [vmem:[#allocation7 + $0xd78] sm:$0xff]
    %v767 = vld [vmem:[#allocation7 + $0xd80] sm:$0xff]
    %v768 = vld [vmem:[#allocation7 + $0xd88] sm:$0xff]
    %v769 = vld [vmem:[#allocation7 + $0xd90] sm:$0xff]
    %v770 = vld [vmem:[#allocation7 + $0xd98] sm:$0xff]
    %v771 = vld [vmem:[#allocation7 + $0xda0] sm:$0xff]
    %v772 = vld [vmem:[#allocation7 + $0xda8] sm:$0xff]
    %v773 = vld [vmem:[#allocation7 + $0xdb0] sm:$0xff]
    %v774 = vld [vmem:[#allocation7 + $0xdb8] sm:$0xff]
    %v775 = vld [vmem:[#allocation7 + $0xdc0] sm:$0xff]
    %v776 = vld [vmem:[#allocation7 + $0xdc8] sm:$0xff]
    %v777 = vld [vmem:[#allocation7 + $0xdd0] sm:$0xff]
    %v778 = vld [vmem:[#allocation7 + $0xdd8] sm:$0xff]
    %v779 = vld [vmem:[#allocation7 + $0xde0] sm:$0xff]
    %v780 = vld [vmem:[#allocation7 + $0xde8] sm:$0xff]
    %v781 = vld [vmem:[#allocation7 + $0xdf0] sm:$0xff]
    %v782 = vld [vmem:[#allocation7 + $0xdf8] sm:$0xff]
    %v783 = vld [vmem:[#allocation7 + $0xe00] sm:$0xff]
    %v784 = vld [vmem:[#allocation7 + $0xe08] sm:$0xff]
    %v785 = vld [vmem:[#allocation7 + $0xe10] sm:$0xff]
    %v786 = vld [vmem:[#allocation7 + $0xe18] sm:$0xff]
    %v787 = vld [vmem:[#allocation7 + $0xe20] sm:$0xff]
    %v788 = vld [vmem:[#allocation7 + $0xe28] sm:$0xff]
    %v789 = vld [vmem:[#allocation7 + $0xe30] sm:$0xff]
    %v790 = vld [vmem:[#allocation7 + $0xe38] sm:$0xff]
    %v791 = vld [vmem:[#allocation7 + $0xe40] sm:$0xff]
    %v792 = vld [vmem:[#allocation7 + $0xe48] sm:$0xff]
    %v793 = vld [vmem:[#allocation7 + $0xe50] sm:$0xff]
    %v794 = vld [vmem:[#allocation7 + $0xe58] sm:$0xff]
    %v795 = vld [vmem:[#allocation7 + $0xe60] sm:$0xff]
    %v796 = vld [vmem:[#allocation7 + $0xe68] sm:$0xff]
    %v797 = vld [vmem:[#allocation7 + $0xe70] sm:$0xff]
    %v798 = vld [vmem:[#allocation7 + $0xe78] sm:$0xff]
    %v799 = vld [vmem:[#allocation7 + $0xe80] sm:$0xff]
    %v800 = vld [vmem:[#allocation7 + $0xe88] sm:$0xff]
    %v801 = vld [vmem:[#allocation7 + $0xe90] sm:$0xff]
    %v802 = vld [vmem:[#allocation7 + $0xe98] sm:$0xff]
    %v803 = vld [vmem:[#allocation7 + $0xea0] sm:$0xff]
    %v804 = vld [vmem:[#allocation7 + $0xea8] sm:$0xff]
    %v805 = vld [vmem:[#allocation7 + $0xeb0] sm:$0xff]
    %v806 = vld [vmem:[#allocation7 + $0xeb8] sm:$0xff]
    %v807 = vld [vmem:[#allocation7 + $0xec0] sm:$0xff]
    %v808 = vld [vmem:[#allocation7 + $0xec8] sm:$0xff]
    %v809 = vld [vmem:[#allocation7 + $0xed0] sm:$0xff]
    %v810 = vld [vmem:[#allocation7 + $0xed8] sm:$0xff]
    %v811 = vld [vmem:[#allocation7 + $0xee0] sm:$0xff]
    %v812 = vld [vmem:[#allocation7 + $0xee8] sm:$0xff]
    %v813 = vld [vmem:[#allocation7 + $0xef0] sm:$0xff]
    %v814 = vld [vmem:[#allocation7 + $0xef8] sm:$0xff]
    %v815 = vld [vmem:[#allocation7 + $0xf00] sm:$0xff]
    %v816 = vld [vmem:[#allocation7 + $0xf08] sm:$0xff]
    %v817 = vld [vmem:[#allocation7 + $0xf10] sm:$0xff]
    %v818 = vld [vmem:[#allocation7 + $0xf18] sm:$0xff]
    %v819 = vld [vmem:[#allocation7 + $0xf20] sm:$0xff]
    %v820 = vld [vmem:[#allocation7 + $0xf28] sm:$0xff]
    %v821 = vld [vmem:[#allocation7 + $0xf30] sm:$0xff]
    %v822 = vld [vmem:[#allocation7 + $0xf38] sm:$0xff]
    %v823 = vld [vmem:[#allocation7 + $0xf40] sm:$0xff]
    %v824 = vld [vmem:[#allocation7 + $0xf48] sm:$0xff]
    %v825 = vld [vmem:[#allocation7 + $0xf50] sm:$0xff]
    %v826 = vld [vmem:[#allocation7 + $0xf58] sm:$0xff]
    %v827 = vld [vmem:[#allocation7 + $0xf60] sm:$0xff]
    %v828 = vld [vmem:[#allocation7 + $0xf68] sm:$0xff]
    %v829 = vld [vmem:[#allocation7 + $0xf70] sm:$0xff]
    %v830 = vld [vmem:[#allocation7 + $0xf78] sm:$0xff]
    %v831 = vld [vmem:[#allocation7 + $0xf80] sm:$0xff]
    %v832 = vld [vmem:[#allocation7 + $0xf88] sm:$0xff]
    %v833 = vld [vmem:[#allocation7 + $0xf90] sm:$0xff]
    %v834 = vld [vmem:[#allocation7 + $0xf98] sm:$0xff]
    %v835 = vld [vmem:[#allocation7 + $0xfa0] sm:$0xff]
    %v836 = vld [vmem:[#allocation7 + $0xfa8] sm:$0xff]
    %v837 = vld [vmem:[#allocation7 + $0xfb0] sm:$0xff]
    %v838 = vld [vmem:[#allocation7 + $0xfb8] sm:$0xff]
    %v839 = vld [vmem:[#allocation7 + $0xfc0] sm:$0xff]
    %v840 = vld [vmem:[#allocation7 + $0xfc8] sm:$0xff]
    %v841 = vld [vmem:[#allocation7 + $0xfd0] sm:$0xff]
    %v842 = vld [vmem:[#allocation7 + $0xfd8] sm:$0xff]
    %v843 = vld [vmem:[#allocation7 + $0xfe0] sm:$0xff]
    %v844 = vld [vmem:[#allocation7 + $0xfe8] sm:$0xff]
    %v845 = vld [vmem:[#allocation7 + $0xff0] sm:$0xff]
    %v846 = vld [vmem:[#allocation7 + $0xff8] sm:$0xff]
    %v847 = vld [vmem:[#allocation8] sm:$0xff]
    %v849 = vlaneseq
    %v850 = vshrl.u32 %v849, 7
    %v851 = vsub.s32 0, %v850
    %v852 = vrot.slane %v847, %v851
    %v853 = vlaneseq
    %v854 = vshrl.u32 %v853, 7
    %v855 = vsub.s32 1, %v854
    %v856 = vrot.slane %v847, %v855
    %v857 = vlaneseq
    %v858 = vshrl.u32 %v857, 7
    %v859 = vsub.s32 2, %v858
    %v860 = vrot.slane %v847, %v859
    %v861 = vlaneseq
    %v862 = vshrl.u32 %v861, 7
    %v863 = vsub.s32 3, %v862
    %v864 = vrot.slane %v847, %v863
    %v865 = vlaneseq
    %v866 = vshrl.u32 %v865, 7
    %v867 = vsub.s32 4, %v866
    %v868 = vrot.slane %v847, %v867
    %v869 = vlaneseq
    %v870 = vshrl.u32 %v869, 7
    %v871 = vsub.s32 5, %v870
    %v872 = vrot.slane %v847, %v871
    %v873 = vlaneseq
    %v874 = vshrl.u32 %v873, 7
    %v875 = vsub.s32 6, %v874
    %v876 = vrot.slane %v847, %v875
    %v877 = vlaneseq
    %v878 = vshrl.u32 %v877, 7
    %v879 = vsub.s32 7, %v878
    %v880 = vrot.slane %v847, %v879
    %v1401 = vunpack.c.l.b16 %v335
    %v1402 = vunpack.c.h.b16 %v335
    %v1403 = vunpack.c.l.b16 %v336
    %v1404 = vunpack.c.h.b16 %v336
    %v1405 = vunpack.c.l.b16 %v337
    %v1406 = vunpack.c.h.b16 %v337
    %v1407 = vunpack.c.l.b16 %v338
    %v1408 = vunpack.c.h.b16 %v338
    %v1409 = vunpack.c.l.b16 %v339
    %v1410 = vunpack.c.h.b16 %v339
    %v1411 = vunpack.c.l.b16 %v340
    %v1412 = vunpack.c.h.b16 %v340
    %v1413 = vunpack.c.l.b16 %v341
    %v1414 = vunpack.c.h.b16 %v341
    %v1415 = vunpack.c.l.b16 %v342
    %v1416 = vunpack.c.h.b16 %v342
    %v1417 = vunpack.c.l.b16 %v343
    %v1418 = vunpack.c.h.b16 %v343
    %v1419 = vunpack.c.l.b16 %v344
    %v1420 = vunpack.c.h.b16 %v344
    %v1421 = vunpack.c.l.b16 %v345
    %v1422 = vunpack.c.h.b16 %v345
    %v1423 = vunpack.c.l.b16 %v346
    %v1424 = vunpack.c.h.b16 %v346
    %v1425 = vunpack.c.l.b16 %v347
    %v1426 = vunpack.c.h.b16 %v347
    %v1427 = vunpack.c.l.b16 %v348
    %v1428 = vunpack.c.h.b16 %v348
    %v1429 = vunpack.c.l.b16 %v349
    %v1430 = vunpack.c.h.b16 %v349
    %v1431 = vunpack.c.l.b16 %v350
    %v1432 = vunpack.c.h.b16 %v350
    %v1433 = vunpack.c.l.b16 %v351
    %v1434 = vunpack.c.h.b16 %v351
    %v1435 = vunpack.c.l.b16 %v352
    %v1436 = vunpack.c.h.b16 %v352
    %v1437 = vunpack.c.l.b16 %v353
    %v1438 = vunpack.c.h.b16 %v353
    %v1439 = vunpack.c.l.b16 %v354
    %v1440 = vunpack.c.h.b16 %v354
    %v1441 = vunpack.c.l.b16 %v355
    %v1442 = vunpack.c.h.b16 %v355
    %v1443 = vunpack.c.l.b16 %v356
    %v1444 = vunpack.c.h.b16 %v356
    %v1445 = vunpack.c.l.b16 %v357
    %v1446 = vunpack.c.h.b16 %v357
    %v1447 = vunpack.c.l.b16 %v358
    %v1448 = vunpack.c.h.b16 %v358
    %v1449 = vunpack.c.l.b16 %v359
    %v1450 = vunpack.c.h.b16 %v359
    %v1451 = vunpack.c.l.b16 %v360
    %v1452 = vunpack.c.h.b16 %v360
    %v1453 = vunpack.c.l.b16 %v361
    %v1454 = vunpack.c.h.b16 %v361
    %v1455 = vunpack.c.l.b16 %v362
    %v1456 = vunpack.c.h.b16 %v362
    %v1457 = vunpack.c.l.b16 %v363
    %v1458 = vunpack.c.h.b16 %v363
    %v1459 = vunpack.c.l.b16 %v364
    %v1460 = vunpack.c.h.b16 %v364
    %v1461 = vunpack.c.l.b16 %v365
    %v1462 = vunpack.c.h.b16 %v365
    %v1463 = vunpack.c.l.b16 %v366
    %v1464 = vunpack.c.h.b16 %v366
    %v1465 = vunpack.c.l.b16 %v367
    %v1466 = vunpack.c.h.b16 %v367
    %v1467 = vunpack.c.l.b16 %v368
    %v1468 = vunpack.c.h.b16 %v368
    %v1469 = vunpack.c.l.b16 %v369
    %v1470 = vunpack.c.h.b16 %v369
    %v1471 = vunpack.c.l.b16 %v370
    %v1472 = vunpack.c.h.b16 %v370
    %v1473 = vunpack.c.l.b16 %v371
    %v1474 = vunpack.c.h.b16 %v371
    %v1475 = vunpack.c.l.b16 %v372
    %v1476 = vunpack.c.h.b16 %v372
    %v1477 = vunpack.c.l.b16 %v373
    %v1478 = vunpack.c.h.b16 %v373
    %v1479 = vunpack.c.l.b16 %v374
    %v1480 = vunpack.c.h.b16 %v374
    %v1481 = vunpack.c.l.b16 %v375
    %v1482 = vunpack.c.h.b16 %v375
    %v1483 = vunpack.c.l.b16 %v376
    %v1484 = vunpack.c.h.b16 %v376
    %v1485 = vunpack.c.l.b16 %v377
    %v1486 = vunpack.c.h.b16 %v377
    %v1487 = vunpack.c.l.b16 %v378
    %v1488 = vunpack.c.h.b16 %v378
    %v1489 = vunpack.c.l.b16 %v379
    %v1490 = vunpack.c.h.b16 %v379
    %v1491 = vunpack.c.l.b16 %v380
    %v1492 = vunpack.c.h.b16 %v380
    %v1493 = vunpack.c.l.b16 %v381
    %v1494 = vunpack.c.h.b16 %v381
    %v1495 = vunpack.c.l.b16 %v382
    %v1496 = vunpack.c.h.b16 %v382
    %v1497 = vunpack.c.l.b16 %v383
    %v1498 = vunpack.c.h.b16 %v383
    %v1499 = vunpack.c.l.b16 %v384
    %v1500 = vunpack.c.h.b16 %v384
    %v1501 = vunpack.c.l.b16 %v385
    %v1502 = vunpack.c.h.b16 %v385
    %v1503 = vunpack.c.l.b16 %v386
    %v1504 = vunpack.c.h.b16 %v386
    %v1505 = vunpack.c.l.b16 %v387
    %v1506 = vunpack.c.h.b16 %v387
    %v1507 = vunpack.c.l.b16 %v388
    %v1508 = vunpack.c.h.b16 %v388
    %v1509 = vunpack.c.l.b16 %v389
    %v1510 = vunpack.c.h.b16 %v389
    %v1511 = vunpack.c.l.b16 %v390
    %v1512 = vunpack.c.h.b16 %v390
    %v1513 = vunpack.c.l.b16 %v391
    %v1514 = vunpack.c.h.b16 %v391
    %v1515 = vunpack.c.l.b16 %v392
    %v1516 = vunpack.c.h.b16 %v392
    %v1517 = vunpack.c.l.b16 %v393
    %v1518 = vunpack.c.h.b16 %v393
    %v1519 = vunpack.c.l.b16 %v394
    %v1520 = vunpack.c.h.b16 %v394
    %v1521 = vunpack.c.l.b16 %v395
    %v1522 = vunpack.c.h.b16 %v395
    %v1523 = vunpack.c.l.b16 %v396
    %v1524 = vunpack.c.h.b16 %v396
    %v1525 = vunpack.c.l.b16 %v397
    %v1526 = vunpack.c.h.b16 %v397
    %v1527 = vunpack.c.l.b16 %v398
    %v1528 = vunpack.c.h.b16 %v398
    %v1529 = vunpack.c.l.b16 %v399
    %v1530 = vunpack.c.h.b16 %v399
    %v1531 = vunpack.c.l.b16 %v400
    %v1532 = vunpack.c.h.b16 %v400
    %v1533 = vunpack.c.l.b16 %v401
    %v1534 = vunpack.c.h.b16 %v401
    %v1535 = vunpack.c.l.b16 %v402
    %v1536 = vunpack.c.h.b16 %v402
    %v1537 = vunpack.c.l.b16 %v403
    %v1538 = vunpack.c.h.b16 %v403
    %v1539 = vunpack.c.l.b16 %v404
    %v1540 = vunpack.c.h.b16 %v404
    %v1541 = vunpack.c.l.b16 %v405
    %v1542 = vunpack.c.h.b16 %v405
    %v1543 = vunpack.c.l.b16 %v406
    %v1544 = vunpack.c.h.b16 %v406
    %v1545 = vunpack.c.l.b16 %v407
    %v1546 = vunpack.c.h.b16 %v407
    %v1547 = vunpack.c.l.b16 %v408
    %v1548 = vunpack.c.h.b16 %v408
    %v1549 = vunpack.c.l.b16 %v409
    %v1550 = vunpack.c.h.b16 %v409
    %v1551 = vunpack.c.l.b16 %v410
    %v1552 = vunpack.c.h.b16 %v410
    %v1553 = vunpack.c.l.b16 %v411
    %v1554 = vunpack.c.h.b16 %v411
    %v1555 = vunpack.c.l.b16 %v412
    %v1556 = vunpack.c.h.b16 %v412
    %v1557 = vunpack.c.l.b16 %v413
    %v1558 = vunpack.c.h.b16 %v413
    %v1559 = vunpack.c.l.b16 %v414
    %v1560 = vunpack.c.h.b16 %v414
    %v1561 = vunpack.c.l.b16 %v415
    %v1562 = vunpack.c.h.b16 %v415
    %v1563 = vunpack.c.l.b16 %v416
    %v1564 = vunpack.c.h.b16 %v416
    %v1565 = vunpack.c.l.b16 %v417
    %v1566 = vunpack.c.h.b16 %v417
    %v1567 = vunpack.c.l.b16 %v418
    %v1568 = vunpack.c.h.b16 %v418
    %v1569 = vunpack.c.l.b16 %v419
    %v1570 = vunpack.c.h.b16 %v419
    %v1571 = vunpack.c.l.b16 %v420
    %v1572 = vunpack.c.h.b16 %v420
    %v1573 = vunpack.c.l.b16 %v421
    %v1574 = vunpack.c.h.b16 %v421
    %v1575 = vunpack.c.l.b16 %v422
    %v1576 = vunpack.c.h.b16 %v422
    %v1577 = vunpack.c.l.b16 %v423
    %v1578 = vunpack.c.h.b16 %v423
    %v1579 = vunpack.c.l.b16 %v424
    %v1580 = vunpack.c.h.b16 %v424
    %v1581 = vunpack.c.l.b16 %v425
    %v1582 = vunpack.c.h.b16 %v425
    %v1583 = vunpack.c.l.b16 %v426
    %v1584 = vunpack.c.h.b16 %v426
    %v1585 = vunpack.c.l.b16 %v427
    %v1586 = vunpack.c.h.b16 %v427
    %v1587 = vunpack.c.l.b16 %v428
    %v1588 = vunpack.c.h.b16 %v428
    %v1589 = vunpack.c.l.b16 %v429
    %v1590 = vunpack.c.h.b16 %v429
    %v1591 = vunpack.c.l.b16 %v430
    %v1592 = vunpack.c.h.b16 %v430
    %v1593 = vunpack.c.l.b16 %v431
    %v1594 = vunpack.c.h.b16 %v431
    %v1595 = vunpack.c.l.b16 %v432
    %v1596 = vunpack.c.h.b16 %v432
    %v1597 = vunpack.c.l.b16 %v433
    %v1598 = vunpack.c.h.b16 %v433
    %v1599 = vunpack.c.l.b16 %v434
    %v1600 = vunpack.c.h.b16 %v434
    %v1601 = vunpack.c.l.b16 %v435
    %v1602 = vunpack.c.h.b16 %v435
    %v1603 = vunpack.c.l.b16 %v436
    %v1604 = vunpack.c.h.b16 %v436
    %v1605 = vunpack.c.l.b16 %v437
    %v1606 = vunpack.c.h.b16 %v437
    %v1607 = vunpack.c.l.b16 %v438
    %v1608 = vunpack.c.h.b16 %v438
    %v1609 = vunpack.c.l.b16 %v439
    %v1610 = vunpack.c.h.b16 %v439
    %v1611 = vunpack.c.l.b16 %v440
    %v1612 = vunpack.c.h.b16 %v440
    %v1613 = vunpack.c.l.b16 %v441
    %v1614 = vunpack.c.h.b16 %v441
    %v1615 = vunpack.c.l.b16 %v442
    %v1616 = vunpack.c.h.b16 %v442
    %v1617 = vunpack.c.l.b16 %v443
    %v1618 = vunpack.c.h.b16 %v443
    %v1619 = vunpack.c.l.b16 %v444
    %v1620 = vunpack.c.h.b16 %v444
    %v1621 = vunpack.c.l.b16 %v445
    %v1622 = vunpack.c.h.b16 %v445
    %v1623 = vunpack.c.l.b16 %v446
    %v1624 = vunpack.c.h.b16 %v446
    %v1625 = vunpack.c.l.b16 %v447
    %v1626 = vunpack.c.h.b16 %v447
    %v1627 = vunpack.c.l.b16 %v448
    %v1628 = vunpack.c.h.b16 %v448
    %v1629 = vunpack.c.l.b16 %v449
    %v1630 = vunpack.c.h.b16 %v449
    %v1631 = vunpack.c.l.b16 %v450
    %v1632 = vunpack.c.h.b16 %v450
    %v1633 = vunpack.c.l.b16 %v451
    %v1634 = vunpack.c.h.b16 %v451
    %v1635 = vunpack.c.l.b16 %v452
    %v1636 = vunpack.c.h.b16 %v452
    %v1637 = vunpack.c.l.b16 %v453
    %v1638 = vunpack.c.h.b16 %v453
    %v1639 = vunpack.c.l.b16 %v454
    %v1640 = vunpack.c.h.b16 %v454
    %v1641 = vunpack.c.l.b16 %v455
    %v1642 = vunpack.c.h.b16 %v455
    %v1643 = vunpack.c.l.b16 %v456
    %v1644 = vunpack.c.h.b16 %v456
    %v1645 = vunpack.c.l.b16 %v457
    %v1646 = vunpack.c.h.b16 %v457
    %v1647 = vunpack.c.l.b16 %v458
    %v1648 = vunpack.c.h.b16 %v458
    %v1649 = vunpack.c.l.b16 %v459
    %v1650 = vunpack.c.h.b16 %v459
    %v1651 = vunpack.c.l.b16 %v460
    %v1652 = vunpack.c.h.b16 %v460
    %v1653 = vunpack.c.l.b16 %v461
    %v1654 = vunpack.c.h.b16 %v461
    %v1655 = vunpack.c.l.b16 %v462
    %v1656 = vunpack.c.h.b16 %v462
    %v1657 = vunpack.c.l.b16 %v463
    %v1658 = vunpack.c.h.b16 %v463
    %v1659 = vunpack.c.l.b16 %v464
    %v1660 = vunpack.c.h.b16 %v464
    %v1661 = vunpack.c.l.b16 %v465
    %v1662 = vunpack.c.h.b16 %v465
    %v1663 = vunpack.c.l.b16 %v466
    %v1664 = vunpack.c.h.b16 %v466
    %v1665 = vunpack.c.l.b16 %v467
    %v1666 = vunpack.c.h.b16 %v467
    %v1667 = vunpack.c.l.b16 %v468
    %v1668 = vunpack.c.h.b16 %v468
    %v1669 = vunpack.c.l.b16 %v469
    %v1670 = vunpack.c.h.b16 %v469
    %v1671 = vunpack.c.l.b16 %v470
    %v1672 = vunpack.c.h.b16 %v470
    %v1673 = vunpack.c.l.b16 %v471
    %v1674 = vunpack.c.h.b16 %v471
    %v1675 = vunpack.c.l.b16 %v472
    %v1676 = vunpack.c.h.b16 %v472
    %v1677 = vunpack.c.l.b16 %v473
    %v1678 = vunpack.c.h.b16 %v473
    %v1679 = vunpack.c.l.b16 %v474
    %v1680 = vunpack.c.h.b16 %v474
    %v1681 = vunpack.c.l.b16 %v475
    %v1682 = vunpack.c.h.b16 %v475
    %v1683 = vunpack.c.l.b16 %v476
    %v1684 = vunpack.c.h.b16 %v476
    %v1685 = vunpack.c.l.b16 %v477
    %v1686 = vunpack.c.h.b16 %v477
    %v1687 = vunpack.c.l.b16 %v478
    %v1688 = vunpack.c.h.b16 %v478
    %v1689 = vunpack.c.l.b16 %v479
    %v1690 = vunpack.c.h.b16 %v479
    %v1691 = vunpack.c.l.b16 %v480
    %v1692 = vunpack.c.h.b16 %v480
    %v1693 = vunpack.c.l.b16 %v481
    %v1694 = vunpack.c.h.b16 %v481
    %v1695 = vunpack.c.l.b16 %v482
    %v1696 = vunpack.c.h.b16 %v482
    %v1697 = vunpack.c.l.b16 %v483
    %v1698 = vunpack.c.h.b16 %v483
    %v1699 = vunpack.c.l.b16 %v484
    %v1700 = vunpack.c.h.b16 %v484
    %v1701 = vunpack.c.l.b16 %v485
    %v1702 = vunpack.c.h.b16 %v485
    %v1703 = vunpack.c.l.b16 %v486
    %v1704 = vunpack.c.h.b16 %v486
    %v1705 = vunpack.c.l.b16 %v487
    %v1706 = vunpack.c.h.b16 %v487
    %v1707 = vunpack.c.l.b16 %v488
    %v1708 = vunpack.c.h.b16 %v488
    %v1709 = vunpack.c.l.b16 %v489
    %v1710 = vunpack.c.h.b16 %v489
    %v1711 = vunpack.c.l.b16 %v490
    %v1712 = vunpack.c.h.b16 %v490
    %v1713 = vunpack.c.l.b16 %v491
    %v1714 = vunpack.c.h.b16 %v491
    %v1715 = vunpack.c.l.b16 %v492
    %v1716 = vunpack.c.h.b16 %v492
    %v1717 = vunpack.c.l.b16 %v493
    %v1718 = vunpack.c.h.b16 %v493
    %v1719 = vunpack.c.l.b16 %v494
    %v1720 = vunpack.c.h.b16 %v494
    %v1721 = vunpack.c.l.b16 %v495
    %v1722 = vunpack.c.h.b16 %v495
    %v1723 = vunpack.c.l.b16 %v496
    %v1724 = vunpack.c.h.b16 %v496
    %v1725 = vunpack.c.l.b16 %v497
    %v1726 = vunpack.c.h.b16 %v497
    %v1727 = vunpack.c.l.b16 %v498
    %v1728 = vunpack.c.h.b16 %v498
    %v1729 = vunpack.c.l.b16 %v499
    %v1730 = vunpack.c.h.b16 %v499
    %v1731 = vunpack.c.l.b16 %v500
    %v1732 = vunpack.c.h.b16 %v500
    %v1733 = vunpack.c.l.b16 %v501
    %v1734 = vunpack.c.h.b16 %v501
    %v1735 = vunpack.c.l.b16 %v502
    %v1736 = vunpack.c.h.b16 %v502
    %v1737 = vunpack.c.l.b16 %v503
    %v1738 = vunpack.c.h.b16 %v503
    %v1739 = vunpack.c.l.b16 %v504
    %v1740 = vunpack.c.h.b16 %v504
    %v1741 = vunpack.c.l.b16 %v505
    %v1742 = vunpack.c.h.b16 %v505
    %v1743 = vunpack.c.l.b16 %v506
    %v1744 = vunpack.c.h.b16 %v506
    %v1745 = vunpack.c.l.b16 %v507
    %v1746 = vunpack.c.h.b16 %v507
    %v1747 = vunpack.c.l.b16 %v508
    %v1748 = vunpack.c.h.b16 %v508
    %v1749 = vunpack.c.l.b16 %v509
    %v1750 = vunpack.c.h.b16 %v509
    %v1751 = vunpack.c.l.b16 %v510
    %v1752 = vunpack.c.h.b16 %v510
    %v1753 = vunpack.c.l.b16 %v511
    %v1754 = vunpack.c.h.b16 %v511
    %v1755 = vunpack.c.l.b16 %v512
    %v1756 = vunpack.c.h.b16 %v512
    %v1757 = vunpack.c.l.b16 %v513
    %v1758 = vunpack.c.h.b16 %v513
    %v1759 = vunpack.c.l.b16 %v514
    %v1760 = vunpack.c.h.b16 %v514
    %v1761 = vunpack.c.l.b16 %v515
    %v1762 = vunpack.c.h.b16 %v515
    %v1763 = vunpack.c.l.b16 %v516
    %v1764 = vunpack.c.h.b16 %v516
    %v1765 = vunpack.c.l.b16 %v517
    %v1766 = vunpack.c.h.b16 %v517
    %v1767 = vunpack.c.l.b16 %v518
    %v1768 = vunpack.c.h.b16 %v518
    %v1769 = vunpack.c.l.b16 %v519
    %v1770 = vunpack.c.h.b16 %v519
    %v1771 = vunpack.c.l.b16 %v520
    %v1772 = vunpack.c.h.b16 %v520
    %v1773 = vunpack.c.l.b16 %v521
    %v1774 = vunpack.c.h.b16 %v521
    %v1775 = vunpack.c.l.b16 %v522
    %v1776 = vunpack.c.h.b16 %v522
    %v1777 = vunpack.c.l.b16 %v523
    %v1778 = vunpack.c.h.b16 %v523
    %v1779 = vunpack.c.l.b16 %v524
    %v1780 = vunpack.c.h.b16 %v524
    %v1781 = vunpack.c.l.b16 %v525
    %v1782 = vunpack.c.h.b16 %v525
    %v1783 = vunpack.c.l.b16 %v526
    %v1784 = vunpack.c.h.b16 %v526
    %v1785 = vunpack.c.l.b16 %v527
    %v1786 = vunpack.c.h.b16 %v527
    %v1787 = vunpack.c.l.b16 %v528
    %v1788 = vunpack.c.h.b16 %v528
    %v1789 = vunpack.c.l.b16 %v529
    %v1790 = vunpack.c.h.b16 %v529
    %v1791 = vunpack.c.l.b16 %v530
    %v1792 = vunpack.c.h.b16 %v530
    %v1793 = vunpack.c.l.b16 %v531
    %v1794 = vunpack.c.h.b16 %v531
    %v1795 = vunpack.c.l.b16 %v532
    %v1796 = vunpack.c.h.b16 %v532
    %v1797 = vunpack.c.l.b16 %v533
    %v1798 = vunpack.c.h.b16 %v533
    %v1799 = vunpack.c.l.b16 %v534
    %v1800 = vunpack.c.h.b16 %v534
    %v1801 = vunpack.c.l.b16 %v535
    %v1802 = vunpack.c.h.b16 %v535
    %v1803 = vunpack.c.l.b16 %v536
    %v1804 = vunpack.c.h.b16 %v536
    %v1805 = vunpack.c.l.b16 %v537
    %v1806 = vunpack.c.h.b16 %v537
    %v1807 = vunpack.c.l.b16 %v538
    %v1808 = vunpack.c.h.b16 %v538
    %v1809 = vunpack.c.l.b16 %v539
    %v1810 = vunpack.c.h.b16 %v539
    %v1811 = vunpack.c.l.b16 %v540
    %v1812 = vunpack.c.h.b16 %v540
    %v1813 = vunpack.c.l.b16 %v541
    %v1814 = vunpack.c.h.b16 %v541
    %v1815 = vunpack.c.l.b16 %v542
    %v1816 = vunpack.c.h.b16 %v542
    %v1817 = vunpack.c.l.b16 %v543
    %v1818 = vunpack.c.h.b16 %v543
    %v1819 = vunpack.c.l.b16 %v544
    %v1820 = vunpack.c.h.b16 %v544
    %v1821 = vunpack.c.l.b16 %v545
    %v1822 = vunpack.c.h.b16 %v545
    %v1823 = vunpack.c.l.b16 %v546
    %v1824 = vunpack.c.h.b16 %v546
    %v1825 = vunpack.c.l.b16 %v547
    %v1826 = vunpack.c.h.b16 %v547
    %v1827 = vunpack.c.l.b16 %v548
    %v1828 = vunpack.c.h.b16 %v548
    %v1829 = vunpack.c.l.b16 %v549
    %v1830 = vunpack.c.h.b16 %v549
    %v1831 = vunpack.c.l.b16 %v550
    %v1832 = vunpack.c.h.b16 %v550
    %v1833 = vunpack.c.l.b16 %v551
    %v1834 = vunpack.c.h.b16 %v551
    %v1835 = vunpack.c.l.b16 %v552
    %v1836 = vunpack.c.h.b16 %v552
    %v1837 = vunpack.c.l.b16 %v553
    %v1838 = vunpack.c.h.b16 %v553
    %v1839 = vunpack.c.l.b16 %v554
    %v1840 = vunpack.c.h.b16 %v554
    %v1841 = vunpack.c.l.b16 %v555
    %v1842 = vunpack.c.h.b16 %v555
    %v1843 = vunpack.c.l.b16 %v556
    %v1844 = vunpack.c.h.b16 %v556
    %v1845 = vunpack.c.l.b16 %v557
    %v1846 = vunpack.c.h.b16 %v557
    %v1847 = vunpack.c.l.b16 %v558
    %v1848 = vunpack.c.h.b16 %v558
    %v1849 = vunpack.c.l.b16 %v559
    %v1850 = vunpack.c.h.b16 %v559
    %v1851 = vunpack.c.l.b16 %v560
    %v1852 = vunpack.c.h.b16 %v560
    %v1853 = vunpack.c.l.b16 %v561
    %v1854 = vunpack.c.h.b16 %v561
    %v1855 = vunpack.c.l.b16 %v562
    %v1856 = vunpack.c.h.b16 %v562
    %v1857 = vunpack.c.l.b16 %v563
    %v1858 = vunpack.c.h.b16 %v563
    %v1859 = vunpack.c.l.b16 %v564
    %v1860 = vunpack.c.h.b16 %v564
    %v1861 = vunpack.c.l.b16 %v565
    %v1862 = vunpack.c.h.b16 %v565
    %v1863 = vunpack.c.l.b16 %v566
    %v1864 = vunpack.c.h.b16 %v566
    %v1865 = vunpack.c.l.b16 %v567
    %v1866 = vunpack.c.h.b16 %v567
    %v1867 = vunpack.c.l.b16 %v568
    %v1868 = vunpack.c.h.b16 %v568
    %v1869 = vunpack.c.l.b16 %v569
    %v1870 = vunpack.c.h.b16 %v569
    %v1871 = vunpack.c.l.b16 %v570
    %v1872 = vunpack.c.h.b16 %v570
    %v1873 = vunpack.c.l.b16 %v571
    %v1874 = vunpack.c.h.b16 %v571
    %v1875 = vunpack.c.l.b16 %v572
    %v1876 = vunpack.c.h.b16 %v572
    %v1877 = vunpack.c.l.b16 %v573
    %v1878 = vunpack.c.h.b16 %v573
    %v1879 = vunpack.c.l.b16 %v574
    %v1880 = vunpack.c.h.b16 %v574
    %v1881 = vunpack.c.l.b16 %v575
    %v1882 = vunpack.c.h.b16 %v575
    %v1883 = vunpack.c.l.b16 %v576
    %v1884 = vunpack.c.h.b16 %v576
    %v1885 = vunpack.c.l.b16 %v577
    %v1886 = vunpack.c.h.b16 %v577
    %v1887 = vunpack.c.l.b16 %v578
    %v1888 = vunpack.c.h.b16 %v578
    %v1889 = vunpack.c.l.b16 %v579
    %v1890 = vunpack.c.h.b16 %v579
    %v1891 = vunpack.c.l.b16 %v580
    %v1892 = vunpack.c.h.b16 %v580
    %v1893 = vunpack.c.l.b16 %v581
    %v1894 = vunpack.c.h.b16 %v581
    %v1895 = vunpack.c.l.b16 %v582
    %v1896 = vunpack.c.h.b16 %v582
    %v1897 = vunpack.c.l.b16 %v583
    %v1898 = vunpack.c.h.b16 %v583
    %v1899 = vunpack.c.l.b16 %v584
    %v1900 = vunpack.c.h.b16 %v584
    %v1901 = vunpack.c.l.b16 %v585
    %v1902 = vunpack.c.h.b16 %v585
    %v1903 = vunpack.c.l.b16 %v586
    %v1904 = vunpack.c.h.b16 %v586
    %v1905 = vunpack.c.l.b16 %v587
    %v1906 = vunpack.c.h.b16 %v587
    %v1907 = vunpack.c.l.b16 %v588
    %v1908 = vunpack.c.h.b16 %v588
    %v1909 = vunpack.c.l.b16 %v589
    %v1910 = vunpack.c.h.b16 %v589
    %v1911 = vunpack.c.l.b16 %v590
    %v1912 = vunpack.c.h.b16 %v590
    %v1913 = vunpack.c.l.b16 %v591
    %v1914 = vunpack.c.h.b16 %v591
    %v1915 = vunpack.c.l.b16 %v592
    %v1916 = vunpack.c.h.b16 %v592
    %v1917 = vunpack.c.l.b16 %v593
    %v1918 = vunpack.c.h.b16 %v593
    %v1919 = vunpack.c.l.b16 %v594
    %v1920 = vunpack.c.h.b16 %v594
    %v1921 = vunpack.c.l.b16 %v595
    %v1922 = vunpack.c.h.b16 %v595
    %v1923 = vunpack.c.l.b16 %v596
    %v1924 = vunpack.c.h.b16 %v596
    %v1925 = vunpack.c.l.b16 %v597
    %v1926 = vunpack.c.h.b16 %v597
    %v1927 = vunpack.c.l.b16 %v598
    %v1928 = vunpack.c.h.b16 %v598
    %v1929 = vunpack.c.l.b16 %v599
    %v1930 = vunpack.c.h.b16 %v599
    %v1931 = vunpack.c.l.b16 %v600
    %v1932 = vunpack.c.h.b16 %v600
    %v1933 = vunpack.c.l.b16 %v601
    %v1934 = vunpack.c.h.b16 %v601
    %v1935 = vunpack.c.l.b16 %v602
    %v1936 = vunpack.c.h.b16 %v602
    %v1937 = vunpack.c.l.b16 %v603
    %v1938 = vunpack.c.h.b16 %v603
    %v1939 = vunpack.c.l.b16 %v604
    %v1940 = vunpack.c.h.b16 %v604
    %v1941 = vunpack.c.l.b16 %v605
    %v1942 = vunpack.c.h.b16 %v605
    %v1943 = vunpack.c.l.b16 %v606
    %v1944 = vunpack.c.h.b16 %v606
    %v1945 = vunpack.c.l.b16 %v607
    %v1946 = vunpack.c.h.b16 %v607
    %v1947 = vunpack.c.l.b16 %v608
    %v1948 = vunpack.c.h.b16 %v608
    %v1949 = vunpack.c.l.b16 %v609
    %v1950 = vunpack.c.h.b16 %v609
    %v1951 = vunpack.c.l.b16 %v610
    %v1952 = vunpack.c.h.b16 %v610
    %v1953 = vunpack.c.l.b16 %v611
    %v1954 = vunpack.c.h.b16 %v611
    %v1955 = vunpack.c.l.b16 %v612
    %v1956 = vunpack.c.h.b16 %v612
    %v1957 = vunpack.c.l.b16 %v613
    %v1958 = vunpack.c.h.b16 %v613
    %v1959 = vunpack.c.l.b16 %v614
    %v1960 = vunpack.c.h.b16 %v614
    %v1961 = vunpack.c.l.b16 %v615
    %v1962 = vunpack.c.h.b16 %v615
    %v1963 = vunpack.c.l.b16 %v616
    %v1964 = vunpack.c.h.b16 %v616
    %v1965 = vunpack.c.l.b16 %v617
    %v1966 = vunpack.c.h.b16 %v617
    %v1967 = vunpack.c.l.b16 %v618
    %v1968 = vunpack.c.h.b16 %v618
    %v1969 = vunpack.c.l.b16 %v619
    %v1970 = vunpack.c.h.b16 %v619
    %v1971 = vunpack.c.l.b16 %v620
    %v1972 = vunpack.c.h.b16 %v620
    %v1973 = vunpack.c.l.b16 %v621
    %v1974 = vunpack.c.h.b16 %v621
    %v1975 = vunpack.c.l.b16 %v622
    %v1976 = vunpack.c.h.b16 %v622
    %v1977 = vunpack.c.l.b16 %v623
    %v1978 = vunpack.c.h.b16 %v623
    %v1979 = vunpack.c.l.b16 %v624
    %v1980 = vunpack.c.h.b16 %v624
    %v1981 = vunpack.c.l.b16 %v625
    %v1982 = vunpack.c.h.b16 %v625
    %v1983 = vunpack.c.l.b16 %v626
    %v1984 = vunpack.c.h.b16 %v626
    %v1985 = vunpack.c.l.b16 %v627
    %v1986 = vunpack.c.h.b16 %v627
    %v1987 = vunpack.c.l.b16 %v628
    %v1988 = vunpack.c.h.b16 %v628
    %v1989 = vunpack.c.l.b16 %v629
    %v1990 = vunpack.c.h.b16 %v629
    %v1991 = vunpack.c.l.b16 %v630
    %v1992 = vunpack.c.h.b16 %v630
    %v1993 = vunpack.c.l.b16 %v631
    %v1994 = vunpack.c.h.b16 %v631
    %v1995 = vunpack.c.l.b16 %v632
    %v1996 = vunpack.c.h.b16 %v632
    %v1997 = vunpack.c.l.b16 %v633
    %v1998 = vunpack.c.h.b16 %v633
    %v1999 = vunpack.c.l.b16 %v634
    %v2000 = vunpack.c.h.b16 %v634
    %v2001 = vunpack.c.l.b16 %v635
    %v2002 = vunpack.c.h.b16 %v635
    %v2003 = vunpack.c.l.b16 %v636
    %v2004 = vunpack.c.h.b16 %v636
    %v2005 = vunpack.c.l.b16 %v637
    %v2006 = vunpack.c.h.b16 %v637
    %v2007 = vunpack.c.l.b16 %v638
    %v2008 = vunpack.c.h.b16 %v638
    %v2009 = vunpack.c.l.b16 %v639
    %v2010 = vunpack.c.h.b16 %v639
    %v2011 = vunpack.c.l.b16 %v640
    %v2012 = vunpack.c.h.b16 %v640
    %v2013 = vunpack.c.l.b16 %v641
    %v2014 = vunpack.c.h.b16 %v641
    %v2015 = vunpack.c.l.b16 %v642
    %v2016 = vunpack.c.h.b16 %v642
    %v2017 = vunpack.c.l.b16 %v643
    %v2018 = vunpack.c.h.b16 %v643
    %v2019 = vunpack.c.l.b16 %v644
    %v2020 = vunpack.c.h.b16 %v644
    %v2021 = vunpack.c.l.b16 %v645
    %v2022 = vunpack.c.h.b16 %v645
    %v2023 = vunpack.c.l.b16 %v646
    %v2024 = vunpack.c.h.b16 %v646
    %v2025 = vunpack.c.l.b16 %v647
    %v2026 = vunpack.c.h.b16 %v647
    %v2027 = vunpack.c.l.b16 %v648
    %v2028 = vunpack.c.h.b16 %v648
    %v2029 = vunpack.c.l.b16 %v649
    %v2030 = vunpack.c.h.b16 %v649
    %v2031 = vunpack.c.l.b16 %v650
    %v2032 = vunpack.c.h.b16 %v650
    %v2033 = vunpack.c.l.b16 %v651
    %v2034 = vunpack.c.h.b16 %v651
    %v2035 = vunpack.c.l.b16 %v652
    %v2036 = vunpack.c.h.b16 %v652
    %v2037 = vunpack.c.l.b16 %v653
    %v2038 = vunpack.c.h.b16 %v653
    %v2039 = vunpack.c.l.b16 %v654
    %v2040 = vunpack.c.h.b16 %v654
    %v2041 = vunpack.c.l.b16 %v655
    %v2042 = vunpack.c.h.b16 %v655
    %v2043 = vunpack.c.l.b16 %v656
    %v2044 = vunpack.c.h.b16 %v656
    %v2045 = vunpack.c.l.b16 %v657
    %v2046 = vunpack.c.h.b16 %v657
    %v2047 = vunpack.c.l.b16 %v658
    %v2048 = vunpack.c.h.b16 %v658
    %v2049 = vunpack.c.l.b16 %v659
    %v2050 = vunpack.c.h.b16 %v659
    %v2051 = vunpack.c.l.b16 %v660
    %v2052 = vunpack.c.h.b16 %v660
    %v2053 = vunpack.c.l.b16 %v661
    %v2054 = vunpack.c.h.b16 %v661
    %v2055 = vunpack.c.l.b16 %v662
    %v2056 = vunpack.c.h.b16 %v662
    %v2057 = vunpack.c.l.b16 %v663
    %v2058 = vunpack.c.h.b16 %v663
    %v2059 = vunpack.c.l.b16 %v664
    %v2060 = vunpack.c.h.b16 %v664
    %v2061 = vunpack.c.l.b16 %v665
    %v2062 = vunpack.c.h.b16 %v665
    %v2063 = vunpack.c.l.b16 %v666
    %v2064 = vunpack.c.h.b16 %v666
    %v2065 = vunpack.c.l.b16 %v667
    %v2066 = vunpack.c.h.b16 %v667
    %v2067 = vunpack.c.l.b16 %v668
    %v2068 = vunpack.c.h.b16 %v668
    %v2069 = vunpack.c.l.b16 %v669
    %v2070 = vunpack.c.h.b16 %v669
    %v2071 = vunpack.c.l.b16 %v670
    %v2072 = vunpack.c.h.b16 %v670
    %v2073 = vunpack.c.l.b16 %v671
    %v2074 = vunpack.c.h.b16 %v671
    %v2075 = vunpack.c.l.b16 %v672
    %v2076 = vunpack.c.h.b16 %v672
    %v2077 = vunpack.c.l.b16 %v673
    %v2078 = vunpack.c.h.b16 %v673
    %v2079 = vunpack.c.l.b16 %v674
    %v2080 = vunpack.c.h.b16 %v674
    %v2081 = vunpack.c.l.b16 %v675
    %v2082 = vunpack.c.h.b16 %v675
    %v2083 = vunpack.c.l.b16 %v676
    %v2084 = vunpack.c.h.b16 %v676
    %v2085 = vunpack.c.l.b16 %v677
    %v2086 = vunpack.c.h.b16 %v677
    %v2087 = vunpack.c.l.b16 %v678
    %v2088 = vunpack.c.h.b16 %v678
    %v2089 = vunpack.c.l.b16 %v679
    %v2090 = vunpack.c.h.b16 %v679
    %v2091 = vunpack.c.l.b16 %v680
    %v2092 = vunpack.c.h.b16 %v680
    %v2093 = vunpack.c.l.b16 %v681
    %v2094 = vunpack.c.h.b16 %v681
    %v2095 = vunpack.c.l.b16 %v682
    %v2096 = vunpack.c.h.b16 %v682
    %v2097 = vunpack.c.l.b16 %v683
    %v2098 = vunpack.c.h.b16 %v683
    %v2099 = vunpack.c.l.b16 %v684
    %v2100 = vunpack.c.h.b16 %v684
    %v2101 = vunpack.c.l.b16 %v685
    %v2102 = vunpack.c.h.b16 %v685
    %v2103 = vunpack.c.l.b16 %v686
    %v2104 = vunpack.c.h.b16 %v686
    %v2105 = vunpack.c.l.b16 %v687
    %v2106 = vunpack.c.h.b16 %v687
    %v2107 = vunpack.c.l.b16 %v688
    %v2108 = vunpack.c.h.b16 %v688
    %v2109 = vunpack.c.l.b16 %v689
    %v2110 = vunpack.c.h.b16 %v689
    %v2111 = vunpack.c.l.b16 %v690
    %v2112 = vunpack.c.h.b16 %v690
    %v2113 = vunpack.c.l.b16 %v691
    %v2114 = vunpack.c.h.b16 %v691
    %v2115 = vunpack.c.l.b16 %v692
    %v2116 = vunpack.c.h.b16 %v692
    %v2117 = vunpack.c.l.b16 %v693
    %v2118 = vunpack.c.h.b16 %v693
    %v2119 = vunpack.c.l.b16 %v694
    %v2120 = vunpack.c.h.b16 %v694
    %v2121 = vunpack.c.l.b16 %v695
    %v2122 = vunpack.c.h.b16 %v695
    %v2123 = vunpack.c.l.b16 %v696
    %v2124 = vunpack.c.h.b16 %v696
    %v2125 = vunpack.c.l.b16 %v697
    %v2126 = vunpack.c.h.b16 %v697
    %v2127 = vunpack.c.l.b16 %v698
    %v2128 = vunpack.c.h.b16 %v698
    %v2129 = vunpack.c.l.b16 %v699
    %v2130 = vunpack.c.h.b16 %v699
    %v2131 = vunpack.c.l.b16 %v700
    %v2132 = vunpack.c.h.b16 %v700
    %v2133 = vunpack.c.l.b16 %v701
    %v2134 = vunpack.c.h.b16 %v701
    %v2135 = vunpack.c.l.b16 %v702
    %v2136 = vunpack.c.h.b16 %v702
    %v2137 = vunpack.c.l.b16 %v703
    %v2138 = vunpack.c.h.b16 %v703
    %v2139 = vunpack.c.l.b16 %v704
    %v2140 = vunpack.c.h.b16 %v704
    %v2141 = vunpack.c.l.b16 %v705
    %v2142 = vunpack.c.h.b16 %v705
    %v2143 = vunpack.c.l.b16 %v706
    %v2144 = vunpack.c.h.b16 %v706
    %v2145 = vunpack.c.l.b16 %v707
    %v2146 = vunpack.c.h.b16 %v707
    %v2147 = vunpack.c.l.b16 %v708
    %v2148 = vunpack.c.h.b16 %v708
    %v2149 = vunpack.c.l.b16 %v709
    %v2150 = vunpack.c.h.b16 %v709
    %v2151 = vunpack.c.l.b16 %v710
    %v2152 = vunpack.c.h.b16 %v710
    %v2153 = vunpack.c.l.b16 %v711
    %v2154 = vunpack.c.h.b16 %v711
    %v2155 = vunpack.c.l.b16 %v712
    %v2156 = vunpack.c.h.b16 %v712
    %v2157 = vunpack.c.l.b16 %v713
    %v2158 = vunpack.c.h.b16 %v713
    %v2159 = vunpack.c.l.b16 %v714
    %v2160 = vunpack.c.h.b16 %v714
    %v2161 = vunpack.c.l.b16 %v715
    %v2162 = vunpack.c.h.b16 %v715
    %v2163 = vunpack.c.l.b16 %v716
    %v2164 = vunpack.c.h.b16 %v716
    %v2165 = vunpack.c.l.b16 %v717
    %v2166 = vunpack.c.h.b16 %v717
    %v2167 = vunpack.c.l.b16 %v718
    %v2168 = vunpack.c.h.b16 %v718
    %v2169 = vunpack.c.l.b16 %v719
    %v2170 = vunpack.c.h.b16 %v719
    %v2171 = vunpack.c.l.b16 %v720
    %v2172 = vunpack.c.h.b16 %v720
    %v2173 = vunpack.c.l.b16 %v721
    %v2174 = vunpack.c.h.b16 %v721
    %v2175 = vunpack.c.l.b16 %v722
    %v2176 = vunpack.c.h.b16 %v722
    %v2177 = vunpack.c.l.b16 %v723
    %v2178 = vunpack.c.h.b16 %v723
    %v2179 = vunpack.c.l.b16 %v724
    %v2180 = vunpack.c.h.b16 %v724
    %v2181 = vunpack.c.l.b16 %v725
    %v2182 = vunpack.c.h.b16 %v725
    %v2183 = vunpack.c.l.b16 %v726
    %v2184 = vunpack.c.h.b16 %v726
    %v2185 = vunpack.c.l.b16 %v727
    %v2186 = vunpack.c.h.b16 %v727
    %v2187 = vunpack.c.l.b16 %v728
    %v2188 = vunpack.c.h.b16 %v728
    %v2189 = vunpack.c.l.b16 %v729
    %v2190 = vunpack.c.h.b16 %v729
    %v2191 = vunpack.c.l.b16 %v730
    %v2192 = vunpack.c.h.b16 %v730
    %v2193 = vunpack.c.l.b16 %v731
    %v2194 = vunpack.c.h.b16 %v731
    %v2195 = vunpack.c.l.b16 %v732
    %v2196 = vunpack.c.h.b16 %v732
    %v2197 = vunpack.c.l.b16 %v733
    %v2198 = vunpack.c.h.b16 %v733
    %v2199 = vunpack.c.l.b16 %v734
    %v2200 = vunpack.c.h.b16 %v734
    %v2201 = vunpack.c.l.b16 %v735
    %v2202 = vunpack.c.h.b16 %v735
    %v2203 = vunpack.c.l.b16 %v736
    %v2204 = vunpack.c.h.b16 %v736
    %v2205 = vunpack.c.l.b16 %v737
    %v2206 = vunpack.c.h.b16 %v737
    %v2207 = vunpack.c.l.b16 %v738
    %v2208 = vunpack.c.h.b16 %v738
    %v2209 = vunpack.c.l.b16 %v739
    %v2210 = vunpack.c.h.b16 %v739
    %v2211 = vunpack.c.l.b16 %v740
    %v2212 = vunpack.c.h.b16 %v740
    %v2213 = vunpack.c.l.b16 %v741
    %v2214 = vunpack.c.h.b16 %v741
    %v2215 = vunpack.c.l.b16 %v742
    %v2216 = vunpack.c.h.b16 %v742
    %v2217 = vunpack.c.l.b16 %v743
    %v2218 = vunpack.c.h.b16 %v743
    %v2219 = vunpack.c.l.b16 %v744
    %v2220 = vunpack.c.h.b16 %v744
    %v2221 = vunpack.c.l.b16 %v745
    %v2222 = vunpack.c.h.b16 %v745
    %v2223 = vunpack.c.l.b16 %v746
    %v2224 = vunpack.c.h.b16 %v746
    %v2225 = vunpack.c.l.b16 %v747
    %v2226 = vunpack.c.h.b16 %v747
    %v2227 = vunpack.c.l.b16 %v748
    %v2228 = vunpack.c.h.b16 %v748
    %v2229 = vunpack.c.l.b16 %v749
    %v2230 = vunpack.c.h.b16 %v749
    %v2231 = vunpack.c.l.b16 %v750
    %v2232 = vunpack.c.h.b16 %v750
    %v2233 = vunpack.c.l.b16 %v751
    %v2234 = vunpack.c.h.b16 %v751
    %v2235 = vunpack.c.l.b16 %v752
    %v2236 = vunpack.c.h.b16 %v752
    %v2237 = vunpack.c.l.b16 %v753
    %v2238 = vunpack.c.h.b16 %v753
    %v2239 = vunpack.c.l.b16 %v754
    %v2240 = vunpack.c.h.b16 %v754
    %v2241 = vunpack.c.l.b16 %v755
    %v2242 = vunpack.c.h.b16 %v755
    %v2243 = vunpack.c.l.b16 %v756
    %v2244 = vunpack.c.h.b16 %v756
    %v2245 = vunpack.c.l.b16 %v757
    %v2246 = vunpack.c.h.b16 %v757
    %v2247 = vunpack.c.l.b16 %v758
    %v2248 = vunpack.c.h.b16 %v758
    %v2249 = vunpack.c.l.b16 %v759
    %v2250 = vunpack.c.h.b16 %v759
    %v2251 = vunpack.c.l.b16 %v760
    %v2252 = vunpack.c.h.b16 %v760
    %v2253 = vunpack.c.l.b16 %v761
    %v2254 = vunpack.c.h.b16 %v761
    %v2255 = vunpack.c.l.b16 %v762
    %v2256 = vunpack.c.h.b16 %v762
    %v2257 = vunpack.c.l.b16 %v763
    %v2258 = vunpack.c.h.b16 %v763
    %v2259 = vunpack.c.l.b16 %v764
    %v2260 = vunpack.c.h.b16 %v764
    %v2261 = vunpack.c.l.b16 %v765
    %v2262 = vunpack.c.h.b16 %v765
    %v2263 = vunpack.c.l.b16 %v766
    %v2264 = vunpack.c.h.b16 %v766
    %v2265 = vunpack.c.l.b16 %v767
    %v2266 = vunpack.c.h.b16 %v767
    %v2267 = vunpack.c.l.b16 %v768
    %v2268 = vunpack.c.h.b16 %v768
    %v2269 = vunpack.c.l.b16 %v769
    %v2270 = vunpack.c.h.b16 %v769
    %v2271 = vunpack.c.l.b16 %v770
    %v2272 = vunpack.c.h.b16 %v770
    %v2273 = vunpack.c.l.b16 %v771
    %v2274 = vunpack.c.h.b16 %v771
    %v2275 = vunpack.c.l.b16 %v772
    %v2276 = vunpack.c.h.b16 %v772
    %v2277 = vunpack.c.l.b16 %v773
    %v2278 = vunpack.c.h.b16 %v773
    %v2279 = vunpack.c.l.b16 %v774
    %v2280 = vunpack.c.h.b16 %v774
    %v2281 = vunpack.c.l.b16 %v775
    %v2282 = vunpack.c.h.b16 %v775
    %v2283 = vunpack.c.l.b16 %v776
    %v2284 = vunpack.c.h.b16 %v776
    %v2285 = vunpack.c.l.b16 %v777
    %v2286 = vunpack.c.h.b16 %v777
    %v2287 = vunpack.c.l.b16 %v778
    %v2288 = vunpack.c.h.b16 %v778
    %v2289 = vunpack.c.l.b16 %v779
    %v2290 = vunpack.c.h.b16 %v779
    %v2291 = vunpack.c.l.b16 %v780
    %v2292 = vunpack.c.h.b16 %v780
    %v2293 = vunpack.c.l.b16 %v781
    %v2294 = vunpack.c.h.b16 %v781
    %v2295 = vunpack.c.l.b16 %v782
    %v2296 = vunpack.c.h.b16 %v782
    %v2297 = vunpack.c.l.b16 %v783
    %v2298 = vunpack.c.h.b16 %v783
    %v2299 = vunpack.c.l.b16 %v784
    %v2300 = vunpack.c.h.b16 %v784
    %v2301 = vunpack.c.l.b16 %v785
    %v2302 = vunpack.c.h.b16 %v785
    %v2303 = vunpack.c.l.b16 %v786
    %v2304 = vunpack.c.h.b16 %v786
    %v2305 = vunpack.c.l.b16 %v787
    %v2306 = vunpack.c.h.b16 %v787
    %v2307 = vunpack.c.l.b16 %v788
    %v2308 = vunpack.c.h.b16 %v788
    %v2309 = vunpack.c.l.b16 %v789
    %v2310 = vunpack.c.h.b16 %v789
    %v2311 = vunpack.c.l.b16 %v790
    %v2312 = vunpack.c.h.b16 %v790
    %v2313 = vunpack.c.l.b16 %v791
    %v2314 = vunpack.c.h.b16 %v791
    %v2315 = vunpack.c.l.b16 %v792
    %v2316 = vunpack.c.h.b16 %v792
    %v2317 = vunpack.c.l.b16 %v793
    %v2318 = vunpack.c.h.b16 %v793
    %v2319 = vunpack.c.l.b16 %v794
    %v2320 = vunpack.c.h.b16 %v794
    %v2321 = vunpack.c.l.b16 %v795
    %v2322 = vunpack.c.h.b16 %v795
    %v2323 = vunpack.c.l.b16 %v796
    %v2324 = vunpack.c.h.b16 %v796
    %v2325 = vunpack.c.l.b16 %v797
    %v2326 = vunpack.c.h.b16 %v797
    %v2327 = vunpack.c.l.b16 %v798
    %v2328 = vunpack.c.h.b16 %v798
    %v2329 = vunpack.c.l.b16 %v799
    %v2330 = vunpack.c.h.b16 %v799
    %v2331 = vunpack.c.l.b16 %v800
    %v2332 = vunpack.c.h.b16 %v800
    %v2333 = vunpack.c.l.b16 %v801
    %v2334 = vunpack.c.h.b16 %v801
    %v2335 = vunpack.c.l.b16 %v802
    %v2336 = vunpack.c.h.b16 %v802
    %v2337 = vunpack.c.l.b16 %v803
    %v2338 = vunpack.c.h.b16 %v803
    %v2339 = vunpack.c.l.b16 %v804
    %v2340 = vunpack.c.h.b16 %v804
    %v2341 = vunpack.c.l.b16 %v805
    %v2342 = vunpack.c.h.b16 %v805
    %v2343 = vunpack.c.l.b16 %v806
    %v2344 = vunpack.c.h.b16 %v806
    %v2345 = vunpack.c.l.b16 %v807
    %v2346 = vunpack.c.h.b16 %v807
    %v2347 = vunpack.c.l.b16 %v808
    %v2348 = vunpack.c.h.b16 %v808
    %v2349 = vunpack.c.l.b16 %v809
    %v2350 = vunpack.c.h.b16 %v809
    %v2351 = vunpack.c.l.b16 %v810
    %v2352 = vunpack.c.h.b16 %v810
    %v2353 = vunpack.c.l.b16 %v811
    %v2354 = vunpack.c.h.b16 %v811
    %v2355 = vunpack.c.l.b16 %v812
    %v2356 = vunpack.c.h.b16 %v812
    %v2357 = vunpack.c.l.b16 %v813
    %v2358 = vunpack.c.h.b16 %v813
    %v2359 = vunpack.c.l.b16 %v814
    %v2360 = vunpack.c.h.b16 %v814
    %v2361 = vunpack.c.l.b16 %v815
    %v2362 = vunpack.c.h.b16 %v815
    %v2363 = vunpack.c.l.b16 %v816
    %v2364 = vunpack.c.h.b16 %v816
    %v2365 = vunpack.c.l.b16 %v817
    %v2366 = vunpack.c.h.b16 %v817
    %v2367 = vunpack.c.l.b16 %v818
    %v2368 = vunpack.c.h.b16 %v818
    %v2369 = vunpack.c.l.b16 %v819
    %v2370 = vunpack.c.h.b16 %v819
    %v2371 = vunpack.c.l.b16 %v820
    %v2372 = vunpack.c.h.b16 %v820
    %v2373 = vunpack.c.l.b16 %v821
    %v2374 = vunpack.c.h.b16 %v821
    %v2375 = vunpack.c.l.b16 %v822
    %v2376 = vunpack.c.h.b16 %v822
    %v2377 = vunpack.c.l.b16 %v823
    %v2378 = vunpack.c.h.b16 %v823
    %v2379 = vunpack.c.l.b16 %v824
    %v2380 = vunpack.c.h.b16 %v824
    %v2381 = vunpack.c.l.b16 %v825
    %v2382 = vunpack.c.h.b16 %v825
    %v2383 = vunpack.c.l.b16 %v826
    %v2384 = vunpack.c.h.b16 %v826
    %v2385 = vunpack.c.l.b16 %v827
    %v2386 = vunpack.c.h.b16 %v827
    %v2387 = vunpack.c.l.b16 %v828
    %v2388 = vunpack.c.h.b16 %v828
    %v2389 = vunpack.c.l.b16 %v829
    %v2390 = vunpack.c.h.b16 %v829
    %v2391 = vunpack.c.l.b16 %v830
    %v2392 = vunpack.c.h.b16 %v830
    %v2393 = vunpack.c.l.b16 %v831
    %v2394 = vunpack.c.h.b16 %v831
    %v2395 = vunpack.c.l.b16 %v832
    %v2396 = vunpack.c.h.b16 %v832
    %v2397 = vunpack.c.l.b16 %v833
    %v2398 = vunpack.c.h.b16 %v833
    %v2399 = vunpack.c.l.b16 %v834
    %v2400 = vunpack.c.h.b16 %v834
    %v2401 = vunpack.c.l.b16 %v835
    %v2402 = vunpack.c.h.b16 %v835
    %v2403 = vunpack.c.l.b16 %v836
    %v2404 = vunpack.c.h.b16 %v836
    %v2405 = vunpack.c.l.b16 %v837
    %v2406 = vunpack.c.h.b16 %v837
    %v2407 = vunpack.c.l.b16 %v838
    %v2408 = vunpack.c.h.b16 %v838
    %v2409 = vunpack.c.l.b16 %v839
    %v2410 = vunpack.c.h.b16 %v839
    %v2411 = vunpack.c.l.b16 %v840
    %v2412 = vunpack.c.h.b16 %v840
    %v2413 = vunpack.c.l.b16 %v841
    %v2414 = vunpack.c.h.b16 %v841
    %v2415 = vunpack.c.l.b16 %v842
    %v2416 = vunpack.c.h.b16 %v842
    %v2417 = vunpack.c.l.b16 %v843
    %v2418 = vunpack.c.h.b16 %v843
    %v2419 = vunpack.c.l.b16 %v844
    %v2420 = vunpack.c.h.b16 %v844
    %v2421 = vunpack.c.l.b16 %v845
    %v2422 = vunpack.c.h.b16 %v845
    %v2423 = vunpack.c.l.b16 %v846
    %v2424 = vunpack.c.h.b16 %v846
    %v2425 = vpack.c.b16 %v1409, %v1401
    %v2426 = vpack.c.b16 %v1410, %v1402
    %v2427 = vpack.c.b16 %v1411, %v1403
    %v2428 = vpack.c.b16 %v1412, %v1404
    %v2429 = vpack.c.b16 %v1413, %v1405
    %v2430 = vpack.c.b16 %v1414, %v1406
    %v2431 = vpack.c.b16 %v1415, %v1407
    %v2432 = vpack.c.b16 %v1416, %v1408
    %v2433 = vpack.c.b16 %v1425, %v1417
    %v2434 = vpack.c.b16 %v1426, %v1418
    %v2435 = vpack.c.b16 %v1427, %v1419
    %v2436 = vpack.c.b16 %v1428, %v1420
    %v2437 = vpack.c.b16 %v1429, %v1421
    %v2438 = vpack.c.b16 %v1430, %v1422
    %v2439 = vpack.c.b16 %v1431, %v1423
    %v2440 = vpack.c.b16 %v1432, %v1424
    %v2441 = vpack.c.b16 %v1441, %v1433
    %v2442 = vpack.c.b16 %v1442, %v1434
    %v2443 = vpack.c.b16 %v1443, %v1435
    %v2444 = vpack.c.b16 %v1444, %v1436
    %v2445 = vpack.c.b16 %v1445, %v1437
    %v2446 = vpack.c.b16 %v1446, %v1438
    %v2447 = vpack.c.b16 %v1447, %v1439
    %v2448 = vpack.c.b16 %v1448, %v1440
    %v2449 = vpack.c.b16 %v1457, %v1449
    %v2450 = vpack.c.b16 %v1458, %v1450
    %v2451 = vpack.c.b16 %v1459, %v1451
    %v2452 = vpack.c.b16 %v1460, %v1452
    %v2453 = vpack.c.b16 %v1461, %v1453
    %v2454 = vpack.c.b16 %v1462, %v1454
    %v2455 = vpack.c.b16 %v1463, %v1455
    %v2456 = vpack.c.b16 %v1464, %v1456
    %v2457 = vpack.c.b16 %v1473, %v1465
    %v2458 = vpack.c.b16 %v1474, %v1466
    %v2459 = vpack.c.b16 %v1475, %v1467
    %v2460 = vpack.c.b16 %v1476, %v1468
    %v2461 = vpack.c.b16 %v1477, %v1469
    %v2462 = vpack.c.b16 %v1478, %v1470
    %v2463 = vpack.c.b16 %v1479, %v1471
    %v2464 = vpack.c.b16 %v1480, %v1472
    %v2465 = vpack.c.b16 %v1489, %v1481
    %v2466 = vpack.c.b16 %v1490, %v1482
    %v2467 = vpack.c.b16 %v1491, %v1483
    %v2468 = vpack.c.b16 %v1492, %v1484
    %v2469 = vpack.c.b16 %v1493, %v1485
    %v2470 = vpack.c.b16 %v1494, %v1486
    %v2471 = vpack.c.b16 %v1495, %v1487
    %v2472 = vpack.c.b16 %v1496, %v1488
    %v2473 = vpack.c.b16 %v1505, %v1497
    %v2474 = vpack.c.b16 %v1506, %v1498
    %v2475 = vpack.c.b16 %v1507, %v1499
    %v2476 = vpack.c.b16 %v1508, %v1500
    %v2477 = vpack.c.b16 %v1509, %v1501
    %v2478 = vpack.c.b16 %v1510, %v1502
    %v2479 = vpack.c.b16 %v1511, %v1503
    %v2480 = vpack.c.b16 %v1512, %v1504
    %v2481 = vpack.c.b16 %v1521, %v1513
    %v2482 = vpack.c.b16 %v1522, %v1514
    %v2483 = vpack.c.b16 %v1523, %v1515
    %v2484 = vpack.c.b16 %v1524, %v1516
    %v2485 = vpack.c.b16 %v1525, %v1517
    %v2486 = vpack.c.b16 %v1526, %v1518
    %v2487 = vpack.c.b16 %v1527, %v1519
    %v2488 = vpack.c.b16 %v1528, %v1520
    %v2489 = vpack.c.b16 %v1537, %v1529
    %v2490 = vpack.c.b16 %v1538, %v1530
    %v2491 = vpack.c.b16 %v1539, %v1531
    %v2492 = vpack.c.b16 %v1540, %v1532
    %v2493 = vpack.c.b16 %v1541, %v1533
    %v2494 = vpack.c.b16 %v1542, %v1534
    %v2495 = vpack.c.b16 %v1543, %v1535
    %v2496 = vpack.c.b16 %v1544, %v1536
    %v2497 = vpack.c.b16 %v1553, %v1545
    %v2498 = vpack.c.b16 %v1554, %v1546
    %v2499 = vpack.c.b16 %v1555, %v1547
    %v2500 = vpack.c.b16 %v1556, %v1548
    %v2501 = vpack.c.b16 %v1557, %v1549
    %v2502 = vpack.c.b16 %v1558, %v1550
    %v2503 = vpack.c.b16 %v1559, %v1551
    %v2504 = vpack.c.b16 %v1560, %v1552
    %v2505 = vpack.c.b16 %v1569, %v1561
    %v2506 = vpack.c.b16 %v1570, %v1562
    %v2507 = vpack.c.b16 %v1571, %v1563
    %v2508 = vpack.c.b16 %v1572, %v1564
    %v2509 = vpack.c.b16 %v1573, %v1565
    %v2510 = vpack.c.b16 %v1574, %v1566
    %v2511 = vpack.c.b16 %v1575, %v1567
    %v2512 = vpack.c.b16 %v1576, %v1568
    %v2513 = vpack.c.b16 %v1585, %v1577
    %v2514 = vpack.c.b16 %v1586, %v1578
    %v2515 = vpack.c.b16 %v1587, %v1579
    %v2516 = vpack.c.b16 %v1588, %v1580
    %v2517 = vpack.c.b16 %v1589, %v1581
    %v2518 = vpack.c.b16 %v1590, %v1582
    %v2519 = vpack.c.b16 %v1591, %v1583
    %v2520 = vpack.c.b16 %v1592, %v1584
    %v2521 = vpack.c.b16 %v1601, %v1593
    %v2522 = vpack.c.b16 %v1602, %v1594
    %v2523 = vpack.c.b16 %v1603, %v1595
    %v2524 = vpack.c.b16 %v1604, %v1596
    %v2525 = vpack.c.b16 %v1605, %v1597
    %v2526 = vpack.c.b16 %v1606, %v1598
    %v2527 = vpack.c.b16 %v1607, %v1599
    %v2528 = vpack.c.b16 %v1608, %v1600
    %v2529 = vpack.c.b16 %v1617, %v1609
    %v2530 = vpack.c.b16 %v1618, %v1610
    %v2531 = vpack.c.b16 %v1619, %v1611
    %v2532 = vpack.c.b16 %v1620, %v1612
    %v2533 = vpack.c.b16 %v1621, %v1613
    %v2534 = vpack.c.b16 %v1622, %v1614
    %v2535 = vpack.c.b16 %v1623, %v1615
    %v2536 = vpack.c.b16 %v1624, %v1616
    %v2537 = vpack.c.b16 %v1633, %v1625
    %v2538 = vpack.c.b16 %v1634, %v1626
    %v2539 = vpack.c.b16 %v1635, %v1627
    %v2540 = vpack.c.b16 %v1636, %v1628
    %v2541 = vpack.c.b16 %v1637, %v1629
    %v2542 = vpack.c.b16 %v1638, %v1630
    %v2543 = vpack.c.b16 %v1639, %v1631
    %v2544 = vpack.c.b16 %v1640, %v1632
    %v2545 = vpack.c.b16 %v1649, %v1641
    %v2546 = vpack.c.b16 %v1650, %v1642
    %v2547 = vpack.c.b16 %v1651, %v1643
    %v2548 = vpack.c.b16 %v1652, %v1644
    %v2549 = vpack.c.b16 %v1653, %v1645
    %v2550 = vpack.c.b16 %v1654, %v1646
    %v2551 = vpack.c.b16 %v1655, %v1647
    %v2552 = vpack.c.b16 %v1656, %v1648
    %v2553 = vpack.c.b16 %v1665, %v1657
    %v2554 = vpack.c.b16 %v1666, %v1658
    %v2555 = vpack.c.b16 %v1667, %v1659
    %v2556 = vpack.c.b16 %v1668, %v1660
    %v2557 = vpack.c.b16 %v1669, %v1661
    %v2558 = vpack.c.b16 %v1670, %v1662
    %v2559 = vpack.c.b16 %v1671, %v1663
    %v2560 = vpack.c.b16 %v1672, %v1664
    %v2561 = vpack.c.b16 %v1681, %v1673
    %v2562 = vpack.c.b16 %v1682, %v1674
    %v2563 = vpack.c.b16 %v1683, %v1675
    %v2564 = vpack.c.b16 %v1684, %v1676
    %v2565 = vpack.c.b16 %v1685, %v1677
    %v2566 = vpack.c.b16 %v1686, %v1678
    %v2567 = vpack.c.b16 %v1687, %v1679
    %v2568 = vpack.c.b16 %v1688, %v1680
    %v2569 = vpack.c.b16 %v1697, %v1689
    %v2570 = vpack.c.b16 %v1698, %v1690
    %v2571 = vpack.c.b16 %v1699, %v1691
    %v2572 = vpack.c.b16 %v1700, %v1692
    %v2573 = vpack.c.b16 %v1701, %v1693
    %v2574 = vpack.c.b16 %v1702, %v1694
    %v2575 = vpack.c.b16 %v1703, %v1695
    %v2576 = vpack.c.b16 %v1704, %v1696
    %v2577 = vpack.c.b16 %v1713, %v1705
    %v2578 = vpack.c.b16 %v1714, %v1706
    %v2579 = vpack.c.b16 %v1715, %v1707
    %v2580 = vpack.c.b16 %v1716, %v1708
    %v2581 = vpack.c.b16 %v1717, %v1709
    %v2582 = vpack.c.b16 %v1718, %v1710
    %v2583 = vpack.c.b16 %v1719, %v1711
    %v2584 = vpack.c.b16 %v1720, %v1712
    %v2585 = vpack.c.b16 %v1729, %v1721
    %v2586 = vpack.c.b16 %v1730, %v1722
    %v2587 = vpack.c.b16 %v1731, %v1723
    %v2588 = vpack.c.b16 %v1732, %v1724
    %v2589 = vpack.c.b16 %v1733, %v1725
    %v2590 = vpack.c.b16 %v1734, %v1726
    %v2591 = vpack.c.b16 %v1735, %v1727
    %v2592 = vpack.c.b16 %v1736, %v1728
    %v2593 = vpack.c.b16 %v1745, %v1737
    %v2594 = vpack.c.b16 %v1746, %v1738
    %v2595 = vpack.c.b16 %v1747, %v1739
    %v2596 = vpack.c.b16 %v1748, %v1740
    %v2597 = vpack.c.b16 %v1749, %v1741
    %v2598 = vpack.c.b16 %v1750, %v1742
    %v2599 = vpack.c.b16 %v1751, %v1743
    %v2600 = vpack.c.b16 %v1752, %v1744
    %v2601 = vpack.c.b16 %v1761, %v1753
    %v2602 = vpack.c.b16 %v1762, %v1754
    %v2603 = vpack.c.b16 %v1763, %v1755
    %v2604 = vpack.c.b16 %v1764, %v1756
    %v2605 = vpack.c.b16 %v1765, %v1757
    %v2606 = vpack.c.b16 %v1766, %v1758
    %v2607 = vpack.c.b16 %v1767, %v1759
    %v2608 = vpack.c.b16 %v1768, %v1760
    %v2609 = vpack.c.b16 %v1777, %v1769
    %v2610 = vpack.c.b16 %v1778, %v1770
    %v2611 = vpack.c.b16 %v1779, %v1771
    %v2612 = vpack.c.b16 %v1780, %v1772
    %v2613 = vpack.c.b16 %v1781, %v1773
    %v2614 = vpack.c.b16 %v1782, %v1774
    %v2615 = vpack.c.b16 %v1783, %v1775
    %v2616 = vpack.c.b16 %v1784, %v1776
    %v2617 = vpack.c.b16 %v1793, %v1785
    %v2618 = vpack.c.b16 %v1794, %v1786
    %v2619 = vpack.c.b16 %v1795, %v1787
    %v2620 = vpack.c.b16 %v1796, %v1788
    %v2621 = vpack.c.b16 %v1797, %v1789
    %v2622 = vpack.c.b16 %v1798, %v1790
    %v2623 = vpack.c.b16 %v1799, %v1791
    %v2624 = vpack.c.b16 %v1800, %v1792
    %v2625 = vpack.c.b16 %v1809, %v1801
    %v2626 = vpack.c.b16 %v1810, %v1802
    %v2627 = vpack.c.b16 %v1811, %v1803
    %v2628 = vpack.c.b16 %v1812, %v1804
    %v2629 = vpack.c.b16 %v1813, %v1805
    %v2630 = vpack.c.b16 %v1814, %v1806
    %v2631 = vpack.c.b16 %v1815, %v1807
    %v2632 = vpack.c.b16 %v1816, %v1808
    %v2633 = vpack.c.b16 %v1825, %v1817
    %v2634 = vpack.c.b16 %v1826, %v1818
    %v2635 = vpack.c.b16 %v1827, %v1819
    %v2636 = vpack.c.b16 %v1828, %v1820
    %v2637 = vpack.c.b16 %v1829, %v1821
    %v2638 = vpack.c.b16 %v1830, %v1822
    %v2639 = vpack.c.b16 %v1831, %v1823
    %v2640 = vpack.c.b16 %v1832, %v1824
    %v2641 = vpack.c.b16 %v1841, %v1833
    %v2642 = vpack.c.b16 %v1842, %v1834
    %v2643 = vpack.c.b16 %v1843, %v1835
    %v2644 = vpack.c.b16 %v1844, %v1836
    %v2645 = vpack.c.b16 %v1845, %v1837
    %v2646 = vpack.c.b16 %v1846, %v1838
    %v2647 = vpack.c.b16 %v1847, %v1839
    %v2648 = vpack.c.b16 %v1848, %v1840
    %v2649 = vpack.c.b16 %v1857, %v1849
    %v2650 = vpack.c.b16 %v1858, %v1850
    %v2651 = vpack.c.b16 %v1859, %v1851
    %v2652 = vpack.c.b16 %v1860, %v1852
    %v2653 = vpack.c.b16 %v1861, %v1853
    %v2654 = vpack.c.b16 %v1862, %v1854
    %v2655 = vpack.c.b16 %v1863, %v1855
    %v2656 = vpack.c.b16 %v1864, %v1856
    %v2657 = vpack.c.b16 %v1873, %v1865
    %v2658 = vpack.c.b16 %v1874, %v1866
    %v2659 = vpack.c.b16 %v1875, %v1867
    %v2660 = vpack.c.b16 %v1876, %v1868
    %v2661 = vpack.c.b16 %v1877, %v1869
    %v2662 = vpack.c.b16 %v1878, %v1870
    %v2663 = vpack.c.b16 %v1879, %v1871
    %v2664 = vpack.c.b16 %v1880, %v1872
    %v2665 = vpack.c.b16 %v1889, %v1881
    %v2666 = vpack.c.b16 %v1890, %v1882
    %v2667 = vpack.c.b16 %v1891, %v1883
    %v2668 = vpack.c.b16 %v1892, %v1884
    %v2669 = vpack.c.b16 %v1893, %v1885
    %v2670 = vpack.c.b16 %v1894, %v1886
    %v2671 = vpack.c.b16 %v1895, %v1887
    %v2672 = vpack.c.b16 %v1896, %v1888
    %v2673 = vpack.c.b16 %v1905, %v1897
    %v2674 = vpack.c.b16 %v1906, %v1898
    %v2675 = vpack.c.b16 %v1907, %v1899
    %v2676 = vpack.c.b16 %v1908, %v1900
    %v2677 = vpack.c.b16 %v1909, %v1901
    %v2678 = vpack.c.b16 %v1910, %v1902
    %v2679 = vpack.c.b16 %v1911, %v1903
    %v2680 = vpack.c.b16 %v1912, %v1904
    %v2681 = vpack.c.b16 %v1921, %v1913
    %v2682 = vpack.c.b16 %v1922, %v1914
    %v2683 = vpack.c.b16 %v1923, %v1915
    %v2684 = vpack.c.b16 %v1924, %v1916
    %v2685 = vpack.c.b16 %v1925, %v1917
    %v2686 = vpack.c.b16 %v1926, %v1918
    %v2687 = vpack.c.b16 %v1927, %v1919
    %v2688 = vpack.c.b16 %v1928, %v1920
    %v2689 = vpack.c.b16 %v1937, %v1929
    %v2690 = vpack.c.b16 %v1938, %v1930
    %v2691 = vpack.c.b16 %v1939, %v1931
    %v2692 = vpack.c.b16 %v1940, %v1932
    %v2693 = vpack.c.b16 %v1941, %v1933
    %v2694 = vpack.c.b16 %v1942, %v1934
    %v2695 = vpack.c.b16 %v1943, %v1935
    %v2696 = vpack.c.b16 %v1944, %v1936
    %v2697 = vpack.c.b16 %v1953, %v1945
    %v2698 = vpack.c.b16 %v1954, %v1946
    %v2699 = vpack.c.b16 %v1955, %v1947
    %v2700 = vpack.c.b16 %v1956, %v1948
    %v2701 = vpack.c.b16 %v1957, %v1949
    %v2702 = vpack.c.b16 %v1958, %v1950
    %v2703 = vpack.c.b16 %v1959, %v1951
    %v2704 = vpack.c.b16 %v1960, %v1952
    %v2705 = vpack.c.b16 %v1969, %v1961
    %v2706 = vpack.c.b16 %v1970, %v1962
    %v2707 = vpack.c.b16 %v1971, %v1963
    %v2708 = vpack.c.b16 %v1972, %v1964
    %v2709 = vpack.c.b16 %v1973, %v1965
    %v2710 = vpack.c.b16 %v1974, %v1966
    %v2711 = vpack.c.b16 %v1975, %v1967
    %v2712 = vpack.c.b16 %v1976, %v1968
    %v2713 = vpack.c.b16 %v1985, %v1977
    %v2714 = vpack.c.b16 %v1986, %v1978
    %v2715 = vpack.c.b16 %v1987, %v1979
    %v2716 = vpack.c.b16 %v1988, %v1980
    %v2717 = vpack.c.b16 %v1989, %v1981
    %v2718 = vpack.c.b16 %v1990, %v1982
    %v2719 = vpack.c.b16 %v1991, %v1983
    %v2720 = vpack.c.b16 %v1992, %v1984
    %v2721 = vpack.c.b16 %v2001, %v1993
    %v2722 = vpack.c.b16 %v2002, %v1994
    %v2723 = vpack.c.b16 %v2003, %v1995
    %v2724 = vpack.c.b16 %v2004, %v1996
    %v2725 = vpack.c.b16 %v2005, %v1997
    %v2726 = vpack.c.b16 %v2006, %v1998
    %v2727 = vpack.c.b16 %v2007, %v1999
    %v2728 = vpack.c.b16 %v2008, %v2000
    %v2729 = vpack.c.b16 %v2017, %v2009
    %v2730 = vpack.c.b16 %v2018, %v2010
    %v2731 = vpack.c.b16 %v2019, %v2011
    %v2732 = vpack.c.b16 %v2020, %v2012
    %v2733 = vpack.c.b16 %v2021, %v2013
    %v2734 = vpack.c.b16 %v2022, %v2014
    %v2735 = vpack.c.b16 %v2023, %v2015
    %v2736 = vpack.c.b16 %v2024, %v2016
    %v2737 = vpack.c.b16 %v2033, %v2025
    %v2738 = vpack.c.b16 %v2034, %v2026
    %v2739 = vpack.c.b16 %v2035, %v2027
    %v2740 = vpack.c.b16 %v2036, %v2028
    %v2741 = vpack.c.b16 %v2037, %v2029
    %v2742 = vpack.c.b16 %v2038, %v2030
    %v2743 = vpack.c.b16 %v2039, %v2031
    %v2744 = vpack.c.b16 %v2040, %v2032
    %v2745 = vpack.c.b16 %v2049, %v2041
    %v2746 = vpack.c.b16 %v2050, %v2042
    %v2747 = vpack.c.b16 %v2051, %v2043
    %v2748 = vpack.c.b16 %v2052, %v2044
    %v2749 = vpack.c.b16 %v2053, %v2045
    %v2750 = vpack.c.b16 %v2054, %v2046
    %v2751 = vpack.c.b16 %v2055, %v2047
    %v2752 = vpack.c.b16 %v2056, %v2048
    %v2753 = vpack.c.b16 %v2065, %v2057
    %v2754 = vpack.c.b16 %v2066, %v2058
    %v2755 = vpack.c.b16 %v2067, %v2059
    %v2756 = vpack.c.b16 %v2068, %v2060
    %v2757 = vpack.c.b16 %v2069, %v2061
    %v2758 = vpack.c.b16 %v2070, %v2062
    %v2759 = vpack.c.b16 %v2071, %v2063
    %v2760 = vpack.c.b16 %v2072, %v2064
    %v2761 = vpack.c.b16 %v2081, %v2073
    %v2762 = vpack.c.b16 %v2082, %v2074
    %v2763 = vpack.c.b16 %v2083, %v2075
    %v2764 = vpack.c.b16 %v2084, %v2076
    %v2765 = vpack.c.b16 %v2085, %v2077
    %v2766 = vpack.c.b16 %v2086, %v2078
    %v2767 = vpack.c.b16 %v2087, %v2079
    %v2768 = vpack.c.b16 %v2088, %v2080
    %v2769 = vpack.c.b16 %v2097, %v2089
    %v2770 = vpack.c.b16 %v2098, %v2090
    %v2771 = vpack.c.b16 %v2099, %v2091
    %v2772 = vpack.c.b16 %v2100, %v2092
    %v2773 = vpack.c.b16 %v2101, %v2093
    %v2774 = vpack.c.b16 %v2102, %v2094
    %v2775 = vpack.c.b16 %v2103, %v2095
    %v2776 = vpack.c.b16 %v2104, %v2096
    %v2777 = vpack.c.b16 %v2113, %v2105
    %v2778 = vpack.c.b16 %v2114, %v2106
    %v2779 = vpack.c.b16 %v2115, %v2107
    %v2780 = vpack.c.b16 %v2116, %v2108
    %v2781 = vpack.c.b16 %v2117, %v2109
    %v2782 = vpack.c.b16 %v2118, %v2110
    %v2783 = vpack.c.b16 %v2119, %v2111
    %v2784 = vpack.c.b16 %v2120, %v2112
    %v2785 = vpack.c.b16 %v2129, %v2121
    %v2786 = vpack.c.b16 %v2130, %v2122
    %v2787 = vpack.c.b16 %v2131, %v2123
    %v2788 = vpack.c.b16 %v2132, %v2124
    %v2789 = vpack.c.b16 %v2133, %v2125
    %v2790 = vpack.c.b16 %v2134, %v2126
    %v2791 = vpack.c.b16 %v2135, %v2127
    %v2792 = vpack.c.b16 %v2136, %v2128
    %v2793 = vpack.c.b16 %v2145, %v2137
    %v2794 = vpack.c.b16 %v2146, %v2138
    %v2795 = vpack.c.b16 %v2147, %v2139
    %v2796 = vpack.c.b16 %v2148, %v2140
    %v2797 = vpack.c.b16 %v2149, %v2141
    %v2798 = vpack.c.b16 %v2150, %v2142
    %v2799 = vpack.c.b16 %v2151, %v2143
    %v2800 = vpack.c.b16 %v2152, %v2144
    %v2801 = vpack.c.b16 %v2161, %v2153
    %v2802 = vpack.c.b16 %v2162, %v2154
    %v2803 = vpack.c.b16 %v2163, %v2155
    %v2804 = vpack.c.b16 %v2164, %v2156
    %v2805 = vpack.c.b16 %v2165, %v2157
    %v2806 = vpack.c.b16 %v2166, %v2158
    %v2807 = vpack.c.b16 %v2167, %v2159
    %v2808 = vpack.c.b16 %v2168, %v2160
    %v2809 = vpack.c.b16 %v2177, %v2169
    %v2810 = vpack.c.b16 %v2178, %v2170
    %v2811 = vpack.c.b16 %v2179, %v2171
    %v2812 = vpack.c.b16 %v2180, %v2172
    %v2813 = vpack.c.b16 %v2181, %v2173
    %v2814 = vpack.c.b16 %v2182, %v2174
    %v2815 = vpack.c.b16 %v2183, %v2175
    %v2816 = vpack.c.b16 %v2184, %v2176
    %v2817 = vpack.c.b16 %v2193, %v2185
    %v2818 = vpack.c.b16 %v2194, %v2186
    %v2819 = vpack.c.b16 %v2195, %v2187
    %v2820 = vpack.c.b16 %v2196, %v2188
    %v2821 = vpack.c.b16 %v2197, %v2189
    %v2822 = vpack.c.b16 %v2198, %v2190
    %v2823 = vpack.c.b16 %v2199, %v2191
    %v2824 = vpack.c.b16 %v2200, %v2192
    %v2825 = vpack.c.b16 %v2209, %v2201
    %v2826 = vpack.c.b16 %v2210, %v2202
    %v2827 = vpack.c.b16 %v2211, %v2203
    %v2828 = vpack.c.b16 %v2212, %v2204
    %v2829 = vpack.c.b16 %v2213, %v2205
    %v2830 = vpack.c.b16 %v2214, %v2206
    %v2831 = vpack.c.b16 %v2215, %v2207
    %v2832 = vpack.c.b16 %v2216, %v2208
    %v2833 = vpack.c.b16 %v2225, %v2217
    %v2834 = vpack.c.b16 %v2226, %v2218
    %v2835 = vpack.c.b16 %v2227, %v2219
    %v2836 = vpack.c.b16 %v2228, %v2220
    %v2837 = vpack.c.b16 %v2229, %v2221
    %v2838 = vpack.c.b16 %v2230, %v2222
    %v2839 = vpack.c.b16 %v2231, %v2223
    %v2840 = vpack.c.b16 %v2232, %v2224
    %v2841 = vpack.c.b16 %v2241, %v2233
    %v2842 = vpack.c.b16 %v2242, %v2234
    %v2843 = vpack.c.b16 %v2243, %v2235
    %v2844 = vpack.c.b16 %v2244, %v2236
    %v2845 = vpack.c.b16 %v2245, %v2237
    %v2846 = vpack.c.b16 %v2246, %v2238
    %v2847 = vpack.c.b16 %v2247, %v2239
    %v2848 = vpack.c.b16 %v2248, %v2240
    %v2849 = vpack.c.b16 %v2257, %v2249
    %v2850 = vpack.c.b16 %v2258, %v2250
    %v2851 = vpack.c.b16 %v2259, %v2251
    %v2852 = vpack.c.b16 %v2260, %v2252
    %v2853 = vpack.c.b16 %v2261, %v2253
    %v2854 = vpack.c.b16 %v2262, %v2254
    %v2855 = vpack.c.b16 %v2263, %v2255
    %v2856 = vpack.c.b16 %v2264, %v2256
    %v2857 = vpack.c.b16 %v2273, %v2265
    %v2858 = vpack.c.b16 %v2274, %v2266
    %v2859 = vpack.c.b16 %v2275, %v2267
    %v2860 = vpack.c.b16 %v2276, %v2268
    %v2861 = vpack.c.b16 %v2277, %v2269
    %v2862 = vpack.c.b16 %v2278, %v2270
    %v2863 = vpack.c.b16 %v2279, %v2271
    %v2864 = vpack.c.b16 %v2280, %v2272
    %v2865 = vpack.c.b16 %v2289, %v2281
    %v2866 = vpack.c.b16 %v2290, %v2282
    %v2867 = vpack.c.b16 %v2291, %v2283
    %v2868 = vpack.c.b16 %v2292, %v2284
    %v2869 = vpack.c.b16 %v2293, %v2285
    %v2870 = vpack.c.b16 %v2294, %v2286
    %v2871 = vpack.c.b16 %v2295, %v2287
    %v2872 = vpack.c.b16 %v2296, %v2288
    %v2873 = vpack.c.b16 %v2305, %v2297
    %v2874 = vpack.c.b16 %v2306, %v2298
    %v2875 = vpack.c.b16 %v2307, %v2299
    %v2876 = vpack.c.b16 %v2308, %v2300
    %v2877 = vpack.c.b16 %v2309, %v2301
    %v2878 = vpack.c.b16 %v2310, %v2302
    %v2879 = vpack.c.b16 %v2311, %v2303
    %v2880 = vpack.c.b16 %v2312, %v2304
    %v2881 = vpack.c.b16 %v2321, %v2313
    %v2882 = vpack.c.b16 %v2322, %v2314
    %v2883 = vpack.c.b16 %v2323, %v2315
    %v2884 = vpack.c.b16 %v2324, %v2316
    %v2885 = vpack.c.b16 %v2325, %v2317
    %v2886 = vpack.c.b16 %v2326, %v2318
    %v2887 = vpack.c.b16 %v2327, %v2319
    %v2888 = vpack.c.b16 %v2328, %v2320
    %v2889 = vpack.c.b16 %v2337, %v2329
    %v2890 = vpack.c.b16 %v2338, %v2330
    %v2891 = vpack.c.b16 %v2339, %v2331
    %v2892 = vpack.c.b16 %v2340, %v2332
    %v2893 = vpack.c.b16 %v2341, %v2333
    %v2894 = vpack.c.b16 %v2342, %v2334
    %v2895 = vpack.c.b16 %v2343, %v2335
    %v2896 = vpack.c.b16 %v2344, %v2336
    %v2897 = vpack.c.b16 %v2353, %v2345
    %v2898 = vpack.c.b16 %v2354, %v2346
    %v2899 = vpack.c.b16 %v2355, %v2347
    %v2900 = vpack.c.b16 %v2356, %v2348
    %v2901 = vpack.c.b16 %v2357, %v2349
    %v2902 = vpack.c.b16 %v2358, %v2350
    %v2903 = vpack.c.b16 %v2359, %v2351
    %v2904 = vpack.c.b16 %v2360, %v2352
    %v2905 = vpack.c.b16 %v2369, %v2361
    %v2906 = vpack.c.b16 %v2370, %v2362
    %v2907 = vpack.c.b16 %v2371, %v2363
    %v2908 = vpack.c.b16 %v2372, %v2364
    %v2909 = vpack.c.b16 %v2373, %v2365
    %v2910 = vpack.c.b16 %v2374, %v2366
    %v2911 = vpack.c.b16 %v2375, %v2367
    %v2912 = vpack.c.b16 %v2376, %v2368
    %v2913 = vpack.c.b16 %v2385, %v2377
    %v2914 = vpack.c.b16 %v2386, %v2378
    %v2915 = vpack.c.b16 %v2387, %v2379
    %v2916 = vpack.c.b16 %v2388, %v2380
    %v2917 = vpack.c.b16 %v2389, %v2381
    %v2918 = vpack.c.b16 %v2390, %v2382
    %v2919 = vpack.c.b16 %v2391, %v2383
    %v2920 = vpack.c.b16 %v2392, %v2384
    %v2921 = vpack.c.b16 %v2401, %v2393
    %v2922 = vpack.c.b16 %v2402, %v2394
    %v2923 = vpack.c.b16 %v2403, %v2395
    %v2924 = vpack.c.b16 %v2404, %v2396
    %v2925 = vpack.c.b16 %v2405, %v2397
    %v2926 = vpack.c.b16 %v2406, %v2398
    %v2927 = vpack.c.b16 %v2407, %v2399
    %v2928 = vpack.c.b16 %v2408, %v2400
    %v2929 = vpack.c.b16 %v2417, %v2409
    %v2930 = vpack.c.b16 %v2418, %v2410
    %v2931 = vpack.c.b16 %v2419, %v2411
    %v2932 = vpack.c.b16 %v2420, %v2412
    %v2933 = vpack.c.b16 %v2421, %v2413
    %v2934 = vpack.c.b16 %v2422, %v2414
    %v2935 = vpack.c.b16 %v2423, %v2415
    %v2936 = vpack.c.b16 %v2424, %v2416
    %3449 = vmatprep.subr.bf16.mxu0 %v2426
    %3450 = vmatpush1.bf16.msra.mxu0 %v2425
    %3451 = vmatprep.subr.bf16.mxu0 %v2434
    %3452 = vmatpush1.bf16.msra.mxu0 %v2433
    %3453 = vmatprep.subr.bf16.mxu0 %v2442
    %3454 = vmatpush1.bf16.msra.mxu0 %v2441
    %3455 = vmatprep.subr.bf16.mxu0 %v2450
    %3456 = vmatpush1.bf16.msra.mxu0 %v2449
    %3457 = vmatprep.subr.bf16.mxu0 %v2458
    %3458 = vmatpush1.bf16.msra.mxu0 %v2457
    %3459 = vmatprep.subr.bf16.mxu0 %v2466
    %3460 = vmatpush1.bf16.msra.mxu0 %v2465
    %3461 = vmatprep.subr.bf16.mxu0 %v2474
    %3462 = vmatpush1.bf16.msra.mxu0 %v2473
    %3463 = vmatprep.subr.bf16.mxu0 %v2482
    %3464 = vmatpush1.bf16.msra.mxu0 %v2481
    %3465 = vmatprep.subr.bf16.mxu0 %v2490
    %3466 = vmatpush1.bf16.msra.mxu0 %v2489
    %3467 = vmatprep.subr.bf16.mxu0 %v2498
    %3468 = vmatpush1.bf16.msra.mxu0 %v2497
    %3469 = vmatprep.subr.bf16.mxu0 %v2506
    %3470 = vmatpush1.bf16.msra.mxu0 %v2505
    %3471 = vmatprep.subr.bf16.mxu0 %v2514
    %3472 = vmatpush1.bf16.msra.mxu0 %v2513
    %3473 = vmatprep.subr.bf16.mxu0 %v2522
    %3474 = vmatpush1.bf16.msra.mxu0 %v2521
    %3475 = vmatprep.subr.bf16.mxu0 %v2530
    %3476 = vmatpush1.bf16.msra.mxu0 %v2529
    %3477 = vmatprep.subr.bf16.mxu0 %v2538
    %3478 = vmatpush1.bf16.msra.mxu0 %v2537
    %3479 = vmatprep.subr.bf16.mxu0 %v2546
    %3480 = vmatpush1.bf16.msra.mxu0 %v2545
    %3481 = vmatprep.mubr.bf16.mxu0 %v328
    %3482 = vmatmul.mubr.bf16.gmra.mrb[0].mxu0 %v327
    %v3483 = vpop.f32.mrb[0].mxu0
    %v3484 = vadd.f32 %v852, %v3483
    %v3485 = vpop.f32.mrb[0].mxu0
    %v3486 = vadd.f32 %v856, %v3485
    %v3487 = vpop.f32.mrb[0].mxu0
    %v3488 = vpop.f32.mrb[0].mxu0
    %3489 = vdwg.mxu0
    %3490 = vmatprep.subr.bf16.mxu0 %v2554
    %3491 = vmatpush1.bf16.msra.mxu0 %v2553
    %3492 = vmatprep.subr.bf16.mxu0 %v2562
    %3493 = vmatpush1.bf16.msra.mxu0 %v2561
    %3494 = vmatprep.subr.bf16.mxu0 %v2570
    %3495 = vmatpush1.bf16.msra.mxu0 %v2569
    %3496 = vmatprep.subr.bf16.mxu0 %v2578
    %3497 = vmatpush1.bf16.msra.mxu0 %v2577
    %3498 = vmatprep.subr.bf16.mxu0 %v2586
    %3499 = vmatpush1.bf16.msra.mxu0 %v2585
    %3500 = vmatprep.subr.bf16.mxu0 %v2594
    %3501 = vmatpush1.bf16.msra.mxu0 %v2593
    %3502 = vmatprep.subr.bf16.mxu0 %v2602
    %3503 = vmatpush1.bf16.msra.mxu0 %v2601
    %3504 = vmatprep.subr.bf16.mxu0 %v2610
    %3505 = vmatpush1.bf16.msra.mxu0 %v2609
    %3506 = vmatprep.subr.bf16.mxu0 %v2618
    %3507 = vmatpush1.bf16.msra.mxu0 %v2617
    %3508 = vmatprep.subr.bf16.mxu0 %v2626
    %3509 = vmatpush1.bf16.msra.mxu0 %v2625
    %3510 = vmatprep.subr.bf16.mxu0 %v2634
    %3511 = vmatpush1.bf16.msra.mxu0 %v2633
    %3512 = vmatprep.subr.bf16.mxu0 %v2642
    %3513 = vmatpush1.bf16.msra.mxu0 %v2641
    %3514 = vmatprep.subr.bf16.mxu0 %v2650
    %3515 = vmatpush1.bf16.msra.mxu0 %v2649
    %3516 = vmatprep.subr.bf16.mxu0 %v2658
    %3517 = vmatpush1.bf16.msra.mxu0 %v2657
    %3518 = vmatprep.subr.bf16.mxu0 %v2666
    %3519 = vmatpush1.bf16.msra.mxu0 %v2665
    %3520 = vmatprep.subr.bf16.mxu0 %v2674
    %3521 = vmatpush1.bf16.msra.mxu0 %v2673
    %3522 = vmatprep.mubr.bf16.mxu0 %v330
    %3523 = vmatmul.mubr.bf16.gmra.mrb[0].mxu0 %v329
    %v3524 = vpop.f32.mrb[0].mxu0
    %v3525 = vadd.f32 %v3484, %v3524
    %v3526 = vpop.f32.mrb[0].mxu0
    %v3527 = vadd.f32 %v3486, %v3526
    %v3528 = vpop.f32.mrb[0].mxu0
    %v3529 = vpop.f32.mrb[0].mxu0
    %3530 = vdwg.mxu0
    %3531 = vmatprep.subr.bf16.mxu0 %v2682
    %3532 = vmatpush1.bf16.msra.mxu0 %v2681
    %3533 = vmatprep.subr.bf16.mxu0 %v2690
    %3534 = vmatpush1.bf16.msra.mxu0 %v2689
    %3535 = vmatprep.subr.bf16.mxu0 %v2698
    %3536 = vmatpush1.bf16.msra.mxu0 %v2697
    %3537 = vmatprep.subr.bf16.mxu0 %v2706
    %3538 = vmatpush1.bf16.msra.mxu0 %v2705
    %3539 = vmatprep.subr.bf16.mxu0 %v2714
    %3540 = vmatpush1.bf16.msra.mxu0 %v2713
    %3541 = vmatprep.subr.bf16.mxu0 %v2722
    %3542 = vmatpush1.bf16.msra.mxu0 %v2721
    %3543 = vmatprep.subr.bf16.mxu0 %v2730
    %3544 = vmatpush1.bf16.msra.mxu0 %v2729
    %3545 = vmatprep.subr.bf16.mxu0 %v2738
    %3546 = vmatpush1.bf16.msra.mxu0 %v2737
    %3547 = vmatprep.subr.bf16.mxu0 %v2746
    %3548 = vmatpush1.bf16.msra.mxu0 %v2745
    %3549 = vmatprep.subr.bf16.mxu0 %v2754
    %3550 = vmatpush1.bf16.msra.mxu0 %v2753
    %3551 = vmatprep.subr.bf16.mxu0 %v2762
    %3552 = vmatpush1.bf16.msra.mxu0 %v2761
    %3553 = vmatprep.subr.bf16.mxu0 %v2770
    %3554 = vmatpush1.bf16.msra.mxu0 %v2769
    %3555 = vmatprep.subr.bf16.mxu0 %v2778
    %3556 = vmatpush1.bf16.msra.mxu0 %v2777
    %3557 = vmatprep.subr.bf16.mxu0 %v2786
    %3558 = vmatpush1.bf16.msra.mxu0 %v2785
    %3559 = vmatprep.subr.bf16.mxu0 %v2794
    %3560 = vmatpush1.bf16.msra.mxu0 %v2793
    %3561 = vmatprep.subr.bf16.mxu0 %v2802
    %3562 = vmatpush1.bf16.msra.mxu0 %v2801
    %3563 = vmatprep.mubr.bf16.mxu0 %v332
    %3564 = vmatmul.mubr.bf16.gmra.mrb[0].mxu0 %v331
    %v3565 = vpop.f32.mrb[0].mxu0
    %v3566 = vadd.f32 %v3525, %v3565
    %v3567 = vpop.f32.mrb[0].mxu0
    %v3568 = vadd.f32 %v3527, %v3567
    %v3569 = vpop.f32.mrb[0].mxu0
    %v3570 = vpop.f32.mrb[0].mxu0
    %3571 = vdwg.mxu0
    %3572 = vmatprep.subr.bf16.mxu0 %v2810
    %3573 = vmatpush1.bf16.msra.mxu0 %v2809
    %3574 = vmatprep.subr.bf16.mxu0 %v2818
    %3575 = vmatpush1.bf16.msra.mxu0 %v2817
    %3576 = vmatprep.subr.bf16.mxu0 %v2826
    %3577 = vmatpush1.bf16.msra.mxu0 %v2825
    %3578 = vmatprep.subr.bf16.mxu0 %v2834
    %3579 = vmatpush1.bf16.msra.mxu0 %v2833
    %3580 = vmatprep.subr.bf16.mxu0 %v2842
    %3581 = vmatpush1.bf16.msra.mxu0 %v2841
    %3582 = vmatprep.subr.bf16.mxu0 %v2850
    %3583 = vmatpush1.bf16.msra.mxu0 %v2849
    %3584 = vmatprep.subr.bf16.mxu0 %v2858
    %3585 = vmatpush1.bf16.msra.mxu0 %v2857
    %3586 = vmatprep.subr.bf16.mxu0 %v2866
    %3587 = vmatpush1.bf16.msra.mxu0 %v2865
    %3588 = vmatprep.subr.bf16.mxu0 %v2874
    %3589 = vmatpush1.bf16.msra.mxu0 %v2873
    %3590 = vmatprep.subr.bf16.mxu0 %v2882
    %3591 = vmatpush1.bf16.msra.mxu0 %v2881
    %3592 = vmatprep.subr.bf16.mxu0 %v2890
    %3593 = vmatpush1.bf16.msra.mxu0 %v2889
    %3594 = vmatprep.subr.bf16.mxu0 %v2898
    %3595 = vmatpush1.bf16.msra.mxu0 %v2897
    %3596 = vmatprep.subr.bf16.mxu0 %v2906
    %3597 = vmatpush1.bf16.msra.mxu0 %v2905
    %3598 = vmatprep.subr.bf16.mxu0 %v2914
    %3599 = vmatpush1.bf16.msra.mxu0 %v2913
    %3600 = vmatprep.subr.bf16.mxu0 %v2922
    %3601 = vmatpush1.bf16.msra.mxu0 %v2921
    %3602 = vmatprep.subr.bf16.mxu0 %v2930
    %3603 = vmatpush1.bf16.msra.mxu0 %v2929
    %3604 = vmatprep.mubr.bf16.mxu0 %v334
    %3605 = vmatmul.mubr.bf16.gmra.mrb[0].mxu0 %v333
    %v3606 = vpop.f32.mrb[0].mxu0
    %v3607 = vadd.f32 %v3566, %v3606
    %v3608 = vpop.f32.mrb[0].mxu0
    %v3609 = vadd.f32 %v3568, %v3608
    %v3610 = vpop.f32.mrb[0].mxu0
    %v3611 = vpop.f32.mrb[0].mxu0
    %3612 = vdwg.mxu0
    %3613 = vmatprep.subr.bf16.mxu0 %v2428
    %3614 = vmatpush1.bf16.msra.mxu0 %v2427
    %3615 = vmatprep.subr.bf16.mxu0 %v2436
    %3616 = vmatpush1.bf16.msra.mxu0 %v2435
    %3617 = vmatprep.subr.bf16.mxu0 %v2444
    %3618 = vmatpush1.bf16.msra.mxu0 %v2443
    %3619 = vmatprep.subr.bf16.mxu0 %v2452
    %3620 = vmatpush1.bf16.msra.mxu0 %v2451
    %3621 = vmatprep.subr.bf16.mxu0 %v2460
    %3622 = vmatpush1.bf16.msra.mxu0 %v2459
    %3623 = vmatprep.subr.bf16.mxu0 %v2468
    %3624 = vmatpush1.bf16.msra.mxu0 %v2467
    %3625 = vmatprep.subr.bf16.mxu0 %v2476
    %3626 = vmatpush1.bf16.msra.mxu0 %v2475
    %3627 = vmatprep.subr.bf16.mxu0 %v2484
    %3628 = vmatpush1.bf16.msra.mxu0 %v2483
    %3629 = vmatprep.subr.bf16.mxu0 %v2492
    %3630 = vmatpush1.bf16.msra.mxu0 %v2491
    %3631 = vmatprep.subr.bf16.mxu0 %v2500
    %3632 = vmatpush1.bf16.msra.mxu0 %v2499
    %3633 = vmatprep.subr.bf16.mxu0 %v2508
    %3634 = vmatpush1.bf16.msra.mxu0 %v2507
    %3635 = vmatprep.subr.bf16.mxu0 %v2516
    %3636 = vmatpush1.bf16.msra.mxu0 %v2515
    %3637 = vmatprep.subr.bf16.mxu0 %v2524
    %3638 = vmatpush1.bf16.msra.mxu0 %v2523
    %3639 = vmatprep.subr.bf16.mxu0 %v2532
    %3640 = vmatpush1.bf16.msra.mxu0 %v2531
    %3641 = vmatprep.subr.bf16.mxu0 %v2540
    %3642 = vmatpush1.bf16.msra.mxu0 %v2539
    %3643 = vmatprep.subr.bf16.mxu0 %v2548
    %3644 = vmatpush1.bf16.msra.mxu0 %v2547
    %3645 = vmatprep.mubr.bf16.mxu0 %v328
    %3646 = vmatmul.mubr.bf16.gmra.mrb[0].mxu0 %v327
    %v3647 = vpop.f32.mrb[0].mxu0
    %v3648 = vadd.f32 %v860, %v3647
    %v3649 = vpop.f32.mrb[0].mxu0
    %v3650 = vadd.f32 %v864, %v3649
    %v3651 = vpop.f32.mrb[0].mxu0
    %v3652 = vpop.f32.mrb[0].mxu0
    %3653 = vdwg.mxu0
    %3654 = vmatprep.subr.bf16.mxu0 %v2556
    %3655 = vmatpush1.bf16.msra.mxu0 %v2555
    %3656 = vmatprep.subr.bf16.mxu0 %v2564
    %3657 = vmatpush1.bf16.msra.mxu0 %v2563
    %3658 = vmatprep.subr.bf16.mxu0 %v2572
    %3659 = vmatpush1.bf16.msra.mxu0 %v2571
    %3660 = vmatprep.subr.bf16.mxu0 %v2580
    %3661 = vmatpush1.bf16.msra.mxu0 %v2579
    %3662 = vmatprep.subr.bf16.mxu0 %v2588
    %3663 = vmatpush1.bf16.msra.mxu0 %v2587
    %3664 = vmatprep.subr.bf16.mxu0 %v2596
    %3665 = vmatpush1.bf16.msra.mxu0 %v2595
    %3666 = vmatprep.subr.bf16.mxu0 %v2604
    %3667 = vmatpush1.bf16.msra.mxu0 %v2603
    %3668 = vmatprep.subr.bf16.mxu0 %v2612
    %3669 = vmatpush1.bf16.msra.mxu0 %v2611
    %3670 = vmatprep.subr.bf16.mxu0 %v2620
    %3671 = vmatpush1.bf16.msra.mxu0 %v2619
    %3672 = vmatprep.subr.bf16.mxu0 %v2628
    %3673 = vmatpush1.bf16.msra.mxu0 %v2627
    %3674 = vmatprep.subr.bf16.mxu0 %v2636
    %3675 = vmatpush1.bf16.msra.mxu0 %v2635
    %3676 = vmatprep.subr.bf16.mxu0 %v2644
    %3677 = vmatpush1.bf16.msra.mxu0 %v2643
    %3678 = vmatprep.subr.bf16.mxu0 %v2652
    %3679 = vmatpush1.bf16.msra.mxu0 %v2651
    %3680 = vmatprep.subr.bf16.mxu0 %v2660
    %3681 = vmatpush1.bf16.msra.mxu0 %v2659
    %3682 = vmatprep.subr.bf16.mxu0 %v2668
    %3683 = vmatpush1.bf16.msra.mxu0 %v2667
    %3684 = vmatprep.subr.bf16.mxu0 %v2676
    %3685 = vmatpush1.bf16.msra.mxu0 %v2675
    %3686 = vmatprep.mubr.bf16.mxu0 %v330
    %3687 = vmatmul.mubr.bf16.gmra.mrb[0].mxu0 %v329
    %v3688 = vpop.f32.mrb[0].mxu0
    %v3689 = vadd.f32 %v3648, %v3688
    %v3690 = vpop.f32.mrb[0].mxu0
    %v3691 = vadd.f32 %v3650, %v3690
    %v3692 = vpop.f32.mrb[0].mxu0
    %v3693 = vpop.f32.mrb[0].mxu0
    %3694 = vdwg.mxu0
    %3695 = vmatprep.subr.bf16.mxu0 %v2684
    %3696 = vmatpush1.bf16.msra.mxu0 %v2683
    %3697 = vmatprep.subr.bf16.mxu0 %v2692
    %3698 = vmatpush1.bf16.msra.mxu0 %v2691
    %3699 = vmatprep.subr.bf16.mxu0 %v2700
    %3700 = vmatpush1.bf16.msra.mxu0 %v2699
    %3701 = vmatprep.subr.bf16.mxu0 %v2708
    %3702 = vmatpush1.bf16.msra.mxu0 %v2707
    %3703 = vmatprep.subr.bf16.mxu0 %v2716
    %3704 = vmatpush1.bf16.msra.mxu0 %v2715
    %3705 = vmatprep.subr.bf16.mxu0 %v2724
    %3706 = vmatpush1.bf16.msra.mxu0 %v2723
    %3707 = vmatprep.subr.bf16.mxu0 %v2732
    %3708 = vmatpush1.bf16.msra.mxu0 %v2731
    %3709 = vmatprep.subr.bf16.mxu0 %v2740
    %3710 = vmatpush1.bf16.msra.mxu0 %v2739
    %3711 = vmatprep.subr.bf16.mxu0 %v2748
    %3712 = vmatpush1.bf16.msra.mxu0 %v2747
    %3713 = vmatprep.subr.bf16.mxu0 %v2756
    %3714 = vmatpush1.bf16.msra.mxu0 %v2755
    %3715 = vmatprep.subr.bf16.mxu0 %v2764
    %3716 = vmatpush1.bf16.msra.mxu0 %v2763
    %3717 = vmatprep.subr.bf16.mxu0 %v2772
    %3718 = vmatpush1.bf16.msra.mxu0 %v2771
    %3719 = vmatprep.subr.bf16.mxu0 %v2780
    %3720 = vmatpush1.bf16.msra.mxu0 %v2779
    %3721 = vmatprep.subr.bf16.mxu0 %v2788
    %3722 = vmatpush1.bf16.msra.mxu0 %v2787
    %3723 = vmatprep.subr.bf16.mxu0 %v2796
    %3724 = vmatpush1.bf16.msra.mxu0 %v2795
    %3725 = vmatprep.subr.bf16.mxu0 %v2804
    %3726 = vmatpush1.bf16.msra.mxu0 %v2803
    %3727 = vmatprep.mubr.bf16.mxu0 %v332
    %3728 = vmatmul.mubr.bf16.gmra.mrb[0].mxu0 %v331
    %v3729 = vpop.f32.mrb[0].mxu0
    %v3730 = vadd.f32 %v3689, %v3729
    %v3731 = vpop.f32.mrb[0].mxu0
    %v3732 = vadd.f32 %v3691, %v3731
    %v3733 = vpop.f32.mrb[0].mxu0
    %v3734 = vpop.f32.mrb[0].mxu0
    %3735 = vdwg.mxu0
    %3736 = vmatprep.subr.bf16.mxu0 %v2812
    %3737 = vmatpush1.bf16.msra.mxu0 %v2811
    %3738 = vmatprep.subr.bf16.mxu0 %v2820
    %3739 = vmatpush1.bf16.msra.mxu0 %v2819
    %3740 = vmatprep.subr.bf16.mxu0 %v2828
    %3741 = vmatpush1.bf16.msra.mxu0 %v2827
    %3742 = vmatprep.subr.bf16.mxu0 %v2836
    %3743 = vmatpush1.bf16.msra.mxu0 %v2835
    %3744 = vmatprep.subr.bf16.mxu0 %v2844
    %3745 = vmatpush1.bf16.msra.mxu0 %v2843
    %3746 = vmatprep.subr.bf16.mxu0 %v2852
    %3747 = vmatpush1.bf16.msra.mxu0 %v2851
    %3748 = vmatprep.subr.bf16.mxu0 %v2860
    %3749 = vmatpush1.bf16.msra.mxu0 %v2859
    %3750 = vmatprep.subr.bf16.mxu0 %v2868
    %3751 = vmatpush1.bf16.msra.mxu0 %v2867
    %3752 = vmatprep.subr.bf16.mxu0 %v2876
    %3753 = vmatpush1.bf16.msra.mxu0 %v2875
    %3754 = vmatprep.subr.bf16.mxu0 %v2884
    %3755 = vmatpush1.bf16.msra.mxu0 %v2883
    %3756 = vmatprep.subr.bf16.mxu0 %v2892
    %3757 = vmatpush1.bf16.msra.mxu0 %v2891
    %3758 = vmatprep.subr.bf16.mxu0 %v2900
    %3759 = vmatpush1.bf16.msra.mxu0 %v2899
    %3760 = vmatprep.subr.bf16.mxu0 %v2908
    %3761 = vmatpush1.bf16.msra.mxu0 %v2907
    %3762 = vmatprep.subr.bf16.mxu0 %v2916
    %3763 = vmatpush1.bf16.msra.mxu0 %v2915
    %3764 = vmatprep.subr.bf16.mxu0 %v2924
    %3765 = vmatpush1.bf16.msra.mxu0 %v2923
    %3766 = vmatprep.subr.bf16.mxu0 %v2932
    %3767 = vmatpush1.bf16.msra.mxu0 %v2931
    %3768 = vmatprep.mubr.bf16.mxu0 %v334
    %3769 = vmatmul.mubr.bf16.gmra.mrb[0].mxu0 %v333
    %v3770 = vpop.f32.mrb[0].mxu0
    %v3771 = vadd.f32 %v3730, %v3770
    %v3772 = vpop.f32.mrb[0].mxu0
    %v3773 = vadd.f32 %v3732, %v3772
    %v3774 = vpop.f32.mrb[0].mxu0
    %v3775 = vpop.f32.mrb[0].mxu0
    %3776 = vdwg.mxu0
    %3777 = vmatprep.subr.bf16.mxu0 %v2430
    %3778 = vmatpush1.bf16.msra.mxu0 %v2429
    %3779 = vmatprep.subr.bf16.mxu0 %v2438
    %3780 = vmatpush1.bf16.msra.mxu0 %v2437
    %3781 = vmatprep.subr.bf16.mxu0 %v2446
    %3782 = vmatpush1.bf16.msra.mxu0 %v2445
    %3783 = vmatprep.subr.bf16.mxu0 %v2454
    %3784 = vmatpush1.bf16.msra.mxu0 %v2453
    %3785 = vmatprep.subr.bf16.mxu0 %v2462
    %3786 = vmatpush1.bf16.msra.mxu0 %v2461
    %3787 = vmatprep.subr.bf16.mxu0 %v2470
    %3788 = vmatpush1.bf16.msra.mxu0 %v2469
    %3789 = vmatprep.subr.bf16.mxu0 %v2478
    %3790 = vmatpush1.bf16.msra.mxu0 %v2477
    %3791 = vmatprep.subr.bf16.mxu0 %v2486
    %3792 = vmatpush1.bf16.msra.mxu0 %v2485
    %3793 = vmatprep.subr.bf16.mxu0 %v2494
    %3794 = vmatpush1.bf16.msra.mxu0 %v2493
    %3795 = vmatprep.subr.bf16.mxu0 %v2502
    %3796 = vmatpush1.bf16.msra.mxu0 %v2501
    %3797 = vmatprep.subr.bf16.mxu0 %v2510
    %3798 = vmatpush1.bf16.msra.mxu0 %v2509
    %3799 = vmatprep.subr.bf16.mxu0 %v2518
    %3800 = vmatpush1.bf16.msra.mxu0 %v2517
    %3801 = vmatprep.subr.bf16.mxu0 %v2526
    %3802 = vmatpush1.bf16.msra.mxu0 %v2525
    %3803 = vmatprep.subr.bf16.mxu0 %v2534
    %3804 = vmatpush1.bf16.msra.mxu0 %v2533
    %3805 = vmatprep.subr.bf16.mxu0 %v2542
    %3806 = vmatpush1.bf16.msra.mxu0 %v2541
    %3807 = vmatprep.subr.bf16.mxu0 %v2550
    %3808 = vmatpush1.bf16.msra.mxu0 %v2549
    %3809 = vmatprep.mubr.bf16.mxu0 %v328
    %3810 = vmatmul.mubr.bf16.gmra.mrb[0].mxu0 %v327
    %v3811 = vpop.f32.mrb[0].mxu0
    %v3812 = vadd.f32 %v868, %v3811
    %v3813 = vpop.f32.mrb[0].mxu0
    %v3814 = vadd.f32 %v872, %v3813
    %v3815 = vpop.f32.mrb[0].mxu0
    %v3816 = vpop.f32.mrb[0].mxu0
    %3817 = vdwg.mxu0
    %3818 = vmatprep.subr.bf16.mxu0 %v2558
    %3819 = vmatpush1.bf16.msra.mxu0 %v2557
    %3820 = vmatprep.subr.bf16.mxu0 %v2566
    %3821 = vmatpush1.bf16.msra.mxu0 %v2565
    %3822 = vmatprep.subr.bf16.mxu0 %v2574
    %3823 = vmatpush1.bf16.msra.mxu0 %v2573
    %3824 = vmatprep.subr.bf16.mxu0 %v2582
    %3825 = vmatpush1.bf16.msra.mxu0 %v2581
    %3826 = vmatprep.subr.bf16.mxu0 %v2590
    %3827 = vmatpush1.bf16.msra.mxu0 %v2589
    %3828 = vmatprep.subr.bf16.mxu0 %v2598
    %3829 = vmatpush1.bf16.msra.mxu0 %v2597
    %3830 = vmatprep.subr.bf16.mxu0 %v2606
    %3831 = vmatpush1.bf16.msra.mxu0 %v2605
    %3832 = vmatprep.subr.bf16.mxu0 %v2614
    %3833 = vmatpush1.bf16.msra.mxu0 %v2613
    %3834 = vmatprep.subr.bf16.mxu0 %v2622
    %3835 = vmatpush1.bf16.msra.mxu0 %v2621
    %3836 = vmatprep.subr.bf16.mxu0 %v2630
    %3837 = vmatpush1.bf16.msra.mxu0 %v2629
    %3838 = vmatprep.subr.bf16.mxu0 %v2638
    %3839 = vmatpush1.bf16.msra.mxu0 %v2637
    %3840 = vmatprep.subr.bf16.mxu0 %v2646
    %3841 = vmatpush1.bf16.msra.mxu0 %v2645
    %3842 = vmatprep.subr.bf16.mxu0 %v2654
    %3843 = vmatpush1.bf16.msra.mxu0 %v2653
    %3844 = vmatprep.subr.bf16.mxu0 %v2662
    %3845 = vmatpush1.bf16.msra.mxu0 %v2661
    %3846 = vmatprep.subr.bf16.mxu0 %v2670
    %3847 = vmatpush1.bf16.msra.mxu0 %v2669
    %3848 = vmatprep.subr.bf16.mxu0 %v2678
    %3849 = vmatpush1.bf16.msra.mxu0 %v2677
    %3850 = vmatprep.mubr.bf16.mxu0 %v330
    %3851 = vmatmul.mubr.bf16.gmra.mrb[0].mxu0 %v329
    %v3852 = vpop.f32.mrb[0].mxu0
    %v3853 = vadd.f32 %v3812, %v3852
    %v3854 = vpop.f32.mrb[0].mxu0
    %v3855 = vadd.f32 %v3814, %v3854
    %v3856 = vpop.f32.mrb[0].mxu0
    %v3857 = vpop.f32.mrb[0].mxu0
    %3858 = vdwg.mxu0
    %3859 = vmatprep.subr.bf16.mxu0 %v2686
    %3860 = vmatpush1.bf16.msra.mxu0 %v2685
    %3861 = vmatprep.subr.bf16.mxu0 %v2694
    %3862 = vmatpush1.bf16.msra.mxu0 %v2693
    %3863 = vmatprep.subr.bf16.mxu0 %v2702
    %3864 = vmatpush1.bf16.msra.mxu0 %v2701
    %3865 = vmatprep.subr.bf16.mxu0 %v2710
    %3866 = vmatpush1.bf16.msra.mxu0 %v2709
    %3867 = vmatprep.subr.bf16.mxu0 %v2718
    %3868 = vmatpush1.bf16.msra.mxu0 %v2717
    %3869 = vmatprep.subr.bf16.mxu0 %v2726
    %3870 = vmatpush1.bf16.msra.mxu0 %v2725
    %3871 = vmatprep.subr.bf16.mxu0 %v2734
    %3872 = vmatpush1.bf16.msra.mxu0 %v2733
    %3873 = vmatprep.subr.bf16.mxu0 %v2742
    %3874 = vmatpush1.bf16.msra.mxu0 %v2741
    %3875 = vmatprep.subr.bf16.mxu0 %v2750
    %3876 = vmatpush1.bf16.msra.mxu0 %v2749
    %3877 = vmatprep.subr.bf16.mxu0 %v2758
    %3878 = vmatpush1.bf16.msra.mxu0 %v2757
    %3879 = vmatprep.subr.bf16.mxu0 %v2766
    %3880 = vmatpush1.bf16.msra.mxu0 %v2765
    %3881 = vmatprep.subr.bf16.mxu0 %v2774
    %3882 = vmatpush1.bf16.msra.mxu0 %v2773
    %3883 = vmatprep.subr.bf16.mxu0 %v2782
    %3884 = vmatpush1.bf16.msra.mxu0 %v2781
    %3885 = vmatprep.subr.bf16.mxu0 %v2790
    %3886 = vmatpush1.bf16.msra.mxu0 %v2789
    %3887 = vmatprep.subr.bf16.mxu0 %v2798
    %3888 = vmatpush1.bf16.msra.mxu0 %v2797
    %3889 = vmatprep.subr.bf16.mxu0 %v2806
    %3890 = vmatpush1.bf16.msra.mxu0 %v2805
    %3891 = vmatprep.mubr.bf16.mxu0 %v332
    %3892 = vmatmul.mubr.bf16.gmra.mrb[0].mxu0 %v331
    %v3893 = vpop.f32.mrb[0].mxu0
    %v3894 = vadd.f32 %v3853, %v3893
    %v3895 = vpop.f32.mrb[0].mxu0
    %v3896 = vadd.f32 %v3855, %v3895
    %v3897 = vpop.f32.mrb[0].mxu0
    %v3898 = vpop.f32.mrb[0].mxu0
    %3899 = vdwg.mxu0
    %3900 = vmatprep.subr.bf16.mxu0 %v2814
    %3901 = vmatpush1.bf16.msra.mxu0 %v2813
    %3902 = vmatprep.subr.bf16.mxu0 %v2822
    %3903 = vmatpush1.bf16.msra.mxu0 %v2821
    %3904 = vmatprep.subr.bf16.mxu0 %v2830
    %3905 = vmatpush1.bf16.msra.mxu0 %v2829
    %3906 = vmatprep.subr.bf16.mxu0 %v2838
    %3907 = vmatpush1.bf16.msra.mxu0 %v2837
    %3908 = vmatprep.subr.bf16.mxu0 %v2846
    %3909 = vmatpush1.bf16.msra.mxu0 %v2845
    %3910 = vmatprep.subr.bf16.mxu0 %v2854
    %3911 = vmatpush1.bf16.msra.mxu0 %v2853
    %3912 = vmatprep.subr.bf16.mxu0 %v2862
    %3913 = vmatpush1.bf16.msra.mxu0 %v2861
    %3914 = vmatprep.subr.bf16.mxu0 %v2870
    %3915 = vmatpush1.bf16.msra.mxu0 %v2869
    %3916 = vmatprep.subr.bf16.mxu0 %v2878
    %3917 = vmatpush1.bf16.msra.mxu0 %v2877
    %3918 = vmatprep.subr.bf16.mxu0 %v2886
    %3919 = vmatpush1.bf16.msra.mxu0 %v2885
    %3920 = vmatprep.subr.bf16.mxu0 %v2894
    %3921 = vmatpush1.bf16.msra.mxu0 %v2893
    %3922 = vmatprep.subr.bf16.mxu0 %v2902
    %3923 = vmatpush1.bf16.msra.mxu0 %v2901
    %3924 = vmatprep.subr.bf16.mxu0 %v2910
    %3925 = vmatpush1.bf16.msra.mxu0 %v2909
    %3926 = vmatprep.subr.bf16.mxu0 %v2918
    %3927 = vmatpush1.bf16.msra.mxu0 %v2917
    %3928 = vmatprep.subr.bf16.mxu0 %v2926
    %3929 = vmatpush1.bf16.msra.mxu0 %v2925
    %3930 = vmatprep.subr.bf16.mxu0 %v2934
    %3931 = vmatpush1.bf16.msra.mxu0 %v2933
    %3932 = vmatprep.mubr.bf16.mxu0 %v334
    %3933 = vmatmul.mubr.bf16.gmra.mrb[0].mxu0 %v333
    %v3934 = vpop.f32.mrb[0].mxu0
    %v3935 = vadd.f32 %v3894, %v3934
    %v3936 = vpop.f32.mrb[0].mxu0
    %v3937 = vadd.f32 %v3896, %v3936
    %v3938 = vpop.f32.mrb[0].mxu0
    %v3939 = vpop.f32.mrb[0].mxu0
    %3940 = vdwg.mxu0
    %3941 = vmatprep.subr.bf16.mxu0 %v2432
    %3942 = vmatpush1.bf16.msra.mxu0 %v2431
    %3943 = vmatprep.subr.bf16.mxu0 %v2440
    %3944 = vmatpush1.bf16.msra.mxu0 %v2439
    %3945 = vmatprep.subr.bf16.mxu0 %v2448
    %3946 = vmatpush1.bf16.msra.mxu0 %v2447
    %3947 = vmatprep.subr.bf16.mxu0 %v2456
    %3948 = vmatpush1.bf16.msra.mxu0 %v2455
    %3949 = vmatprep.subr.bf16.mxu0 %v2464
    %3950 = vmatpush1.bf16.msra.mxu0 %v2463
    %3951 = vmatprep.subr.bf16.mxu0 %v2472
    %3952 = vmatpush1.bf16.msra.mxu0 %v2471
    %3953 = vmatprep.subr.bf16.mxu0 %v2480
    %3954 = vmatpush1.bf16.msra.mxu0 %v2479
    %3955 = vmatprep.subr.bf16.mxu0 %v2488
    %3956 = vmatpush1.bf16.msra.mxu0 %v2487
    %3957 = vmatprep.subr.bf16.mxu0 %v2496
    %3958 = vmatpush1.bf16.msra.mxu0 %v2495
    %3959 = vmatprep.subr.bf16.mxu0 %v2504
    %3960 = vmatpush1.bf16.msra.mxu0 %v2503
    %3961 = vmatprep.subr.bf16.mxu0 %v2512
    %3962 = vmatpush1.bf16.msra.mxu0 %v2511
    %3963 = vmatprep.subr.bf16.mxu0 %v2520
    %3964 = vmatpush1.bf16.msra.mxu0 %v2519
    %3965 = vmatprep.subr.bf16.mxu0 %v2528
    %3966 = vmatpush1.bf16.msra.mxu0 %v2527
    %3967 = vmatprep.subr.bf16.mxu0 %v2536
    %3968 = vmatpush1.bf16.msra.mxu0 %v2535
    %3969 = vmatprep.subr.bf16.mxu0 %v2544
    %3970 = vmatpush1.bf16.msra.mxu0 %v2543
    %3971 = vmatprep.subr.bf16.mxu0 %v2552
    %3972 = vmatpush1.bf16.msra.mxu0 %v2551
    %3973 = vmatprep.mubr.bf16.mxu0 %v328
    %3974 = vmatmul.mubr.bf16.gmra.mrb[0].mxu0 %v327
    %v3975 = vpop.f32.mrb[0].mxu0
    %v3976 = vadd.f32 %v876, %v3975
    %v3977 = vpop.f32.mrb[0].mxu0
    %v3978 = vadd.f32 %v880, %v3977
    %v3979 = vpop.f32.mrb[0].mxu0
    %v3980 = vpop.f32.mrb[0].mxu0
    %3981 = vdwg.mxu0
    %3982 = vmatprep.subr.bf16.mxu0 %v2560
    %3983 = vmatpush1.bf16.msra.mxu0 %v2559
    %3984 = vmatprep.subr.bf16.mxu0 %v2568
    %3985 = vmatpush1.bf16.msra.mxu0 %v2567
    %3986 = vmatprep.subr.bf16.mxu0 %v2576
    %3987 = vmatpush1.bf16.msra.mxu0 %v2575
    %3988 = vmatprep.subr.bf16.mxu0 %v2584
    %3989 = vmatpush1.bf16.msra.mxu0 %v2583
    %3990 = vmatprep.subr.bf16.mxu0 %v2592
    %3991 = vmatpush1.bf16.msra.mxu0 %v2591
    %3992 = vmatprep.subr.bf16.mxu0 %v2600
    %3993 = vmatpush1.bf16.msra.mxu0 %v2599
    %3994 = vmatprep.subr.bf16.mxu0 %v2608
    %3995 = vmatpush1.bf16.msra.mxu0 %v2607
    %3996 = vmatprep.subr.bf16.mxu0 %v2616
    %3997 = vmatpush1.bf16.msra.mxu0 %v2615
    %3998 = vmatprep.subr.bf16.mxu0 %v2624
    %3999 = vmatpush1.bf16.msra.mxu0 %v2623
    %4000 = vmatprep.subr.bf16.mxu0 %v2632
    %4001 = vmatpush1.bf16.msra.mxu0 %v2631
    %4002 = vmatprep.subr.bf16.mxu0 %v2640
    %4003 = vmatpush1.bf16.msra.mxu0 %v2639
    %4004 = vmatprep.subr.bf16.mxu0 %v2648
    %4005 = vmatpush1.bf16.msra.mxu0 %v2647
    %4006 = vmatprep.subr.bf16.mxu0 %v2656
    %4007 = vmatpush1.bf16.msra.mxu0 %v2655
    %4008 = vmatprep.subr.bf16.mxu0 %v2664
    %4009 = vmatpush1.bf16.msra.mxu0 %v2663
    %4010 = vmatprep.subr.bf16.mxu0 %v2672
    %4011 = vmatpush1.bf16.msra.mxu0 %v2671
    %4012 = vmatprep.subr.bf16.mxu0 %v2680
    %4013 = vmatpush1.bf16.msra.mxu0 %v2679
    %4014 = vmatprep.mubr.bf16.mxu0 %v330
    %4015 = vmatmul.mubr.bf16.gmra.mrb[0].mxu0 %v329
    %v4016 = vpop.f32.mrb[0].mxu0
    %v4017 = vadd.f32 %v3976, %v4016
    %v4018 = vpop.f32.mrb[0].mxu0
    %v4019 = vadd.f32 %v3978, %v4018
    %v4020 = vpop.f32.mrb[0].mxu0
    %v4021 = vpop.f32.mrb[0].mxu0
    %4022 = vdwg.mxu0
    %4023 = vmatprep.subr.bf16.mxu0 %v2688
    %4024 = vmatpush1.bf16.msra.mxu0 %v2687
    %4025 = vmatprep.subr.bf16.mxu0 %v2696
    %4026 = vmatpush1.bf16.msra.mxu0 %v2695
    %4027 = vmatprep.subr.bf16.mxu0 %v2704
    %4028 = vmatpush1.bf16.msra.mxu0 %v2703
    %4029 = vmatprep.subr.bf16.mxu0 %v2712
    %4030 = vmatpush1.bf16.msra.mxu0 %v2711
    %4031 = vmatprep.subr.bf16.mxu0 %v2720
    %4032 = vmatpush1.bf16.msra.mxu0 %v2719
    %4033 = vmatprep.subr.bf16.mxu0 %v2728
    %4034 = vmatpush1.bf16.msra.mxu0 %v2727
    %4035 = vmatprep.subr.bf16.mxu0 %v2736
    %4036 = vmatpush1.bf16.msra.mxu0 %v2735
    %4037 = vmatprep.subr.bf16.mxu0 %v2744
    %4038 = vmatpush1.bf16.msra.mxu0 %v2743
    %4039 = vmatprep.subr.bf16.mxu0 %v2752
    %4040 = vmatpush1.bf16.msra.mxu0 %v2751
    %4041 = vmatprep.subr.bf16.mxu0 %v2760
    %4042 = vmatpush1.bf16.msra.mxu0 %v2759
    %4043 = vmatprep.subr.bf16.mxu0 %v2768
    %4044 = vmatpush1.bf16.msra.mxu0 %v2767
    %4045 = vmatprep.subr.bf16.mxu0 %v2776
    %4046 = vmatpush1.bf16.msra.mxu0 %v2775
    %4047 = vmatprep.subr.bf16.mxu0 %v2784
    %4048 = vmatpush1.bf16.msra.mxu0 %v2783
    %4049 = vmatprep.subr.bf16.mxu0 %v2792
    %4050 = vmatpush1.bf16.msra.mxu0 %v2791
    %4051 = vmatprep.subr.bf16.mxu0 %v2800
    %4052 = vmatpush1.bf16.msra.mxu0 %v2799
    %4053 = vmatprep.subr.bf16.mxu0 %v2808
    %4054 = vmatpush1.bf16.msra.mxu0 %v2807
    %4055 = vmatprep.mubr.bf16.mxu0 %v332
    %4056 = vmatmul.mubr.bf16.gmra.mrb[0].mxu0 %v331
    %v4057 = vpop.f32.mrb[0].mxu0
    %v4058 = vadd.f32 %v4017, %v4057
    %v4059 = vpop.f32.mrb[0].mxu0
    %v4060 = vadd.f32 %v4019, %v4059
    %v4061 = vpop.f32.mrb[0].mxu0
    %v4062 = vpop.f32.mrb[0].mxu0
    %4063 = vdwg.mxu0
    %4064 = vmatprep.subr.bf16.mxu0 %v2816
    %4065 = vmatpush1.bf16.msra.mxu0 %v2815
    %4066 = vmatprep.subr.bf16.mxu0 %v2824
    %4067 = vmatpush1.bf16.msra.mxu0 %v2823
    %4068 = vmatprep.subr.bf16.mxu0 %v2832
    %4069 = vmatpush1.bf16.msra.mxu0 %v2831
    %4070 = vmatprep.subr.bf16.mxu0 %v2840
    %4071 = vmatpush1.bf16.msra.mxu0 %v2839
    %4072 = vmatprep.subr.bf16.mxu0 %v2848
    %4073 = vmatpush1.bf16.msra.mxu0 %v2847
    %4074 = vmatprep.subr.bf16.mxu0 %v2856
    %4075 = vmatpush1.bf16.msra.mxu0 %v2855
    %4076 = vmatprep.subr.bf16.mxu0 %v2864
    %4077 = vmatpush1.bf16.msra.mxu0 %v2863
    %4078 = vmatprep.subr.bf16.mxu0 %v2872
    %4079 = vmatpush1.bf16.msra.mxu0 %v2871
    %4080 = vmatprep.subr.bf16.mxu0 %v2880
    %4081 = vmatpush1.bf16.msra.mxu0 %v2879
    %4082 = vmatprep.subr.bf16.mxu0 %v2888
    %4083 = vmatpush1.bf16.msra.mxu0 %v2887
    %4084 = vmatprep.subr.bf16.mxu0 %v2896
    %4085 = vmatpush1.bf16.msra.mxu0 %v2895
    %4086 = vmatprep.subr.bf16.mxu0 %v2904
    %4087 = vmatpush1.bf16.msra.mxu0 %v2903
    %4088 = vmatprep.subr.bf16.mxu0 %v2912
    %4089 = vmatpush1.bf16.msra.mxu0 %v2911
    %4090 = vmatprep.subr.bf16.mxu0 %v2920
    %4091 = vmatpush1.bf16.msra.mxu0 %v2919
    %4092 = vmatprep.subr.bf16.mxu0 %v2928
    %4093 = vmatpush1.bf16.msra.mxu0 %v2927
    %4094 = vmatprep.subr.bf16.mxu0 %v2936
    %4095 = vmatpush1.bf16.msra.mxu0 %v2935
    %4096 = vmatprep.mubr.bf16.mxu0 %v334
    %4097 = vmatmul.mubr.bf16.gmra.mrb[0].mxu0 %v333
    %v4098 = vpop.f32.mrb[0].mxu0
    %v4099 = vadd.f32 %v4058, %v4098
    %v4100 = vpop.f32.mrb[0].mxu0
    %v4101 = vadd.f32 %v4060, %v4100
    %v4102 = vpop.f32.mrb[0].mxu0
    %v4103 = vpop.f32.mrb[0].mxu0
    %4104 = vdwg.mxu0
    %v4105 = vmax.f32 %v3607, 0.0
    %v4106 = vmax.f32 %v3609, 0.0
    %v4107 = vmax.f32 %v3771, 0.0
    %v4108 = vmax.f32 %v3773, 0.0
    %v4109 = vmax.f32 %v3935, 0.0
    %v4110 = vmax.f32 %v3937, 0.0
    %v4111 = vmax.f32 %v4099, 0.0
    %v4112 = vmax.f32 %v4101, 0.0
    %v4113 = vld [vmem:[#allocation10] sm:$0xff]
    %v4115 = vlaneseq
    %v4116 = vshrl.u32 %v4115, 7
    %v4117 = vsub.s32 0, %v4116
    %v4118 = vrot.slane %v4113, %v4117
    %v4119 = vlaneseq
    %v4120 = vshrl.u32 %v4119, 7
    %v4121 = vsub.s32 1, %v4120
    %v4122 = vrot.slane %v4113, %v4121
    %v4123 = vlaneseq
    %v4124 = vshrl.u32 %v4123, 7
    %v4125 = vsub.s32 2, %v4124
    %v4126 = vrot.slane %v4113, %v4125
    %v4127 = vlaneseq
    %v4128 = vshrl.u32 %v4127, 7
    %v4129 = vsub.s32 3, %v4128
    %v4130 = vrot.slane %v4113, %v4129
    %v4131 = vlaneseq
    %v4132 = vshrl.u32 %v4131, 7
    %v4133 = vsub.s32 4, %v4132
    %v4134 = vrot.slane %v4113, %v4133
    %v4135 = vlaneseq
    %v4136 = vshrl.u32 %v4135, 7
    %v4137 = vsub.s32 5, %v4136
    %v4138 = vrot.slane %v4113, %v4137
    %v4139 = vlaneseq
    %v4140 = vshrl.u32 %v4139, 7
    %v4141 = vsub.s32 6, %v4140
    %v4142 = vrot.slane %v4113, %v4141
    %v4143 = vlaneseq
    %v4144 = vshrl.u32 %v4143, 7
    %v4145 = vsub.s32 7, %v4144
    %v4146 = vrot.slane %v4113, %v4145
    %v4155 = vmul.f32 %v4105, %v4118
    %v4156 = vmul.f32 %v4106, %v4122
    %v4157 = vmul.f32 %v4107, %v4126
    %v4158 = vmul.f32 %v4108, %v4130
    %v4159 = vmul.f32 %v4109, %v4134
    %v4160 = vmul.f32 %v4110, %v4138
    %v4161 = vmul.f32 %v4111, %v4142
    %v4162 = vmul.f32 %v4112, %v4146
    %v4163 = vadd.f32 %v4155, %v4156
    %v4164 = vadd.f32 %v4163, %v4157
    %v4165 = vadd.f32 %v4164, %v4158
    %v4166 = vadd.f32 %v4165, %v4159
    %v4167 = vadd.f32 %v4166, %v4160
    %v4168 = vadd.f32 %v4167, %v4161
    %v4169 = vadd.f32 %v4168, %v4162
    %4170 = vadd.xlane.f32.xlu0 %v4169
    %v4171 = vpop.xlane.xlu0 %4170
    %s4172 = sld [smem:[#allocation2]]
    %v4173 = vstv %s4172
    %v4174 = vadd.f32 %v4171, %v4173
    %v4175 = vxor.u32 %v4174, 2147483648
    %v4176 = vmul.f32 %v4175, 1.442695
    %v4177 = vpow.pop %v4176
    %v4178 = vadd.f32 %v4177, 1.0
    %v4179 = vrcp.pop %v4178
    %v4180 = vmul.f32 1.0, %v4179
    %vm4181 = vcmask 7168
    %4182 = vst.msk [vmem:[%s7] sm:$0xff] %vm4181, %v4180
    // Predicated region
    $region50: #{tpu_custom_call.1} parent=1 // pred_check
      _
    $region51: #{tpu_custom_call.1} parent=1 // pred_check_branch
      %4184 = sbr.rel (0) target = $region53
    $region52: #{tpu_custom_call.1} parent=1 // pred_region
      _
    $region53: #{tpu_custom_call.1} parent=1 // pred_fallthru
      _
    // Predicated region
    $region54: #{tpu_custom_call.1} parent=1 // pred_check
      _
    $region55: #{tpu_custom_call.1} parent=1 // pred_check_branch
      %4186 = sbr.rel (0) target = $region57
    $region56: #{tpu_custom_call.1} parent=1 // pred_region
      _
    $region57: #{tpu_custom_call.1} parent=1 // pred_fallthru
      _
    %4187 = vsyncpa [#allocation4], 1
    %4188 = vsyncpa [#allocation6], 1
    %4189 = vsyncpa [#allocation9], 1

</llo_original>
